<compile_context>
chip_gen: v7x
topology: tpu7x:2x2x1
jax: 0.10.0
libtpu: 0.0.40
codegen_flags: <defaults>
</compile_context>

<pallas_src>
import jax
import jax.numpy as jnp
from jax.experimental import pallas as pl
from jax.experimental.pallas import tpu as pltpu

# ---- model config (small, consistent with the module's shape contract) ----
NTOKEN = 50
NINP = 16
NHID = 32
NLAYERS = 2
BATCH = 8
BPTT = 8            # module contract: view(-1, batch*nhid) + Linear(nhid*bptt, .)
SEQ = BPTT          # => seq == bptt == batch for the shapes to be valid
HID1 = 500
HID1_PAD = 512      # lane-aligned padded decoder1 width
NCLASS = 2
SB = SEQ * BATCH    # 64
VOCAB_PAD = 64      # vocab rows padded to a sublane-friendly size
NHID2 = 2 * NHID    # combined [h1 | h2] wave-state width (64)


# ------------------------- fully fused kernel ------------------------------
def fused_rnn_kernel(tok_ref, embw_ref, wblk_ref, h0_ref, w1_hbm, b1_ref,
                     w2_ref, b2_ref, logp_ref, hid_ref,
                     out2_scr, w1_vmem, w1_sem):
    f32 = jnp.float32

    # Kick off the decoder1 weight DMA immediately (it is only consumed after
    # the recurrence) so the ~512 KiB transfer overlaps the serial RNN chain.
    w1_copy = pltpu.make_async_copy(w1_hbm, w1_vmem, w1_sem)
    w1_copy.start()

    # ---- embedding folded into layer-1 input projection (one one-hot matmul).
    # embw = pad(enc_w @ W_ih[0]); its right half (lanes NHID..2*NHID-1) is
    # zero so xp1 rows can be added directly to the (BATCH, 2*NHID) wave state.
    tok = tok_ref[...]                                               # (SB, 1) i32
    vocab = jax.lax.broadcasted_iota(jnp.int32, (SB, VOCAB_PAD), 1)
    onehot = (vocab == tok).astype(f32)                              # (SB, VOCAB_PAD)
    xp1 = jnp.dot(onehot, embw_ref[...], preferred_element_type=f32)  # (SB, 2*NHID)

    # ---- two-layer recurrence as a wavefront: one matmul + one tanh per wave
    # computes h1(t) and h2(t-1) together via the block weight
    # [[whh1, wih2], [0, whh2]].
    wblk = wblk_ref[...]                                             # (64, 64)
    s0 = h0_ref[...]                                                 # (8, 64) = [h1 | h2]
    col = jax.lax.broadcasted_iota(jnp.int32, (BATCH, NHID2), 1)

    # wave 0: only the h1 half is valid; keep the initial h2 in the right half.
    out = jnp.tanh(jnp.dot(s0, wblk, preferred_element_type=f32) + xp1[0:BATCH, :])
    s = jnp.where(col < NHID, out, s0)                               # [h1_0 | h2_init]

    # interior waves 1 .. SEQ-1 (statically unrolled).
    for w in range(1, SEQ):
        out = jnp.tanh(jnp.dot(s, wblk, preferred_element_type=f32)
                       + xp1[w * BATCH:(w + 1) * BATCH, :])
        # layer-2 output h2(w-1), time-major: scratch row t*BATCH + b.
        out2_scr[(w - 1) * BATCH:w * BATCH, :] = out[:, NHID:]
        s = out                                                      # [h1_w | h2_{w-1}]

    # final wave: only the h2 half is valid (no new input term).
    h1_last = s[:, :NHID]
    out = jnp.tanh(jnp.dot(s, wblk, preferred_element_type=f32))
    h2_last = out[:, NHID:]
    out2_scr[(SEQ - 1) * BATCH:SEQ * BATCH, :] = h2_last

    hid_ref[0] = h1_last
    hid_ref[1] = h2_last

    # ---- decoder1: z1 = output.view(seq, batch*nhid) @ W1 + b1.
    # Decomposed over batch column-blocks: output[:, b, :] is a stride-BATCH
    # sublane read of the time-major scratch (no selection matmuls); the 8
    # partial products are tree-accumulated.
    w1_copy.wait()
    ys = []
    for b in range(BATCH):
        h_b = out2_scr[pl.ds(b, SEQ, stride=BATCH), :]               # (SEQ, NHID)
        ys.append(jnp.dot(h_b, w1_vmem[b], preferred_element_type=f32))
    while len(ys) > 1:
        ys = [ys[i] + ys[i + 1] for i in range(0, len(ys), 2)]
    z1 = ys[0] + b1_ref[...]                                         # (SEQ, 512)
    d1 = jnp.maximum(z1, 0.0)

    # ---- decoder2 + log_softmax(dim=1) ----
    z2 = jnp.dot(d1, w2_ref[...], preferred_element_type=f32) + b2_ref[...]
    d2 = jnp.maximum(z2, 0.0)
    m = jnp.max(d2, axis=-1, keepdims=True)
    sft = d2 - m
    lse = jnp.log(jnp.sum(jnp.exp(sft), axis=-1, keepdims=True))
    logp_ref[...] = sft - lse


# ------------------------------ wrapper -------------------------------------
def forward(params, tokens, hidden):
    seq, batch = tokens.shape
    assert seq == SEQ and batch == BATCH
    assert hidden.shape == (NLAYERS, BATCH, NHID) and NLAYERS == 2
    f32 = jnp.float32

    # Fused embedding + layer-1 input projection, zero-padded to (VOCAB_PAD, 2*NHID).
    embw = jnp.zeros((VOCAB_PAD, NHID2), f32)
    embw = embw.at[:NTOKEN, :NHID].set(params["enc_w"] @ params["w_ih_t"][0])

    # Combined wave-recurrence block weight [[whh1, wih2], [0, whh2]]  (64, 64).
    wblk = jnp.concatenate(
        [jnp.concatenate([params["w_hh_t"][0], params["w_ih_t"][1]], axis=1),
         jnp.concatenate([jnp.zeros((NHID, NHID), f32), params["w_hh_t"][1]], axis=1)],
        axis=0)

    h0cat = jnp.concatenate([hidden[0], hidden[1]], axis=1)          # (8, 64)

    w1_pad = jnp.pad(params["w1_t"], ((0, 0), (0, HID1_PAD - HID1)))
    w1r = w1_pad.reshape(BATCH, NHID, HID1_PAD)     # row b*NHID + h -> [b, h, :]
    b1_pad = jnp.pad(params["b1"], (0, HID1_PAD - HID1)).reshape(1, HID1_PAD)
    w2_pad = jnp.pad(params["w2_t"], ((0, HID1_PAD - HID1), (0, 0)))
    b2 = params["b2"].reshape(1, NCLASS)
    tok2d = tokens.reshape(seq * batch, 1).astype(jnp.int32)

    logp, hid = pl.pallas_call(
        fused_rnn_kernel,
        out_shape=(jax.ShapeDtypeStruct((SEQ, NCLASS), jnp.float32),
                   jax.ShapeDtypeStruct((NLAYERS, BATCH, NHID), jnp.float32)),
        grid=(1,),
        in_specs=[
            pl.BlockSpec((SB, 1), lambda i: (0, 0)),                 # tokens
            pl.BlockSpec((VOCAB_PAD, NHID2), lambda i: (0, 0)),      # enc_w @ W_ih[0] (padded)
            pl.BlockSpec((NHID2, NHID2), lambda i: (0, 0)),          # block recurrence weight
            pl.BlockSpec((BATCH, NHID2), lambda i: (0, 0)),          # initial [h1 | h2]
            pl.BlockSpec(memory_space=pl.ANY),                       # W1 stays in HBM (manual DMA)
            pl.BlockSpec((1, HID1_PAD), lambda i: (0, 0)),           # b1 (padded)
            pl.BlockSpec((HID1_PAD, NCLASS), lambda i: (0, 0)),      # W2 (padded)
            pl.BlockSpec((1, NCLASS), lambda i: (0, 0)),             # b2
        ],
        out_specs=(
            pl.BlockSpec((SEQ, NCLASS), lambda i: (0, 0)),
            pl.BlockSpec((NLAYERS, BATCH, NHID), lambda i: (0, 0, 0)),
        ),
        scratch_shapes=[
            pltpu.VMEM((SB, NHID), jnp.float32),                     # layer-2 outputs (time-major)
            pltpu.VMEM((BATCH, NHID, HID1_PAD), jnp.float32),        # W1 landing buffer
            pltpu.SemaphoreType.DMA,                                 # W1 DMA completion
        ],
        compiler_params=pltpu.CompilerParams(
            dimension_semantics=("arbitrary",)),
    )(tok2d, embw, wblk, h0cat, w1r, b1_pad, w2_pad, b2)
    return logp, hid


# ------------------------------ params --------------------------------------
def init_params(key):
    initrange = 0.1
    k = 1.0 / jnp.sqrt(NHID)
    keys = jax.random.split(key, 8 + 2 * NLAYERS)
    params = {}
    params["enc_w"] = jax.random.uniform(
        keys[0], (NTOKEN, NINP), jnp.float32, -initrange, initrange)
    # RNN weights (bias=False); stored pre-transposed: (in, out)
    w_ih_t, w_hh_t = [], []
    for l in range(NLAYERS):
        nin = NINP if l == 0 else NHID
        w_ih_t.append(jax.random.uniform(
            keys[1 + 2 * l], (nin, NHID), jnp.float32, -k, k))
        w_hh_t.append(jax.random.uniform(
            keys[2 + 2 * l], (NHID, NHID), jnp.float32, -k, k))
    params["w_ih_t"] = w_ih_t
    params["w_hh_t"] = w_hh_t
    params["w1_t"] = jax.random.uniform(
        keys[-2], (NHID * BPTT, HID1), jnp.float32, -initrange, initrange)
    params["b1"] = jnp.zeros((HID1,), jnp.float32)
    params["w2_t"] = jax.random.uniform(
        keys[-1], (HID1, NCLASS), jnp.float32, -initrange, initrange)
    params["b2"] = jnp.zeros((NCLASS,), jnp.float32)
    return params


# ------------------------------ reference -----------------------------------
def forward_ref(params, tokens, hidden):
    """Pure-JAX reference (unpadded weights) for correctness check."""
    emb = jnp.take(params["enc_w"], tokens.reshape(-1), axis=0).reshape(
        tokens.shape[0], tokens.shape[1], NINP)
    x = emb
    new_hidden = []
    for l in range(NLAYERS):
        h = hidden[l]
        outs = []
        for t in range(x.shape[0]):
            h = jnp.tanh(x[t] @ params["w_ih_t"][l] + h @ params["w_hh_t"][l])
            outs.append(h)
        x = jnp.stack(outs, axis=0)
        new_hidden.append(h)
    hidden_out = jnp.stack(new_hidden, axis=0)
    flat = x.reshape(x.shape[0], x.shape[1] * x.shape[2])
    z1 = jnp.maximum(flat @ params["w1_t"] + params["b1"], 0.0)
    z2 = jnp.maximum(z1 @ params["w2_t"] + params["b2"], 0.0)
    logp = jax.nn.log_softmax(z2, axis=1)
    return logp, hidden_out


if __name__ == "__main__":
    key = jax.random.PRNGKey(0)
    pkey, tkey = jax.random.split(key)
    params = init_params(pkey)

    tokens = jax.random.randint(tkey, (SEQ, BATCH), 0, NTOKEN, dtype=jnp.int32)
    hidden0 = jnp.zeros((NLAYERS, BATCH, NHID), jnp.float32)   # init_hidden

    fwd = jax.jit(forward)
    logp, hidden_out = fwd(params, tokens, hidden0)
    jax.block_until_ready((logp, hidden_out))

    ref_logp, ref_hidden = forward_ref(params, tokens, hidden0)
    assert logp.shape == (SEQ, NCLASS)
    assert hidden_out.shape == (NLAYERS, BATCH, NHID)
    assert jnp.allclose(logp, ref_logp, atol=5e-3, rtol=5e-3)
    assert jnp.allclose(hidden_out, ref_hidden, atol=5e-3, rtol=5e-3)

    print("KERNEL_OK")
</pallas_src>

<mosaic_0001>
module attributes {stable_mosaic.version = 11 : i64} {
  func.func @fused_rnn_kernel(%arg0: i32, %arg1: memref<64x1xi32, #tpu.memory_space<vmem>>, %arg2: memref<64x64xf32, #tpu.memory_space<vmem>>, %arg3: memref<64x64xf32, #tpu.memory_space<vmem>>, %arg4: memref<8x64xf32, #tpu.memory_space<vmem>>, %arg5: memref<8x32x512xf32, #tpu.memory_space<any>>, %arg6: memref<1x512xf32, #tpu.memory_space<vmem>>, %arg7: memref<512x2xf32, #tpu.memory_space<vmem>>, %arg8: memref<1x2xf32, #tpu.memory_space<vmem>>, %arg9: memref<8x2xf32, #tpu.memory_space<vmem>>, %arg10: memref<2x8x32xf32, #tpu.memory_space<vmem>>, %arg11: memref<64x32xf32, #tpu.memory_space<vmem>>, %arg12: memref<8x32x512xf32, #tpu.memory_space<vmem>>, %arg13: memref<!tpu.dma_semaphore, #tpu.memory_space<semaphore_mem>>) attributes {dimension_semantics = [#tpu.dimension_semantics<arbitrary>], iteration_bounds = array<i64: 1>, scalar_prefetch = 0 : i64, scratch_operands = 3 : i64, tpu.core_type = #tpu.core_type<tc>, window_params = [{pipeline_mode = #tpu.pipeline_mode<synchronous>, transform_indices = @transform_0, window_bounds = array<i64: 64, 1>}, {pipeline_mode = #tpu.pipeline_mode<synchronous>, transform_indices = @transform_1, window_bounds = array<i64: 64, 64>}, {pipeline_mode = #tpu.pipeline_mode<synchronous>, transform_indices = @transform_2, window_bounds = array<i64: 64, 64>}, {pipeline_mode = #tpu.pipeline_mode<synchronous>, transform_indices = @transform_3, window_bounds = array<i64: 8, 64>}, {}, {pipeline_mode = #tpu.pipeline_mode<synchronous>, transform_indices = @transform_5, window_bounds = array<i64: 1, 512>}, {pipeline_mode = #tpu.pipeline_mode<synchronous>, transform_indices = @transform_6, window_bounds = array<i64: 512, 2>}, {pipeline_mode = #tpu.pipeline_mode<synchronous>, transform_indices = @transform_7, window_bounds = array<i64: 1, 2>}, {pipeline_mode = #tpu.pipeline_mode<synchronous>, transform_indices = @transform_8, window_bounds = array<i64: 8, 2>}, {pipeline_mode = #tpu.pipeline_mode<synchronous>, transform_indices = @transform_9, window_bounds = array<i64: 2, 8, 32>}]} {
    tpu.enqueue_dma source(%arg5 : memref<8x32x512xf32, #tpu.memory_space<any>>) target(%arg12 : memref<8x32x512xf32, #tpu.memory_space<vmem>>) target_semaphore(%arg13 : memref<!tpu.dma_semaphore, #tpu.memory_space<semaphore_mem>>)
    %c0 = arith.constant 0 : index
    %c0_0 = arith.constant 0 : index
    %0 = vector.load %arg1[%c0, %c0_0] : memref<64x1xi32, #tpu.memory_space<vmem>>, vector<64x1xi32>
    %1 = tpu.iota {dimensions = array<i32: 1>} : vector<64x64xi32>
    %2 = vector.broadcast %0 : vector<64x1xi32> to vector<64x64xi32>
    %3 = arith.cmpi eq, %1, %2 : vector<64x64xi32>
    %4 = arith.extui %3 : vector<64x64xi1> to vector<64x64xi32>
    %5 = arith.sitofp %4 : vector<64x64xi32> to vector<64x64xf32>
    %c0_1 = arith.constant 0 : index
    %c0_2 = arith.constant 0 : index
    %6 = vector.load %arg2[%c0_1, %c0_2] : memref<64x64xf32, #tpu.memory_space<vmem>>, vector<64x64xf32>
    %cst = arith.constant dense<0.000000e+00> : vector<64x64xf32>
    %7 = tpu.matmul %5, %6, %cst {dimension_numbers = #tpu.dot_dimension_numbers<[1], [0], [0], [1], [0, 0, 1, 1], [], []>} : vector<64x64xf32>, vector<64x64xf32>, vector<64x64xf32> -> vector<64x64xf32>
    %c0_3 = arith.constant 0 : index
    %c0_4 = arith.constant 0 : index
    %8 = vector.load %arg3[%c0_3, %c0_4] : memref<64x64xf32, #tpu.memory_space<vmem>>, vector<64x64xf32>
    %c0_5 = arith.constant 0 : index
    %c0_6 = arith.constant 0 : index
    %9 = vector.load %arg4[%c0_5, %c0_6] : memref<8x64xf32, #tpu.memory_space<vmem>>, vector<8x64xf32>
    %10 = tpu.iota {dimensions = array<i32: 1>} : vector<8x64xi32>
    %cst_7 = arith.constant dense<0.000000e+00> : vector<8x64xf32>
    %11 = tpu.matmul %9, %8, %cst_7 {dimension_numbers = #tpu.dot_dimension_numbers<[1], [0], [0], [1], [0, 0, 1, 1], [], []>} : vector<8x64xf32>, vector<64x64xf32>, vector<8x64xf32> -> vector<8x64xf32>
    %12 = vector.extract_strided_slice %7 {offsets = [0, 0], sizes = [8, 64], strides = [1, 1]} : vector<64x64xf32> to vector<8x64xf32>
    %13 = arith.addf %11, %12 : vector<8x64xf32>
    %14 = math.tanh %13 : vector<8x64xf32>
    %c32_i32 = arith.constant 32 : i32
    %15 = vector.broadcast %c32_i32 : i32 to vector<8x64xi32>
    %16 = arith.cmpi slt, %10, %15 : vector<8x64xi32>
    %17 = arith.select %16, %14, %9 : vector<8x64xi1>, vector<8x64xf32>
    %cst_8 = arith.constant dense<0.000000e+00> : vector<8x64xf32>
    %18 = tpu.matmul %17, %8, %cst_8 {dimension_numbers = #tpu.dot_dimension_numbers<[1], [0], [0], [1], [0, 0, 1, 1], [], []>} : vector<8x64xf32>, vector<64x64xf32>, vector<8x64xf32> -> vector<8x64xf32>
    %19 = vector.extract_strided_slice %7 {offsets = [8, 0], sizes = [8, 64], strides = [1, 1]} : vector<64x64xf32> to vector<8x64xf32>
    %20 = arith.addf %18, %19 : vector<8x64xf32>
    %21 = math.tanh %20 : vector<8x64xf32>
    %22 = vector.extract_strided_slice %21 {offsets = [0, 32], sizes = [8, 32], strides = [1, 1]} : vector<8x64xf32> to vector<8x32xf32>
    %c0_9 = arith.constant 0 : index
    %c0_10 = arith.constant 0 : index
    %23 = vector.load %arg11[%c0_9, %c0_10] : memref<64x32xf32, #tpu.memory_space<vmem>>, vector<8x32xf32>
    tpu.vector_store %arg11[%c0_9, %c0_10], %22 {strides = array<i32>} : memref<64x32xf32, #tpu.memory_space<vmem>>, vector<8x32xf32>,
    %cst_11 = arith.constant dense<0.000000e+00> : vector<8x64xf32>
    %24 = tpu.matmul %21, %8, %cst_11 {dimension_numbers = #tpu.dot_dimension_numbers<[1], [0], [0], [1], [0, 0, 1, 1], [], []>} : vector<8x64xf32>, vector<64x64xf32>, vector<8x64xf32> -> vector<8x64xf32>
    %25 = vector.extract_strided_slice %7 {offsets = [16, 0], sizes = [8, 64], strides = [1, 1]} : vector<64x64xf32> to vector<8x64xf32>
    %26 = arith.addf %24, %25 : vector<8x64xf32>
    %27 = math.tanh %26 : vector<8x64xf32>
    %28 = vector.extract_strided_slice %27 {offsets = [0, 32], sizes = [8, 32], strides = [1, 1]} : vector<8x64xf32> to vector<8x32xf32>
    %c8 = arith.constant 8 : index
    %c0_12 = arith.constant 0 : index
    %29 = vector.load %arg11[%c8, %c0_12] : memref<64x32xf32, #tpu.memory_space<vmem>>, vector<8x32xf32>
    tpu.vector_store %arg11[%c8, %c0_12], %28 {strides = array<i32>} : memref<64x32xf32, #tpu.memory_space<vmem>>, vector<8x32xf32>,
    %cst_13 = arith.constant dense<0.000000e+00> : vector<8x64xf32>
    %30 = tpu.matmul %27, %8, %cst_13 {dimension_numbers = #tpu.dot_dimension_numbers<[1], [0], [0], [1], [0, 0, 1, 1], [], []>} : vector<8x64xf32>, vector<64x64xf32>, vector<8x64xf32> -> vector<8x64xf32>
    %31 = vector.extract_strided_slice %7 {offsets = [24, 0], sizes = [8, 64], strides = [1, 1]} : vector<64x64xf32> to vector<8x64xf32>
    %32 = arith.addf %30, %31 : vector<8x64xf32>
    %33 = math.tanh %32 : vector<8x64xf32>
    %34 = vector.extract_strided_slice %33 {offsets = [0, 32], sizes = [8, 32], strides = [1, 1]} : vector<8x64xf32> to vector<8x32xf32>
    %c16 = arith.constant 16 : index
    %c0_14 = arith.constant 0 : index
    %35 = vector.load %arg11[%c16, %c0_14] : memref<64x32xf32, #tpu.memory_space<vmem>>, vector<8x32xf32>
    tpu.vector_store %arg11[%c16, %c0_14], %34 {strides = array<i32>} : memref<64x32xf32, #tpu.memory_space<vmem>>, vector<8x32xf32>,
    %cst_15 = arith.constant dense<0.000000e+00> : vector<8x64xf32>
    %36 = tpu.matmul %33, %8, %cst_15 {dimension_numbers = #tpu.dot_dimension_numbers<[1], [0], [0], [1], [0, 0, 1, 1], [], []>} : vector<8x64xf32>, vector<64x64xf32>, vector<8x64xf32> -> vector<8x64xf32>
    %37 = vector.extract_strided_slice %7 {offsets = [32, 0], sizes = [8, 64], strides = [1, 1]} : vector<64x64xf32> to vector<8x64xf32>
    %38 = arith.addf %36, %37 : vector<8x64xf32>
    %39 = math.tanh %38 : vector<8x64xf32>
    %40 = vector.extract_strided_slice %39 {offsets = [0, 32], sizes = [8, 32], strides = [1, 1]} : vector<8x64xf32> to vector<8x32xf32>
    %c24 = arith.constant 24 : index
    %c0_16 = arith.constant 0 : index
    %41 = vector.load %arg11[%c24, %c0_16] : memref<64x32xf32, #tpu.memory_space<vmem>>, vector<8x32xf32>
    tpu.vector_store %arg11[%c24, %c0_16], %40 {strides = array<i32>} : memref<64x32xf32, #tpu.memory_space<vmem>>, vector<8x32xf32>,
    %cst_17 = arith.constant dense<0.000000e+00> : vector<8x64xf32>
    %42 = tpu.matmul %39, %8, %cst_17 {dimension_numbers = #tpu.dot_dimension_numbers<[1], [0], [0], [1], [0, 0, 1, 1], [], []>} : vector<8x64xf32>, vector<64x64xf32>, vector<8x64xf32> -> vector<8x64xf32>
    %43 = vector.extract_strided_slice %7 {offsets = [40, 0], sizes = [8, 64], strides = [1, 1]} : vector<64x64xf32> to vector<8x64xf32>
    %44 = arith.addf %42, %43 : vector<8x64xf32>
    %45 = math.tanh %44 : vector<8x64xf32>
    %46 = vector.extract_strided_slice %45 {offsets = [0, 32], sizes = [8, 32], strides = [1, 1]} : vector<8x64xf32> to vector<8x32xf32>
    %c32 = arith.constant 32 : index
    %c0_18 = arith.constant 0 : index
    %47 = vector.load %arg11[%c32, %c0_18] : memref<64x32xf32, #tpu.memory_space<vmem>>, vector<8x32xf32>
    tpu.vector_store %arg11[%c32, %c0_18], %46 {strides = array<i32>} : memref<64x32xf32, #tpu.memory_space<vmem>>, vector<8x32xf32>,
    %cst_19 = arith.constant dense<0.000000e+00> : vector<8x64xf32>
    %48 = tpu.matmul %45, %8, %cst_19 {dimension_numbers = #tpu.dot_dimension_numbers<[1], [0], [0], [1], [0, 0, 1, 1], [], []>} : vector<8x64xf32>, vector<64x64xf32>, vector<8x64xf32> -> vector<8x64xf32>
    %49 = vector.extract_strided_slice %7 {offsets = [48, 0], sizes = [8, 64], strides = [1, 1]} : vector<64x64xf32> to vector<8x64xf32>
    %50 = arith.addf %48, %49 : vector<8x64xf32>
    %51 = math.tanh %50 : vector<8x64xf32>
    %52 = vector.extract_strided_slice %51 {offsets = [0, 32], sizes = [8, 32], strides = [1, 1]} : vector<8x64xf32> to vector<8x32xf32>
    %c40 = arith.constant 40 : index
    %c0_20 = arith.constant 0 : index
    %53 = vector.load %arg11[%c40, %c0_20] : memref<64x32xf32, #tpu.memory_space<vmem>>, vector<8x32xf32>
    tpu.vector_store %arg11[%c40, %c0_20], %52 {strides = array<i32>} : memref<64x32xf32, #tpu.memory_space<vmem>>, vector<8x32xf32>,
    %cst_21 = arith.constant dense<0.000000e+00> : vector<8x64xf32>
    %54 = tpu.matmul %51, %8, %cst_21 {dimension_numbers = #tpu.dot_dimension_numbers<[1], [0], [0], [1], [0, 0, 1, 1], [], []>} : vector<8x64xf32>, vector<64x64xf32>, vector<8x64xf32> -> vector<8x64xf32>
    %55 = vector.extract_strided_slice %7 {offsets = [56, 0], sizes = [8, 64], strides = [1, 1]} : vector<64x64xf32> to vector<8x64xf32>
    %56 = arith.addf %54, %55 : vector<8x64xf32>
    %57 = math.tanh %56 : vector<8x64xf32>
    %58 = vector.extract_strided_slice %57 {offsets = [0, 32], sizes = [8, 32], strides = [1, 1]} : vector<8x64xf32> to vector<8x32xf32>
    %c48 = arith.constant 48 : index
    %c0_22 = arith.constant 0 : index
    %59 = vector.load %arg11[%c48, %c0_22] : memref<64x32xf32, #tpu.memory_space<vmem>>, vector<8x32xf32>
    tpu.vector_store %arg11[%c48, %c0_22], %58 {strides = array<i32>} : memref<64x32xf32, #tpu.memory_space<vmem>>, vector<8x32xf32>,
    %60 = vector.extract_strided_slice %57 {offsets = [0, 0], sizes = [8, 32], strides = [1, 1]} : vector<8x64xf32> to vector<8x32xf32>
    %cst_23 = arith.constant dense<0.000000e+00> : vector<8x64xf32>
    %61 = tpu.matmul %57, %8, %cst_23 {dimension_numbers = #tpu.dot_dimension_numbers<[1], [0], [0], [1], [0, 0, 1, 1], [], []>} : vector<8x64xf32>, vector<64x64xf32>, vector<8x64xf32> -> vector<8x64xf32>
    %62 = math.tanh %61 : vector<8x64xf32>
    %63 = vector.extract_strided_slice %62 {offsets = [0, 32], sizes = [8, 32], strides = [1, 1]} : vector<8x64xf32> to vector<8x32xf32>
    %c56 = arith.constant 56 : index
    %c0_24 = arith.constant 0 : index
    %64 = vector.load %arg11[%c56, %c0_24] : memref<64x32xf32, #tpu.memory_space<vmem>>, vector<8x32xf32>
    tpu.vector_store %arg11[%c56, %c0_24], %63 {strides = array<i32>} : memref<64x32xf32, #tpu.memory_space<vmem>>, vector<8x32xf32>,
    %c0_25 = arith.constant 0 : index
    %c0_26 = arith.constant 0 : index
    %c0_27 = arith.constant 0 : index
    %65 = vector.load %arg10[%c0_25, %c0_26, %c0_27] : memref<2x8x32xf32, #tpu.memory_space<vmem>>, vector<1x8x32xf32>
    %66 = vector.shape_cast %65 : vector<1x8x32xf32> to vector<8x32xf32>
    %67 = vector.shape_cast %60 : vector<8x32xf32> to vector<1x8x32xf32>
    tpu.vector_store %arg10[%c0_25, %c0_26, %c0_27], %67 {strides = array<i32>} : memref<2x8x32xf32, #tpu.memory_space<vmem>>, vector<1x8x32xf32>,
    %c1 = arith.constant 1 : index
    %c0_28 = arith.constant 0 : index
    %c0_29 = arith.constant 0 : index
    %68 = vector.load %arg10[%c1, %c0_28, %c0_29] : memref<2x8x32xf32, #tpu.memory_space<vmem>>, vector<1x8x32xf32>
    %69 = vector.shape_cast %68 : vector<1x8x32xf32> to vector<8x32xf32>
    %70 = vector.shape_cast %63 : vector<8x32xf32> to vector<1x8x32xf32>
    tpu.vector_store %arg10[%c1, %c0_28, %c0_29], %70 {strides = array<i32>} : memref<2x8x32xf32, #tpu.memory_space<vmem>>, vector<1x8x32xf32>,
    tpu.wait_dma2 semaphore(%arg13 : memref<!tpu.dma_semaphore, #tpu.memory_space<semaphore_mem>>) src(%arg5 : memref<8x32x512xf32, #tpu.memory_space<any>>) dst(%arg12 : memref<8x32x512xf32, #tpu.memory_space<vmem>>)
    %c0_30 = arith.constant 0 : index
    %c0_31 = arith.constant 0 : index
    %71 = tpu.strided_load %arg11[%c0_30, %c0_31] {strides = array<i32: 8, 1>} : memref<64x32xf32, #tpu.memory_space<vmem>>, vector<8x32xf32>
    %c0_32 = arith.constant 0 : index
    %c0_33 = arith.constant 0 : index
    %c0_34 = arith.constant 0 : index
    %72 = vector.load %arg12[%c0_32, %c0_33, %c0_34] : memref<8x32x512xf32, #tpu.memory_space<vmem>>, vector<1x32x512xf32>
    %73 = vector.shape_cast %72 : vector<1x32x512xf32> to vector<32x512xf32>
    %cst_35 = arith.constant dense<0.000000e+00> : vector<8x512xf32>
    %74 = tpu.matmul %71, %73, %cst_35 {dimension_numbers = #tpu.dot_dimension_numbers<[1], [0], [0], [1], [0, 0, 1, 1], [], []>} : vector<8x32xf32>, vector<32x512xf32>, vector<8x512xf32> -> vector<8x512xf32>
    %c1_36 = arith.constant 1 : index
    %c0_37 = arith.constant 0 : index
    %75 = tpu.strided_load %arg11[%c1_36, %c0_37] {strides = array<i32: 8, 1>} : memref<64x32xf32, #tpu.memory_space<vmem>>, vector<8x32xf32>
    %c1_38 = arith.constant 1 : index
    %c0_39 = arith.constant 0 : index
    %c0_40 = arith.constant 0 : index
    %76 = vector.load %arg12[%c1_38, %c0_39, %c0_40] : memref<8x32x512xf32, #tpu.memory_space<vmem>>, vector<1x32x512xf32>
    %77 = vector.shape_cast %76 : vector<1x32x512xf32> to vector<32x512xf32>
    %cst_41 = arith.constant dense<0.000000e+00> : vector<8x512xf32>
    %78 = tpu.matmul %75, %77, %cst_41 {dimension_numbers = #tpu.dot_dimension_numbers<[1], [0], [0], [1], [0, 0, 1, 1], [], []>} : vector<8x32xf32>, vector<32x512xf32>, vector<8x512xf32> -> vector<8x512xf32>
    %c2 = arith.constant 2 : index
    %c0_42 = arith.constant 0 : index
    %79 = tpu.strided_load %arg11[%c2, %c0_42] {strides = array<i32: 8, 1>} : memref<64x32xf32, #tpu.memory_space<vmem>>, vector<8x32xf32>
    %c2_43 = arith.constant 2 : index
    %c0_44 = arith.constant 0 : index
    %c0_45 = arith.constant 0 : index
    %80 = vector.load %arg12[%c2_43, %c0_44, %c0_45] : memref<8x32x512xf32, #tpu.memory_space<vmem>>, vector<1x32x512xf32>
    %81 = vector.shape_cast %80 : vector<1x32x512xf32> to vector<32x512xf32>
    %cst_46 = arith.constant dense<0.000000e+00> : vector<8x512xf32>
    %82 = tpu.matmul %79, %81, %cst_46 {dimension_numbers = #tpu.dot_dimension_numbers<[1], [0], [0], [1], [0, 0, 1, 1], [], []>} : vector<8x32xf32>, vector<32x512xf32>, vector<8x512xf32> -> vector<8x512xf32>
    %c3 = arith.constant 3 : index
    %c0_47 = arith.constant 0 : index
    %83 = tpu.strided_load %arg11[%c3, %c0_47] {strides = array<i32: 8, 1>} : memref<64x32xf32, #tpu.memory_space<vmem>>, vector<8x32xf32>
    %c3_48 = arith.constant 3 : index
    %c0_49 = arith.constant 0 : index
    %c0_50 = arith.constant 0 : index
    %84 = vector.load %arg12[%c3_48, %c0_49, %c0_50] : memref<8x32x512xf32, #tpu.memory_space<vmem>>, vector<1x32x512xf32>
    %85 = vector.shape_cast %84 : vector<1x32x512xf32> to vector<32x512xf32>
    %cst_51 = arith.constant dense<0.000000e+00> : vector<8x512xf32>
    %86 = tpu.matmul %83, %85, %cst_51 {dimension_numbers = #tpu.dot_dimension_numbers<[1], [0], [0], [1], [0, 0, 1, 1], [], []>} : vector<8x32xf32>, vector<32x512xf32>, vector<8x512xf32> -> vector<8x512xf32>
    %c4 = arith.constant 4 : index
    %c0_52 = arith.constant 0 : index
    %87 = tpu.strided_load %arg11[%c4, %c0_52] {strides = array<i32: 8, 1>} : memref<64x32xf32, #tpu.memory_space<vmem>>, vector<8x32xf32>
    %c4_53 = arith.constant 4 : index
    %c0_54 = arith.constant 0 : index
    %c0_55 = arith.constant 0 : index
    %88 = vector.load %arg12[%c4_53, %c0_54, %c0_55] : memref<8x32x512xf32, #tpu.memory_space<vmem>>, vector<1x32x512xf32>
    %89 = vector.shape_cast %88 : vector<1x32x512xf32> to vector<32x512xf32>
    %cst_56 = arith.constant dense<0.000000e+00> : vector<8x512xf32>
    %90 = tpu.matmul %87, %89, %cst_56 {dimension_numbers = #tpu.dot_dimension_numbers<[1], [0], [0], [1], [0, 0, 1, 1], [], []>} : vector<8x32xf32>, vector<32x512xf32>, vector<8x512xf32> -> vector<8x512xf32>
    %c5 = arith.constant 5 : index
    %c0_57 = arith.constant 0 : index
    %91 = tpu.strided_load %arg11[%c5, %c0_57] {strides = array<i32: 8, 1>} : memref<64x32xf32, #tpu.memory_space<vmem>>, vector<8x32xf32>
    %c5_58 = arith.constant 5 : index
    %c0_59 = arith.constant 0 : index
    %c0_60 = arith.constant 0 : index
    %92 = vector.load %arg12[%c5_58, %c0_59, %c0_60] : memref<8x32x512xf32, #tpu.memory_space<vmem>>, vector<1x32x512xf32>
    %93 = vector.shape_cast %92 : vector<1x32x512xf32> to vector<32x512xf32>
    %cst_61 = arith.constant dense<0.000000e+00> : vector<8x512xf32>
    %94 = tpu.matmul %91, %93, %cst_61 {dimension_numbers = #tpu.dot_dimension_numbers<[1], [0], [0], [1], [0, 0, 1, 1], [], []>} : vector<8x32xf32>, vector<32x512xf32>, vector<8x512xf32> -> vector<8x512xf32>
    %c6 = arith.constant 6 : index
    %c0_62 = arith.constant 0 : index
    %95 = tpu.strided_load %arg11[%c6, %c0_62] {strides = array<i32: 8, 1>} : memref<64x32xf32, #tpu.memory_space<vmem>>, vector<8x32xf32>
    %c6_63 = arith.constant 6 : index
    %c0_64 = arith.constant 0 : index
    %c0_65 = arith.constant 0 : index
    %96 = vector.load %arg12[%c6_63, %c0_64, %c0_65] : memref<8x32x512xf32, #tpu.memory_space<vmem>>, vector<1x32x512xf32>
    %97 = vector.shape_cast %96 : vector<1x32x512xf32> to vector<32x512xf32>
    %cst_66 = arith.constant dense<0.000000e+00> : vector<8x512xf32>
    %98 = tpu.matmul %95, %97, %cst_66 {dimension_numbers = #tpu.dot_dimension_numbers<[1], [0], [0], [1], [0, 0, 1, 1], [], []>} : vector<8x32xf32>, vector<32x512xf32>, vector<8x512xf32> -> vector<8x512xf32>
    %c7 = arith.constant 7 : index
    %c0_67 = arith.constant 0 : index
    %99 = tpu.strided_load %arg11[%c7, %c0_67] {strides = array<i32: 8, 1>} : memref<64x32xf32, #tpu.memory_space<vmem>>, vector<8x32xf32>
    %c7_68 = arith.constant 7 : index
    %c0_69 = arith.constant 0 : index
    %c0_70 = arith.constant 0 : index
    %100 = vector.load %arg12[%c7_68, %c0_69, %c0_70] : memref<8x32x512xf32, #tpu.memory_space<vmem>>, vector<1x32x512xf32>
    %101 = vector.shape_cast %100 : vector<1x32x512xf32> to vector<32x512xf32>
    %cst_71 = arith.constant dense<0.000000e+00> : vector<8x512xf32>
    %102 = tpu.matmul %99, %101, %cst_71 {dimension_numbers = #tpu.dot_dimension_numbers<[1], [0], [0], [1], [0, 0, 1, 1], [], []>} : vector<8x32xf32>, vector<32x512xf32>, vector<8x512xf32> -> vector<8x512xf32>
    %103 = arith.addf %74, %78 : vector<8x512xf32>
    %104 = arith.addf %82, %86 : vector<8x512xf32>
    %105 = arith.addf %90, %94 : vector<8x512xf32>
    %106 = arith.addf %98, %102 : vector<8x512xf32>
    %107 = arith.addf %103, %104 : vector<8x512xf32>
    %108 = arith.addf %105, %106 : vector<8x512xf32>
    %109 = arith.addf %107, %108 : vector<8x512xf32>
    %c0_72 = arith.constant 0 : index
    %c0_73 = arith.constant 0 : index
    %110 = vector.load %arg6[%c0_72, %c0_73] : memref<1x512xf32, #tpu.memory_space<vmem>>, vector<1x512xf32>
    %111 = vector.broadcast %110 : vector<1x512xf32> to vector<8x512xf32>
    %112 = arith.addf %109, %111 : vector<8x512xf32>
    %cst_74 = arith.constant 0.000000e+00 : f32
    %113 = vector.broadcast %cst_74 : f32 to vector<8x512xf32>
    %114 = arith.maximumf %112, %113 : vector<8x512xf32>
    %c0_75 = arith.constant 0 : index
    %c0_76 = arith.constant 0 : index
    %115 = vector.load %arg7[%c0_75, %c0_76] : memref<512x2xf32, #tpu.memory_space<vmem>>, vector<512x2xf32>
    %cst_77 = arith.constant dense<0.000000e+00> : vector<8x2xf32>
    %116 = tpu.matmul %114, %115, %cst_77 {dimension_numbers = #tpu.dot_dimension_numbers<[1], [0], [0], [1], [0, 0, 1, 1], [], []>} : vector<8x512xf32>, vector<512x2xf32>, vector<8x2xf32> -> vector<8x2xf32>
    %c0_78 = arith.constant 0 : index
    %c0_79 = arith.constant 0 : index
    %117 = vector.load %arg8[%c0_78, %c0_79] : memref<1x2xf32, #tpu.memory_space<vmem>>, vector<1x2xf32>
    %118 = vector.broadcast %117 : vector<1x2xf32> to vector<8x2xf32>
    %119 = arith.addf %116, %118 : vector<8x2xf32>
    %cst_80 = arith.constant 0.000000e+00 : f32
    %120 = vector.broadcast %cst_80 : f32 to vector<8x2xf32>
    %121 = arith.maximumf %119, %120 : vector<8x2xf32>
    %cst_81 = arith.constant dense<0xFF800000> : vector<8xf32>
    %122 = vector.multi_reduction <maximumf>, %121, %cst_81 [1] : vector<8x2xf32> to vector<8xf32>
    %123 = vector.shape_cast %122 : vector<8xf32> to vector<8x1xf32>
    %124 = vector.broadcast %123 : vector<8x1xf32> to vector<8x2xf32>
    %125 = arith.subf %121, %124 : vector<8x2xf32>
    %126 = math.exp %125 : vector<8x2xf32>
    %cst_82 = arith.constant dense<0.000000e+00> : vector<8xf32>
    %127 = vector.multi_reduction <add>, %126, %cst_82 [1] : vector<8x2xf32> to vector<8xf32>
    %128 = vector.shape_cast %127 : vector<8xf32> to vector<8x1xf32>
    %129 = math.log %128 : vector<8x1xf32>
    %130 = vector.broadcast %129 : vector<8x1xf32> to vector<8x2xf32>
    %131 = arith.subf %125, %130 : vector<8x2xf32>
    %c0_83 = arith.constant 0 : index
    %c0_84 = arith.constant 0 : index
    %132 = vector.load %arg9[%c0_83, %c0_84] : memref<8x2xf32, #tpu.memory_space<vmem>>, vector<8x2xf32>
    tpu.vector_store %arg9[%c0_83, %c0_84], %131 {strides = array<i32>} : memref<8x2xf32, #tpu.memory_space<vmem>>, vector<8x2xf32>,
    return
  }
  func.func @transform_0(%arg0: i32) -> (i32, i32) {
    %c0_i32 = arith.constant 0 : i32
    %c0_i32_0 = arith.constant 0 : i32
    %c0_i32_1 = arith.constant 0 : i32
    return %c0_i32, %c0_i32_0 : i32, i32
  }
  func.func @transform_1(%arg0: i32) -> (i32, i32) {
    %c0_i32 = arith.constant 0 : i32
    %c0_i32_0 = arith.constant 0 : i32
    %c0_i32_1 = arith.constant 0 : i32
    return %c0_i32, %c0_i32_0 : i32, i32
  }
  func.func @transform_2(%arg0: i32) -> (i32, i32) {
    %c0_i32 = arith.constant 0 : i32
    %c0_i32_0 = arith.constant 0 : i32
    %c0_i32_1 = arith.constant 0 : i32
    return %c0_i32, %c0_i32_0 : i32, i32
  }
  func.func @transform_3(%arg0: i32) -> (i32, i32) {
    %c0_i32 = arith.constant 0 : i32
    %c0_i32_0 = arith.constant 0 : i32
    %c0_i32_1 = arith.constant 0 : i32
    return %c0_i32, %c0_i32_0 : i32, i32
  }
  func.func @transform_5(%arg0: i32) -> (i32, i32) {
    %c0_i32 = arith.constant 0 : i32
    %c0_i32_0 = arith.constant 0 : i32
    %c0_i32_1 = arith.constant 0 : i32
    return %c0_i32, %c0_i32_0 : i32, i32
  }
  func.func @transform_6(%arg0: i32) -> (i32, i32) {
    %c0_i32 = arith.constant 0 : i32
    %c0_i32_0 = arith.constant 0 : i32
    %c0_i32_1 = arith.constant 0 : i32
    return %c0_i32, %c0_i32_0 : i32, i32
  }
  func.func @transform_7(%arg0: i32) -> (i32, i32) {
    %c0_i32 = arith.constant 0 : i32
    %c0_i32_0 = arith.constant 0 : i32
    %c0_i32_1 = arith.constant 0 : i32
    return %c0_i32, %c0_i32_0 : i32, i32
  }
  func.func @transform_8(%arg0: i32) -> (i32, i32) {
    %c0_i32 = arith.constant 0 : i32
    %c0_i32_0 = arith.constant 0 : i32
    %c0_i32_1 = arith.constant 0 : i32
    return %c0_i32, %c0_i32_0 : i32, i32
  }
  func.func @transform_9(%arg0: i32) -> (i32, i32, i32) {
    %c0_i32 = arith.constant 0 : i32
    %c0_i32_0 = arith.constant 0 : i32
    %c0_i32_1 = arith.constant 0 : i32
    %c0_i32_2 = arith.constant 0 : i32
    return %c0_i32, %c0_i32_0, %c0_i32_1 : i32, i32, i32
  }
}

</mosaic_0001>

<llo_original>
// kernel: forward.1
$region0: #{forward.1}
  #allocation0 [shape = 'u32[]', space=smem, size = 0x4, offset = 0x4, fixed_abs, tag = 'smem constant byte address 0x4 - core index']
  #allocation1 [shape = 'u32[144,128]{1,0:T(1,128)}', space=vmem, size = 0x12000, scoped, tag = 'internal scratch']
  #allocation2 [shape = 'f32[64,32]{1,0:T(8,128)}', space=vmem, size = 0x8000, scoped, tag = 'scratch operand']
  #allocation3 [shape = 'f32[8,32,512]{2,1,0:T(8,128)}', space=vmem, size = 0x80000, scoped, tag = 'scratch operand']
  #allocation4 [shape = 's32[1]{0}', space=sflag, size = 0x4, scoped, tag = 'scratch operand']
  #allocation7 [shape = 's32[]', space=sflag, size = 0x4, offset = 0, fixed_abs, tag = 'sflag constant byte address 0x0 - dummy sync flag']
  %s0 = inlined_call_operand.vmem [shape: s32[64,1], index: 0, kind: input, shape index: {}]
  %s1 = inlined_call_operand.vmem [shape: f32[64,64], index: 1, kind: input, shape index: {}]
  %s2 = inlined_call_operand.vmem [shape: f32[64,64], index: 2, kind: input, shape index: {}]
  %s3 = inlined_call_operand.vmem [shape: f32[8,64], index: 3, kind: input, shape index: {}]
  %s4 = inlined_call_operand.vmem [shape: f32[8,32,512], index: 4, kind: input, shape index: {}]
  %s5 = inlined_call_operand.vmem [shape: f32[1,512], index: 5, kind: input, shape index: {}]
  %s6 = inlined_call_operand.vmem [shape: f32[512,2], index: 6, kind: input, shape index: {}]
  %s7 = inlined_call_operand.vmem [shape: f32[1,2], index: 7, kind: input, shape index: {}]
  %s8 = inlined_call_operand.vmem [shape: f32[8,2], index: 8, kind: output, shape index: {0}]
  %s9 = inlined_call_operand.hbm [shape: f32[2,8,32], index: 9, kind: output, shape index: {1}]
  %10 = xla_tuple %s8, %s9
  %s11 = sld [smem:[#allocation0]]
  $region80: #{forward.1} parent=0
    _
  %s13 = ssub.s32 1, %s11
  %s14 = scalar_select 0, %s13, %s11
  $region1: #{forward.1} parent=0
    #allocation5 [shape = 'u8[8192]{0}', space=vmem, size = 0x2000, scoped, tag = 'output window, operand 1, single buffered']
    #allocation6 [shape = 's32[1]{0}', space=sflag, size = 0x4, scoped, tag = 'scoped memory for forward.1']
    %15 = vsyncpa [#allocation6], 0
    // Predicated region
    $region2: #{forward.1} parent=1 // pred_check
      _
    $region3: #{forward.1} parent=1 // pred_check_branch
      %17 = sbr.rel (0) target = $region5
    $region4: #{forward.1} parent=1 // pred_region
      _
    $region5: #{forward.1} parent=1 // pred_fallthru
      _
    // Predicated region
    $region6: #{forward.1} parent=1 // pred_check
      _
    $region7: #{forward.1} parent=1 // pred_check_branch
      %19 = sbr.rel (0) target = $region9
    $region8: #{forward.1} parent=1 // pred_region
      _
    $region9: #{forward.1} parent=1 // pred_fallthru
      _
    // Predicated region
    $region10: #{forward.1} parent=1 // pred_check
      _
    $region11: #{forward.1} parent=1 // pred_check_branch
      %21 = sbr.rel (0) target = $region13
    $region12: #{forward.1} parent=1 // pred_region
      _
    $region13: #{forward.1} parent=1 // pred_fallthru
      _
    // Predicated region
    $region14: #{forward.1} parent=1 // pred_check
      _
    $region15: #{forward.1} parent=1 // pred_check_branch
      %23 = sbr.rel (0) target = $region17
    $region16: #{forward.1} parent=1 // pred_region
      _
    $region17: #{forward.1} parent=1 // pred_fallthru
      _
    // Predicated region
    $region18: #{forward.1} parent=1 // pred_check
      _
    $region19: #{forward.1} parent=1 // pred_check_branch
      %25 = sbr.rel (0) target = $region21
    $region20: #{forward.1} parent=1 // pred_region
      _
    $region21: #{forward.1} parent=1 // pred_fallthru
      _
    // Predicated region
    $region22: #{forward.1} parent=1 // pred_check
      _
    $region23: #{forward.1} parent=1 // pred_check_branch
      %27 = sbr.rel (0) target = $region25
    $region24: #{forward.1} parent=1 // pred_region
      _
    $region25: #{forward.1} parent=1 // pred_fallthru
      _
    // Predicated region
    $region26: #{forward.1} parent=1 // pred_check
      _
    $region27: #{forward.1} parent=1 // pred_check_branch
      %29 = sbr.rel (0) target = $region29
    $region28: #{forward.1} parent=1 // pred_region
      _
    $region29: #{forward.1} parent=1 // pred_fallthru
      _
    %p31 = scmp.lt.u32.totalorder 1024, 8
    %p32 = pneg %p31
    // Predicated region
    $region30: #{forward.1} parent=1 // pred_check
      _
    $region31: #{forward.1} parent=1 // pred_check_branch
      %34 = sbr.rel (%p31) target = $region33
    $region32: #{forward.1} parent=1 // pred_region
      %s49 = sand.u32 1024, 7
      %p50 = scmp.eq.s32.totalorder %s49, 0
      // Predicated region
      $region45: #{forward.1} parent=32 // pred_check
        %p51 = pneg %p50
      $region46: #{forward.1} parent=32 // pred_check_branch
        %53 = sbr.rel (%p51) target = $region48
      $region47: #{forward.1} parent=32 // pred_region
        loop: start=0, step=1, limit=1
        $region49: #{forward.1} parent=47 // loop_pre_header
          _
        $region50: #{forward.1} parent=47 // loop_header
          %s55 = sphi 0, %s59
          %p56 = scmp.ge.s32.totalorder %s55, 1
          %s60 = sphi %s4, %s4
          %s61 = sphi [#allocation3], [#allocation3]
        $region51: #{forward.1} parent=47 // loop_header_branch
          %58 = sbr.rel (%p56) target = $region55
        $region52: #{forward.1} parent=47 // loop_body
          %v62 = vld [vmem:[%s60] sm:$0xff]
          %63 = vst [vmem:[%s61] sm:$0xff] %v62
          %v64 = vld [vmem:[%s60 + $0x8] sm:$0xff]
          %65 = vst [vmem:[%s61 + $0x8] sm:$0xff] %v64
          %v66 = vld [vmem:[%s60 + $0x10] sm:$0xff]
          %67 = vst [vmem:[%s61 + $0x10] sm:$0xff] %v66
          %v68 = vld [vmem:[%s60 + $0x18] sm:$0xff]
          %69 = vst [vmem:[%s61 + $0x18] sm:$0xff] %v68
          %v70 = vld [vmem:[%s60 + $0x20] sm:$0xff]
          %71 = vst [vmem:[%s61 + $0x20] sm:$0xff] %v70
          %v72 = vld [vmem:[%s60 + $0x28] sm:$0xff]
          %73 = vst [vmem:[%s61 + $0x28] sm:$0xff] %v72
          %v74 = vld [vmem:[%s60 + $0x30] sm:$0xff]
          %75 = vst [vmem:[%s61 + $0x30] sm:$0xff] %v74
          %v76 = vld [vmem:[%s60 + $0x38] sm:$0xff]
          %77 = vst [vmem:[%s61 + $0x38] sm:$0xff] %v76
          %v78 = vld [vmem:[%s60 + $0x40] sm:$0xff]
          %79 = vst [vmem:[%s61 + $0x40] sm:$0xff] %v78
          %v80 = vld [vmem:[%s60 + $0x48] sm:$0xff]
          %81 = vst [vmem:[%s61 + $0x48] sm:$0xff] %v80
          %v82 = vld [vmem:[%s60 + $0x50] sm:$0xff]
          %83 = vst [vmem:[%s61 + $0x50] sm:$0xff] %v82
          %v84 = vld [vmem:[%s60 + $0x58] sm:$0xff]
          %85 = vst [vmem:[%s61 + $0x58] sm:$0xff] %v84
          %v86 = vld [vmem:[%s60 + $0x60] sm:$0xff]
          %87 = vst [vmem:[%s61 + $0x60] sm:$0xff] %v86
          %v88 = vld [vmem:[%s60 + $0x68] sm:$0xff]
          %89 = vst [vmem:[%s61 + $0x68] sm:$0xff] %v88
          %v90 = vld [vmem:[%s60 + $0x70] sm:$0xff]
          %91 = vst [vmem:[%s61 + $0x70] sm:$0xff] %v90
          %v92 = vld [vmem:[%s60 + $0x78] sm:$0xff]
          %93 = vst [vmem:[%s61 + $0x78] sm:$0xff] %v92
          %v94 = vld [vmem:[%s60 + $0x80] sm:$0xff]
          %95 = vst [vmem:[%s61 + $0x80] sm:$0xff] %v94
          %v96 = vld [vmem:[%s60 + $0x88] sm:$0xff]
          %97 = vst [vmem:[%s61 + $0x88] sm:$0xff] %v96
          %v98 = vld [vmem:[%s60 + $0x90] sm:$0xff]
          %99 = vst [vmem:[%s61 + $0x90] sm:$0xff] %v98
          %v100 = vld [vmem:[%s60 + $0x98] sm:$0xff]
          %101 = vst [vmem:[%s61 + $0x98] sm:$0xff] %v100
          %v102 = vld [vmem:[%s60 + $0xa0] sm:$0xff]
          %103 = vst [vmem:[%s61 + $0xa0] sm:$0xff] %v102
          %v104 = vld [vmem:[%s60 + $0xa8] sm:$0xff]
          %105 = vst [vmem:[%s61 + $0xa8] sm:$0xff] %v104
          %v106 = vld [vmem:[%s60 + $0xb0] sm:$0xff]
          %107 = vst [vmem:[%s61 + $0xb0] sm:$0xff] %v106
          %v108 = vld [vmem:[%s60 + $0xb8] sm:$0xff]
          %109 = vst [vmem:[%s61 + $0xb8] sm:$0xff] %v108
          %v110 = vld [vmem:[%s60 + $0xc0] sm:$0xff]
          %111 = vst [vmem:[%s61 + $0xc0] sm:$0xff] %v110
          %v112 = vld [vmem:[%s60 + $0xc8] sm:$0xff]
          %113 = vst [vmem:[%s61 + $0xc8] sm:$0xff] %v112
          %v114 = vld [vmem:[%s60 + $0xd0] sm:$0xff]
          %115 = vst [vmem:[%s61 + $0xd0] sm:$0xff] %v114
          %v116 = vld [vmem:[%s60 + $0xd8] sm:$0xff]
          %117 = vst [vmem:[%s61 + $0xd8] sm:$0xff] %v116
          %v118 = vld [vmem:[%s60 + $0xe0] sm:$0xff]
          %119 = vst [vmem:[%s61 + $0xe0] sm:$0xff] %v118
          %v120 = vld [vmem:[%s60 + $0xe8] sm:$0xff]
          %121 = vst [vmem:[%s61 + $0xe8] sm:$0xff] %v120
          %v122 = vld [vmem:[%s60 + $0xf0] sm:$0xff]
          %123 = vst [vmem:[%s61 + $0xf0] sm:$0xff] %v122
          %v124 = vld [vmem:[%s60 + $0xf8] sm:$0xff]
          %125 = vst [vmem:[%s61 + $0xf8] sm:$0xff] %v124
          %v126 = vld [vmem:[%s60 + $0x100] sm:$0xff]
          %127 = vst [vmem:[%s61 + $0x100] sm:$0xff] %v126
          %v128 = vld [vmem:[%s60 + $0x108] sm:$0xff]
          %129 = vst [vmem:[%s61 + $0x108] sm:$0xff] %v128
          %v130 = vld [vmem:[%s60 + $0x110] sm:$0xff]
          %131 = vst [vmem:[%s61 + $0x110] sm:$0xff] %v130
          %v132 = vld [vmem:[%s60 + $0x118] sm:$0xff]
          %133 = vst [vmem:[%s61 + $0x118] sm:$0xff] %v132
          %v134 = vld [vmem:[%s60 + $0x120] sm:$0xff]
          %135 = vst [vmem:[%s61 + $0x120] sm:$0xff] %v134
          %v136 = vld [vmem:[%s60 + $0x128] sm:$0xff]
          %137 = vst [vmem:[%s61 + $0x128] sm:$0xff] %v136
          %v138 = vld [vmem:[%s60 + $0x130] sm:$0xff]
          %139 = vst [vmem:[%s61 + $0x130] sm:$0xff] %v138
          %v140 = vld [vmem:[%s60 + $0x138] sm:$0xff]
          %141 = vst [vmem:[%s61 + $0x138] sm:$0xff] %v140
          %v142 = vld [vmem:[%s60 + $0x140] sm:$0xff]
          %143 = vst [vmem:[%s61 + $0x140] sm:$0xff] %v142
          %v144 = vld [vmem:[%s60 + $0x148] sm:$0xff]
          %145 = vst [vmem:[%s61 + $0x148] sm:$0xff] %v144
          %v146 = vld [vmem:[%s60 + $0x150] sm:$0xff]
          %147 = vst [vmem:[%s61 + $0x150] sm:$0xff] %v146
          %v148 = vld [vmem:[%s60 + $0x158] sm:$0xff]
          %149 = vst [vmem:[%s61 + $0x158] sm:$0xff] %v148
          %v150 = vld [vmem:[%s60 + $0x160] sm:$0xff]
          %151 = vst [vmem:[%s61 + $0x160] sm:$0xff] %v150
          %v152 = vld [vmem:[%s60 + $0x168] sm:$0xff]
          %153 = vst [vmem:[%s61 + $0x168] sm:$0xff] %v152
          %v154 = vld [vmem:[%s60 + $0x170] sm:$0xff]
          %155 = vst [vmem:[%s61 + $0x170] sm:$0xff] %v154
          %v156 = vld [vmem:[%s60 + $0x178] sm:$0xff]
          %157 = vst [vmem:[%s61 + $0x178] sm:$0xff] %v156
          %v158 = vld [vmem:[%s60 + $0x180] sm:$0xff]
          %159 = vst [vmem:[%s61 + $0x180] sm:$0xff] %v158
          %v160 = vld [vmem:[%s60 + $0x188] sm:$0xff]
          %161 = vst [vmem:[%s61 + $0x188] sm:$0xff] %v160
          %v162 = vld [vmem:[%s60 + $0x190] sm:$0xff]
          %163 = vst [vmem:[%s61 + $0x190] sm:$0xff] %v162
          %v164 = vld [vmem:[%s60 + $0x198] sm:$0xff]
          %165 = vst [vmem:[%s61 + $0x198] sm:$0xff] %v164
          %v166 = vld [vmem:[%s60 + $0x1a0] sm:$0xff]
          %167 = vst [vmem:[%s61 + $0x1a0] sm:$0xff] %v166
          %v168 = vld [vmem:[%s60 + $0x1a8] sm:$0xff]
          %169 = vst [vmem:[%s61 + $0x1a8] sm:$0xff] %v168
          %v170 = vld [vmem:[%s60 + $0x1b0] sm:$0xff]
          %171 = vst [vmem:[%s61 + $0x1b0] sm:$0xff] %v170
          %v172 = vld [vmem:[%s60 + $0x1b8] sm:$0xff]
          %173 = vst [vmem:[%s61 + $0x1b8] sm:$0xff] %v172
          %v174 = vld [vmem:[%s60 + $0x1c0] sm:$0xff]
          %175 = vst [vmem:[%s61 + $0x1c0] sm:$0xff] %v174
          %v176 = vld [vmem:[%s60 + $0x1c8] sm:$0xff]
          %177 = vst [vmem:[%s61 + $0x1c8] sm:$0xff] %v176
          %v178 = vld [vmem:[%s60 + $0x1d0] sm:$0xff]
          %179 = vst [vmem:[%s61 + $0x1d0] sm:$0xff] %v178
          %v180 = vld [vmem:[%s60 + $0x1d8] sm:$0xff]
          %181 = vst [vmem:[%s61 + $0x1d8] sm:$0xff] %v180
          %v182 = vld [vmem:[%s60 + $0x1e0] sm:$0xff]
          %183 = vst [vmem:[%s61 + $0x1e0] sm:$0xff] %v182
          %v184 = vld [vmem:[%s60 + $0x1e8] sm:$0xff]
          %185 = vst [vmem:[%s61 + $0x1e8] sm:$0xff] %v184
          %v186 = vld [vmem:[%s60 + $0x1f0] sm:$0xff]
          %187 = vst [vmem:[%s61 + $0x1f0] sm:$0xff] %v186
          %v188 = vld [vmem:[%s60 + $0x1f8] sm:$0xff]
          %189 = vst [vmem:[%s61 + $0x1f8] sm:$0xff] %v188
          %v190 = vld [vmem:[%s60 + $0x200] sm:$0xff]
          %191 = vst [vmem:[%s61 + $0x200] sm:$0xff] %v190
          %v192 = vld [vmem:[%s60 + $0x208] sm:$0xff]
          %193 = vst [vmem:[%s61 + $0x208] sm:$0xff] %v192
          %v194 = vld [vmem:[%s60 + $0x210] sm:$0xff]
          %195 = vst [vmem:[%s61 + $0x210] sm:$0xff] %v194
          %v196 = vld [vmem:[%s60 + $0x218] sm:$0xff]
          %197 = vst [vmem:[%s61 + $0x218] sm:$0xff] %v196
          %v198 = vld [vmem:[%s60 + $0x220] sm:$0xff]
          %199 = vst [vmem:[%s61 + $0x220] sm:$0xff] %v198
          %v200 = vld [vmem:[%s60 + $0x228] sm:$0xff]
          %201 = vst [vmem:[%s61 + $0x228] sm:$0xff] %v200
          %v202 = vld [vmem:[%s60 + $0x230] sm:$0xff]
          %203 = vst [vmem:[%s61 + $0x230] sm:$0xff] %v202
          %v204 = vld [vmem:[%s60 + $0x238] sm:$0xff]
          %205 = vst [vmem:[%s61 + $0x238] sm:$0xff] %v204
          %v206 = vld [vmem:[%s60 + $0x240] sm:$0xff]
          %207 = vst [vmem:[%s61 + $0x240] sm:$0xff] %v206
          %v208 = vld [vmem:[%s60 + $0x248] sm:$0xff]
          %209 = vst [vmem:[%s61 + $0x248] sm:$0xff] %v208
          %v210 = vld [vmem:[%s60 + $0x250] sm:$0xff]
          %211 = vst [vmem:[%s61 + $0x250] sm:$0xff] %v210
          %v212 = vld [vmem:[%s60 + $0x258] sm:$0xff]
          %213 = vst [vmem:[%s61 + $0x258] sm:$0xff] %v212
          %v214 = vld [vmem:[%s60 + $0x260] sm:$0xff]
          %215 = vst [vmem:[%s61 + $0x260] sm:$0xff] %v214
          %v216 = vld [vmem:[%s60 + $0x268] sm:$0xff]
          %217 = vst [vmem:[%s61 + $0x268] sm:$0xff] %v216
          %v218 = vld [vmem:[%s60 + $0x270] sm:$0xff]
          %219 = vst [vmem:[%s61 + $0x270] sm:$0xff] %v218
          %v220 = vld [vmem:[%s60 + $0x278] sm:$0xff]
          %221 = vst [vmem:[%s61 + $0x278] sm:$0xff] %v220
          %v222 = vld [vmem:[%s60 + $0x280] sm:$0xff]
          %223 = vst [vmem:[%s61 + $0x280] sm:$0xff] %v222
          %v224 = vld [vmem:[%s60 + $0x288] sm:$0xff]
          %225 = vst [vmem:[%s61 + $0x288] sm:$0xff] %v224
          %v226 = vld [vmem:[%s60 + $0x290] sm:$0xff]
          %227 = vst [vmem:[%s61 + $0x290] sm:$0xff] %v226
          %v228 = vld [vmem:[%s60 + $0x298] sm:$0xff]
          %229 = vst [vmem:[%s61 + $0x298] sm:$0xff] %v228
          %v230 = vld [vmem:[%s60 + $0x2a0] sm:$0xff]
          %231 = vst [vmem:[%s61 + $0x2a0] sm:$0xff] %v230
          %v232 = vld [vmem:[%s60 + $0x2a8] sm:$0xff]
          %233 = vst [vmem:[%s61 + $0x2a8] sm:$0xff] %v232
          %v234 = vld [vmem:[%s60 + $0x2b0] sm:$0xff]
          %235 = vst [vmem:[%s61 + $0x2b0] sm:$0xff] %v234
          %v236 = vld [vmem:[%s60 + $0x2b8] sm:$0xff]
          %237 = vst [vmem:[%s61 + $0x2b8] sm:$0xff] %v236
          %v238 = vld [vmem:[%s60 + $0x2c0] sm:$0xff]
          %239 = vst [vmem:[%s61 + $0x2c0] sm:$0xff] %v238
          %v240 = vld [vmem:[%s60 + $0x2c8] sm:$0xff]
          %241 = vst [vmem:[%s61 + $0x2c8] sm:$0xff] %v240
          %v242 = vld [vmem:[%s60 + $0x2d0] sm:$0xff]
          %243 = vst [vmem:[%s61 + $0x2d0] sm:$0xff] %v242
          %v244 = vld [vmem:[%s60 + $0x2d8] sm:$0xff]
          %245 = vst [vmem:[%s61 + $0x2d8] sm:$0xff] %v244
          %v246 = vld [vmem:[%s60 + $0x2e0] sm:$0xff]
          %247 = vst [vmem:[%s61 + $0x2e0] sm:$0xff] %v246
          %v248 = vld [vmem:[%s60 + $0x2e8] sm:$0xff]
          %249 = vst [vmem:[%s61 + $0x2e8] sm:$0xff] %v248
          %v250 = vld [vmem:[%s60 + $0x2f0] sm:$0xff]
          %251 = vst [vmem:[%s61 + $0x2f0] sm:$0xff] %v250
          %v252 = vld [vmem:[%s60 + $0x2f8] sm:$0xff]
          %253 = vst [vmem:[%s61 + $0x2f8] sm:$0xff] %v252
          %v254 = vld [vmem:[%s60 + $0x300] sm:$0xff]
          %255 = vst [vmem:[%s61 + $0x300] sm:$0xff] %v254
          %v256 = vld [vmem:[%s60 + $0x308] sm:$0xff]
          %257 = vst [vmem:[%s61 + $0x308] sm:$0xff] %v256
          %v258 = vld [vmem:[%s60 + $0x310] sm:$0xff]
          %259 = vst [vmem:[%s61 + $0x310] sm:$0xff] %v258
          %v260 = vld [vmem:[%s60 + $0x318] sm:$0xff]
          %261 = vst [vmem:[%s61 + $0x318] sm:$0xff] %v260
          %v262 = vld [vmem:[%s60 + $0x320] sm:$0xff]
          %263 = vst [vmem:[%s61 + $0x320] sm:$0xff] %v262
          %v264 = vld [vmem:[%s60 + $0x328] sm:$0xff]
          %265 = vst [vmem:[%s61 + $0x328] sm:$0xff] %v264
          %v266 = vld [vmem:[%s60 + $0x330] sm:$0xff]
          %267 = vst [vmem:[%s61 + $0x330] sm:$0xff] %v266
          %v268 = vld [vmem:[%s60 + $0x338] sm:$0xff]
          %269 = vst [vmem:[%s61 + $0x338] sm:$0xff] %v268
          %v270 = vld [vmem:[%s60 + $0x340] sm:$0xff]
          %271 = vst [vmem:[%s61 + $0x340] sm:$0xff] %v270
          %v272 = vld [vmem:[%s60 + $0x348] sm:$0xff]
          %273 = vst [vmem:[%s61 + $0x348] sm:$0xff] %v272
          %v274 = vld [vmem:[%s60 + $0x350] sm:$0xff]
          %275 = vst [vmem:[%s61 + $0x350] sm:$0xff] %v274
          %v276 = vld [vmem:[%s60 + $0x358] sm:$0xff]
          %277 = vst [vmem:[%s61 + $0x358] sm:$0xff] %v276
          %v278 = vld [vmem:[%s60 + $0x360] sm:$0xff]
          %279 = vst [vmem:[%s61 + $0x360] sm:$0xff] %v278
          %v280 = vld [vmem:[%s60 + $0x368] sm:$0xff]
          %281 = vst [vmem:[%s61 + $0x368] sm:$0xff] %v280
          %v282 = vld [vmem:[%s60 + $0x370] sm:$0xff]
          %283 = vst [vmem:[%s61 + $0x370] sm:$0xff] %v282
          %v284 = vld [vmem:[%s60 + $0x378] sm:$0xff]
          %285 = vst [vmem:[%s61 + $0x378] sm:$0xff] %v284
          %v286 = vld [vmem:[%s60 + $0x380] sm:$0xff]
          %287 = vst [vmem:[%s61 + $0x380] sm:$0xff] %v286
          %v288 = vld [vmem:[%s60 + $0x388] sm:$0xff]
          %289 = vst [vmem:[%s61 + $0x388] sm:$0xff] %v288
          %v290 = vld [vmem:[%s60 + $0x390] sm:$0xff]
          %291 = vst [vmem:[%s61 + $0x390] sm:$0xff] %v290
          %v292 = vld [vmem:[%s60 + $0x398] sm:$0xff]
          %293 = vst [vmem:[%s61 + $0x398] sm:$0xff] %v292
          %v294 = vld [vmem:[%s60 + $0x3a0] sm:$0xff]
          %295 = vst [vmem:[%s61 + $0x3a0] sm:$0xff] %v294
          %v296 = vld [vmem:[%s60 + $0x3a8] sm:$0xff]
          %297 = vst [vmem:[%s61 + $0x3a8] sm:$0xff] %v296
          %v298 = vld [vmem:[%s60 + $0x3b0] sm:$0xff]
          %299 = vst [vmem:[%s61 + $0x3b0] sm:$0xff] %v298
          %v300 = vld [vmem:[%s60 + $0x3b8] sm:$0xff]
          %301 = vst [vmem:[%s61 + $0x3b8] sm:$0xff] %v300
          %v302 = vld [vmem:[%s60 + $0x3c0] sm:$0xff]
          %303 = vst [vmem:[%s61 + $0x3c0] sm:$0xff] %v302
          %v304 = vld [vmem:[%s60 + $0x3c8] sm:$0xff]
          %305 = vst [vmem:[%s61 + $0x3c8] sm:$0xff] %v304
          %v306 = vld [vmem:[%s60 + $0x3d0] sm:$0xff]
          %307 = vst [vmem:[%s61 + $0x3d0] sm:$0xff] %v306
          %v308 = vld [vmem:[%s60 + $0x3d8] sm:$0xff]
          %309 = vst [vmem:[%s61 + $0x3d8] sm:$0xff] %v308
          %v310 = vld [vmem:[%s60 + $0x3e0] sm:$0xff]
          %311 = vst [vmem:[%s61 + $0x3e0] sm:$0xff] %v310
          %v312 = vld [vmem:[%s60 + $0x3e8] sm:$0xff]
          %313 = vst [vmem:[%s61 + $0x3e8] sm:$0xff] %v312
          %v314 = vld [vmem:[%s60 + $0x3f0] sm:$0xff]
          %315 = vst [vmem:[%s61 + $0x3f0] sm:$0xff] %v314
          %v316 = vld [vmem:[%s60 + $0x3f8] sm:$0xff]
          %317 = vst [vmem:[%s61 + $0x3f8] sm:$0xff] %v316
        $region53: #{forward.1} parent=47 // loop_footer
          %s59 = sadd.s32 1, %s55
        $region54: #{forward.1} parent=47 // loop_footer_branch
          %54 = sbr.rel target = $region50
        $region55: #{forward.1} parent=47 // loop_exit
          _
      $region48: #{forward.1} parent=32 // pred_fallthru
        _
      %p318 = pneg %p50
      // Predicated region
      $region56: #{forward.1} parent=32 // pred_check
        _
      $region57: #{forward.1} parent=32 // pred_check_branch
        %320 = sbr.rel (%p50) target = $region59
      $region58: #{forward.1} parent=32 // pred_region
        %s321 = sand.u32 1024, 7
      $region59: #{forward.1} parent=32 // pred_fallthru
        _
    $region33: #{forward.1} parent=1 // pred_fallthru
      _
    // Predicated region
    $region34: #{forward.1} parent=1 // pred_check
      %p35 = pneg %p31
    $region35: #{forward.1} parent=1 // pred_check_branch
      %37 = sbr.rel (%p35) target = $region37
    $region36: #{forward.1} parent=1 // pred_region
      %s38 = sshllo.u32 0, 1024
      loop: start=0, step=1, limit=1
      $region38: #{forward.1} parent=36 // loop_pre_header
        _
      $region39: #{forward.1} parent=36 // loop_header
        %s40 = sphi 0, %s44
        %p41 = scmp.ge.s32.totalorder %s40, 1
        %s45 = sphi %s4, %s4
        %s46 = sphi [#allocation3], [#allocation3]
      $region40: #{forward.1} parent=36 // loop_header_branch
        %43 = sbr.rel (%p41) target = $region44
      $region41: #{forward.1} parent=36 // loop_body
        %v47 = vld [vmem:[%s45] sm:%s38]
        %48 = vst [vmem:[%s46] sm:%s38] %v47
      $region42: #{forward.1} parent=36 // loop_footer
        %s44 = sadd.s32 1, %s40
      $region43: #{forward.1} parent=36 // loop_footer_branch
        %39 = sbr.rel target = $region39
      $region44: #{forward.1} parent=36 // loop_exit
        _
    $region37: #{forward.1} parent=1 // pred_fallthru
      _
    // Predicated region
    $region60: #{forward.1} parent=1 // pred_check
      _
    $region61: #{forward.1} parent=1 // pred_check_branch
      %324 = sbr.rel (0) target = $region63
    $region62: #{forward.1} parent=1 // pred_region
      %325 = vsyncadd [#allocation4], 16384
    $region63: #{forward.1} parent=1 // pred_fallthru
      _
    %v326 = vld [vmem:[%s0] sm:$0xff]
    %v327 = vld [vmem:[%s0 + $0x8] sm:$0xff]
    %v328 = vld [vmem:[%s0 + $0x10] sm:$0xff]
    %v329 = vld [vmem:[%s0 + $0x18] sm:$0xff]
    %v330 = vld [vmem:[%s0 + $0x20] sm:$0xff]
    %v331 = vld [vmem:[%s0 + $0x28] sm:$0xff]
    %v332 = vld [vmem:[%s0 + $0x30] sm:$0xff]
    %v333 = vld [vmem:[%s0 + $0x38] sm:$0xff]
    %v334 = vlaneseq
    %v335 = vand.u32 %v334, 127
    %336 = vset.pattern.permute.xlu0 0
    %337 = vperm.xlu0 %336, %v326
    %v338 = vpop.permute.xlu0 %337
    %339 = vset.pattern.permute.xlu0 0
    %340 = vperm.xlu0 %339, %v327
    %v341 = vpop.permute.xlu0 %340
    %342 = vset.pattern.permute.xlu0 0
    %343 = vperm.xlu0 %342, %v328
    %v344 = vpop.permute.xlu0 %343
    %345 = vset.pattern.permute.xlu0 0
    %346 = vperm.xlu0 %345, %v329
    %v347 = vpop.permute.xlu0 %346
    %348 = vset.pattern.permute.xlu0 0
    %349 = vperm.xlu0 %348, %v330
    %v350 = vpop.permute.xlu0 %349
    %351 = vset.pattern.permute.xlu0 0
    %352 = vperm.xlu0 %351, %v331
    %v353 = vpop.permute.xlu0 %352
    %354 = vset.pattern.permute.xlu0 0
    %355 = vperm.xlu0 %354, %v332
    %v356 = vpop.permute.xlu0 %355
    %357 = vset.pattern.permute.xlu0 0
    %358 = vperm.xlu0 %357, %v333
    %v359 = vpop.permute.xlu0 %358
    %vm360 = vcmp.eq.s32.totalorder %v335, %v338
    %vm361 = vcmp.eq.s32.totalorder %v335, %v341
    %vm362 = vcmp.eq.s32.totalorder %v335, %v344
    %vm363 = vcmp.eq.s32.totalorder %v335, %v347
    %vm364 = vcmp.eq.s32.totalorder %v335, %v350
    %vm365 = vcmp.eq.s32.totalorder %v335, %v353
    %vm366 = vcmp.eq.s32.totalorder %v335, %v356
    %vm367 = vcmp.eq.s32.totalorder %v335, %v359
    %v368 = vsel %vm360, 1, 0
    %v369 = vsel %vm361, 1, 0
    %v370 = vsel %vm362, 1, 0
    %v371 = vsel %vm363, 1, 0
    %v372 = vsel %vm364, 1, 0
    %v373 = vsel %vm365, 1, 0
    %v374 = vsel %vm366, 1, 0
    %v375 = vsel %vm367, 1, 0
    %v376 = vcvt.s32.f32 %v368
    %v377 = vcvt.s32.f32 %v369
    %v378 = vcvt.s32.f32 %v370
    %v379 = vcvt.s32.f32 %v371
    %v380 = vcvt.s32.f32 %v372
    %v381 = vcvt.s32.f32 %v373
    %v382 = vcvt.s32.f32 %v374
    %v383 = vcvt.s32.f32 %v375
    %v384 = vld [vmem:[%s1] sm:$0xff]
    %v385 = vld [vmem:[%s1 + $0x8] sm:$0xff]
    %v386 = vld [vmem:[%s1 + $0x10] sm:$0xff]
    %v387 = vld [vmem:[%s1 + $0x18] sm:$0xff]
    %v388 = vld [vmem:[%s1 + $0x20] sm:$0xff]
    %v389 = vld [vmem:[%s1 + $0x28] sm:$0xff]
    %v390 = vld [vmem:[%s1 + $0x30] sm:$0xff]
    %v391 = vld [vmem:[%s1 + $0x38] sm:$0xff]
    %vm392 = vcmask 523264
    %v394 = vsel %vm392, %v376, 0
    %v397 = vsel %vm392, %v377, 0
    %v400 = vsel %vm392, %v378, 0
    %v403 = vsel %vm392, %v379, 0
    %v406 = vsel %vm392, %v380, 0
    %v409 = vsel %vm392, %v381, 0
    %v412 = vsel %vm392, %v382, 0
    %v415 = vsel %vm392, %v383, 0
    %417 = vmatprep.subr.mxu0 0.0
    %418 = vmatpush1.msra.mxu0 %v384
    %419 = vmatprep.subr.mxu0 0.0
    %420 = vmatpush1.msra.mxu0 %v385
    %421 = vmatprep.subr.mxu0 0.0
    %422 = vmatpush1.msra.mxu0 %v386
    %423 = vmatprep.subr.mxu0 0.0
    %424 = vmatpush1.msra.mxu0 %v387
    %425 = vmatprep.subr.mxu0 0.0
    %426 = vmatpush1.msra.mxu0 %v388
    %427 = vmatprep.subr.mxu0 0.0
    %428 = vmatpush1.msra.mxu0 %v389
    %429 = vmatprep.subr.mxu0 0.0
    %430 = vmatpush1.msra.mxu0 %v390
    %431 = vmatprep.subr.mxu0 0.0
    %432 = vmatpush1.msra.mxu0 %v391
    %433 = vmatprep.subr.mxu0 0.0
    %434 = vmatpush1.msra.mxu0 0.0
    %435 = vmatprep.subr.mxu0 0.0
    %436 = vmatpush1.msra.mxu0 0.0
    %437 = vmatprep.subr.mxu0 0.0
    %438 = vmatpush1.msra.mxu0 0.0
    %439 = vmatprep.subr.mxu0 0.0
    %440 = vmatpush1.msra.mxu0 0.0
    %441 = vmatprep.subr.mxu0 0.0
    %442 = vmatpush1.msra.mxu0 0.0
    %443 = vmatprep.subr.mxu0 0.0
    %444 = vmatpush1.msra.mxu0 0.0
    %445 = vmatprep.subr.mxu0 0.0
    %446 = vmatpush1.msra.mxu0 0.0
    %447 = vmatprep.subr.mxu0 0.0
    %448 = vmatpush1.msra.mxu0 0.0
    %449 = vmatprep.subr.mxu0 0.0
    %450 = vmatpush1.msra.mxu0 0.0
    %451 = vmatprep.subr.mxu0 0.0
    %452 = vmatpush1.msra.mxu0 0.0
    %453 = vmatprep.subr.mxu0 0.0
    %454 = vmatpush1.msra.mxu0 0.0
    %455 = vmatprep.subr.mxu0 0.0
    %456 = vmatpush1.msra.mxu0 0.0
    %457 = vmatprep.subr.mxu0 0.0
    %458 = vmatpush1.msra.mxu0 0.0
    %459 = vmatprep.subr.mxu0 0.0
    %460 = vmatpush1.msra.mxu0 0.0
    %461 = vmatprep.subr.mxu0 0.0
    %462 = vmatpush1.msra.mxu0 0.0
    %463 = vmatprep.subr.mxu0 0.0
    %464 = vmatpush1.msra.mxu0 0.0
    %465 = vmatprep.subr.mxu0 0.0
    %466 = vmatpush1.msra.mxu0 0.0
    %467 = vmatprep.subr.mxu0 0.0
    %468 = vmatpush1.msra.mxu0 0.0
    %469 = vmatprep.subr.mxu0 0.0
    %470 = vmatpush1.msra.mxu0 0.0
    %471 = vmatprep.subr.mxu0 0.0
    %472 = vmatpush1.msra.mxu0 0.0
    %473 = vmatprep.subr.mxu0 0.0
    %474 = vmatpush1.msra.mxu0 0.0
    %475 = vmatprep.subr.mxu0 0.0
    %476 = vmatpush1.msra.mxu0 0.0
    %477 = vmatprep.subr.mxu0 0.0
    %478 = vmatpush1.msra.mxu0 0.0
    %479 = vmatprep.subr.mxu0 0.0
    %480 = vmatpush1.msra.mxu0 0.0
    %481 = vmatprep.mubr.f32.mxu0 0.0
    %482 = vmatmul.mubr.f32.gmra.mrb[0].mxu0 %v394
    %v483 = vpop.f32.mrb[0].mxu0
    %v484 = vadd.f32 0.0, %v483
    %v485 = vpop.f32.mrb[0].mxu0
    %486 = vmatprep.mubr.f32.mxu0 0.0
    %487 = vmatmul.mubr.f32.gmra.mrb[0].mxu0 %v397
    %v488 = vpop.f32.mrb[0].mxu0
    %v489 = vadd.f32 0.0, %v488
    %v490 = vpop.f32.mrb[0].mxu0
    %491 = vmatprep.mubr.f32.mxu0 0.0
    %492 = vmatmul.mubr.f32.gmra.mrb[0].mxu0 %v400
    %v493 = vpop.f32.mrb[0].mxu0
    %v494 = vadd.f32 0.0, %v493
    %v495 = vpop.f32.mrb[0].mxu0
    %496 = vmatprep.mubr.f32.mxu0 0.0
    %497 = vmatmul.mubr.f32.gmra.mrb[0].mxu0 %v403
    %v498 = vpop.f32.mrb[0].mxu0
    %v499 = vadd.f32 0.0, %v498
    %v500 = vpop.f32.mrb[0].mxu0
    %501 = vmatprep.mubr.f32.mxu0 0.0
    %502 = vmatmul.mubr.f32.gmra.mrb[0].mxu0 %v406
    %v503 = vpop.f32.mrb[0].mxu0
    %v504 = vadd.f32 0.0, %v503
    %v505 = vpop.f32.mrb[0].mxu0
    %506 = vmatprep.mubr.f32.mxu0 0.0
    %507 = vmatmul.mubr.f32.gmra.mrb[0].mxu0 %v409
    %v508 = vpop.f32.mrb[0].mxu0
    %v509 = vadd.f32 0.0, %v508
    %v510 = vpop.f32.mrb[0].mxu0
    %511 = vmatprep.mubr.f32.mxu0 0.0
    %512 = vmatmul.mubr.f32.gmra.mrb[0].mxu0 %v412
    %v513 = vpop.f32.mrb[0].mxu0
    %v514 = vadd.f32 0.0, %v513
    %v515 = vpop.f32.mrb[0].mxu0
    %516 = vmatprep.mubr.f32.mxu0 0.0
    %517 = vmatmul.mubr.f32.gmra.mrb[0].mxu0 %v415
    %v518 = vpop.f32.mrb[0].mxu0
    %v519 = vadd.f32 0.0, %v518
    %v520 = vpop.f32.mrb[0].mxu0
    %521 = vdwg.mxu0
    %v522 = vld [vmem:[%s2] sm:$0xff]
    %v523 = vld [vmem:[%s2 + $0x8] sm:$0xff]
    %v524 = vld [vmem:[%s2 + $0x10] sm:$0xff]
    %v525 = vld [vmem:[%s2 + $0x18] sm:$0xff]
    %v526 = vld [vmem:[%s2 + $0x20] sm:$0xff]
    %v527 = vld [vmem:[%s2 + $0x28] sm:$0xff]
    %v528 = vld [vmem:[%s2 + $0x30] sm:$0xff]
    %v529 = vld [vmem:[%s2 + $0x38] sm:$0xff]
    %v530 = vld [vmem:[%s3] sm:$0xff]
    %v532 = vsel %vm392, %v530, 0
    %534 = vmatprep.subr.mxu0 0.0
    %535 = vmatpush1.msra.mxu0 %v522
    %536 = vmatprep.subr.mxu0 0.0
    %537 = vmatpush1.msra.mxu0 %v523
    %538 = vmatprep.subr.mxu0 0.0
    %539 = vmatpush1.msra.mxu0 %v524
    %540 = vmatprep.subr.mxu0 0.0
    %541 = vmatpush1.msra.mxu0 %v525
    %542 = vmatprep.subr.mxu0 0.0
    %543 = vmatpush1.msra.mxu0 %v526
    %544 = vmatprep.subr.mxu0 0.0
    %545 = vmatpush1.msra.mxu0 %v527
    %546 = vmatprep.subr.mxu0 0.0
    %547 = vmatpush1.msra.mxu0 %v528
    %548 = vmatprep.subr.mxu0 0.0
    %549 = vmatpush1.msra.mxu0 %v529
    %550 = vmatprep.subr.mxu0 0.0
    %551 = vmatpush1.msra.mxu0 0.0
    %552 = vmatprep.subr.mxu0 0.0
    %553 = vmatpush1.msra.mxu0 0.0
    %554 = vmatprep.subr.mxu0 0.0
    %555 = vmatpush1.msra.mxu0 0.0
    %556 = vmatprep.subr.mxu0 0.0
    %557 = vmatpush1.msra.mxu0 0.0
    %558 = vmatprep.subr.mxu0 0.0
    %559 = vmatpush1.msra.mxu0 0.0
    %560 = vmatprep.subr.mxu0 0.0
    %561 = vmatpush1.msra.mxu0 0.0
    %562 = vmatprep.subr.mxu0 0.0
    %563 = vmatpush1.msra.mxu0 0.0
    %564 = vmatprep.subr.mxu0 0.0
    %565 = vmatpush1.msra.mxu0 0.0
    %566 = vmatprep.subr.mxu0 0.0
    %567 = vmatpush1.msra.mxu0 0.0
    %568 = vmatprep.subr.mxu0 0.0
    %569 = vmatpush1.msra.mxu0 0.0
    %570 = vmatprep.subr.mxu0 0.0
    %571 = vmatpush1.msra.mxu0 0.0
    %572 = vmatprep.subr.mxu0 0.0
    %573 = vmatpush1.msra.mxu0 0.0
    %574 = vmatprep.subr.mxu0 0.0
    %575 = vmatpush1.msra.mxu0 0.0
    %576 = vmatprep.subr.mxu0 0.0
    %577 = vmatpush1.msra.mxu0 0.0
    %578 = vmatprep.subr.mxu0 0.0
    %579 = vmatpush1.msra.mxu0 0.0
    %580 = vmatprep.subr.mxu0 0.0
    %581 = vmatpush1.msra.mxu0 0.0
    %582 = vmatprep.subr.mxu0 0.0
    %583 = vmatpush1.msra.mxu0 0.0
    %584 = vmatprep.subr.mxu0 0.0
    %585 = vmatpush1.msra.mxu0 0.0
    %586 = vmatprep.subr.mxu0 0.0
    %587 = vmatpush1.msra.mxu0 0.0
    %588 = vmatprep.subr.mxu0 0.0
    %589 = vmatpush1.msra.mxu0 0.0
    %590 = vmatprep.subr.mxu0 0.0
    %591 = vmatpush1.msra.mxu0 0.0
    %592 = vmatprep.subr.mxu0 0.0
    %593 = vmatpush1.msra.mxu0 0.0
    %594 = vmatprep.subr.mxu0 0.0
    %595 = vmatpush1.msra.mxu0 0.0
    %596 = vmatprep.subr.mxu0 0.0
    %597 = vmatpush1.msra.mxu0 0.0
    %598 = vmatprep.mubr.f32.mxu0 0.0
    %599 = vmatmul.mubr.f32.gmra.mrb[0].mxu0 %v532
    %v600 = vpop.f32.mrb[0].mxu0
    %v601 = vadd.f32 %v484, %v600
    %v602 = vpop.f32.mrb[0].mxu0
    %603 = vdwg.mxu0
    %v604 = vtanh.pop %v601
    %vm605 = vcmp.lt.s32.totalorder %v335, 32
    %v606 = vsel %vm605, %v604, %v530
    %v608 = vsel %vm392, %v606, 0
    %610 = vmatprep.subr.mxu0 0.0
    %611 = vmatpush1.msra.mxu0 %v522
    %612 = vmatprep.subr.mxu0 0.0
    %613 = vmatpush1.msra.mxu0 %v523
    %614 = vmatprep.subr.mxu0 0.0
    %615 = vmatpush1.msra.mxu0 %v524
    %616 = vmatprep.subr.mxu0 0.0
    %617 = vmatpush1.msra.mxu0 %v525
    %618 = vmatprep.subr.mxu0 0.0
    %619 = vmatpush1.msra.mxu0 %v526
    %620 = vmatprep.subr.mxu0 0.0
    %621 = vmatpush1.msra.mxu0 %v527
    %622 = vmatprep.subr.mxu0 0.0
    %623 = vmatpush1.msra.mxu0 %v528
    %624 = vmatprep.subr.mxu0 0.0
    %625 = vmatpush1.msra.mxu0 %v529
    %626 = vmatprep.subr.mxu0 0.0
    %627 = vmatpush1.msra.mxu0 0.0
    %628 = vmatprep.subr.mxu0 0.0
    %629 = vmatpush1.msra.mxu0 0.0
    %630 = vmatprep.subr.mxu0 0.0
    %631 = vmatpush1.msra.mxu0 0.0
    %632 = vmatprep.subr.mxu0 0.0
    %633 = vmatpush1.msra.mxu0 0.0
    %634 = vmatprep.subr.mxu0 0.0
    %635 = vmatpush1.msra.mxu0 0.0
    %636 = vmatprep.subr.mxu0 0.0
    %637 = vmatpush1.msra.mxu0 0.0
    %638 = vmatprep.subr.mxu0 0.0
    %639 = vmatpush1.msra.mxu0 0.0
    %640 = vmatprep.subr.mxu0 0.0
    %641 = vmatpush1.msra.mxu0 0.0
    %642 = vmatprep.subr.mxu0 0.0
    %643 = vmatpush1.msra.mxu0 0.0
    %644 = vmatprep.subr.mxu0 0.0
    %645 = vmatpush1.msra.mxu0 0.0
    %646 = vmatprep.subr.mxu0 0.0
    %647 = vmatpush1.msra.mxu0 0.0
    %648 = vmatprep.subr.mxu0 0.0
    %649 = vmatpush1.msra.mxu0 0.0
    %650 = vmatprep.subr.mxu0 0.0
    %651 = vmatpush1.msra.mxu0 0.0
    %652 = vmatprep.subr.mxu0 0.0
    %653 = vmatpush1.msra.mxu0 0.0
    %654 = vmatprep.subr.mxu0 0.0
    %655 = vmatpush1.msra.mxu0 0.0
    %656 = vmatprep.subr.mxu0 0.0
    %657 = vmatpush1.msra.mxu0 0.0
    %658 = vmatprep.subr.mxu0 0.0
    %659 = vmatpush1.msra.mxu0 0.0
    %660 = vmatprep.subr.mxu0 0.0
    %661 = vmatpush1.msra.mxu0 0.0
    %662 = vmatprep.subr.mxu0 0.0
    %663 = vmatpush1.msra.mxu0 0.0
    %664 = vmatprep.subr.mxu0 0.0
    %665 = vmatpush1.msra.mxu0 0.0
    %666 = vmatprep.subr.mxu0 0.0
    %667 = vmatpush1.msra.mxu0 0.0
    %668 = vmatprep.subr.mxu0 0.0
    %669 = vmatpush1.msra.mxu0 0.0
    %670 = vmatprep.subr.mxu0 0.0
    %671 = vmatpush1.msra.mxu0 0.0
    %672 = vmatprep.subr.mxu0 0.0
    %673 = vmatpush1.msra.mxu0 0.0
    %674 = vmatprep.mubr.f32.mxu0 0.0
    %675 = vmatmul.mubr.f32.gmra.mrb[0].mxu0 %v608
    %v676 = vpop.f32.mrb[0].mxu0
    %v677 = vadd.f32 %v489, %v676
    %v678 = vpop.f32.mrb[0].mxu0
    %679 = vdwg.mxu0
    %v680 = vtanh.pop %v677
    %682 = vrot.lane.b32.xlu0 %v680, 96
    %v683 = vpop.permute.xlu0 %682
    %vm685 = vcmask 261120
    %686 = vst.msk [vmem:[#allocation2] sm:$0xff] %vm685, %v683
    %v687 = vsel %vm392, %v680, 0
    %689 = vmatprep.subr.mxu0 0.0
    %690 = vmatpush1.msra.mxu0 %v522
    %691 = vmatprep.subr.mxu0 0.0
    %692 = vmatpush1.msra.mxu0 %v523
    %693 = vmatprep.subr.mxu0 0.0
    %694 = vmatpush1.msra.mxu0 %v524
    %695 = vmatprep.subr.mxu0 0.0
    %696 = vmatpush1.msra.mxu0 %v525
    %697 = vmatprep.subr.mxu0 0.0
    %698 = vmatpush1.msra.mxu0 %v526
    %699 = vmatprep.subr.mxu0 0.0
    %700 = vmatpush1.msra.mxu0 %v527
    %701 = vmatprep.subr.mxu0 0.0
    %702 = vmatpush1.msra.mxu0 %v528
    %703 = vmatprep.subr.mxu0 0.0
    %704 = vmatpush1.msra.mxu0 %v529
    %705 = vmatprep.subr.mxu0 0.0
    %706 = vmatpush1.msra.mxu0 0.0
    %707 = vmatprep.subr.mxu0 0.0
    %708 = vmatpush1.msra.mxu0 0.0
    %709 = vmatprep.subr.mxu0 0.0
    %710 = vmatpush1.msra.mxu0 0.0
    %711 = vmatprep.subr.mxu0 0.0
    %712 = vmatpush1.msra.mxu0 0.0
    %713 = vmatprep.subr.mxu0 0.0
    %714 = vmatpush1.msra.mxu0 0.0
    %715 = vmatprep.subr.mxu0 0.0
    %716 = vmatpush1.msra.mxu0 0.0
    %717 = vmatprep.subr.mxu0 0.0
    %718 = vmatpush1.msra.mxu0 0.0
    %719 = vmatprep.subr.mxu0 0.0
    %720 = vmatpush1.msra.mxu0 0.0
    %721 = vmatprep.subr.mxu0 0.0
    %722 = vmatpush1.msra.mxu0 0.0
    %723 = vmatprep.subr.mxu0 0.0
    %724 = vmatpush1.msra.mxu0 0.0
    %725 = vmatprep.subr.mxu0 0.0
    %726 = vmatpush1.msra.mxu0 0.0
    %727 = vmatprep.subr.mxu0 0.0
    %728 = vmatpush1.msra.mxu0 0.0
    %729 = vmatprep.subr.mxu0 0.0
    %730 = vmatpush1.msra.mxu0 0.0
    %731 = vmatprep.subr.mxu0 0.0
    %732 = vmatpush1.msra.mxu0 0.0
    %733 = vmatprep.subr.mxu0 0.0
    %734 = vmatpush1.msra.mxu0 0.0
    %735 = vmatprep.subr.mxu0 0.0
    %736 = vmatpush1.msra.mxu0 0.0
    %737 = vmatprep.subr.mxu0 0.0
    %738 = vmatpush1.msra.mxu0 0.0
    %739 = vmatprep.subr.mxu0 0.0
    %740 = vmatpush1.msra.mxu0 0.0
    %741 = vmatprep.subr.mxu0 0.0
    %742 = vmatpush1.msra.mxu0 0.0
    %743 = vmatprep.subr.mxu0 0.0
    %744 = vmatpush1.msra.mxu0 0.0
    %745 = vmatprep.subr.mxu0 0.0
    %746 = vmatpush1.msra.mxu0 0.0
    %747 = vmatprep.subr.mxu0 0.0
    %748 = vmatpush1.msra.mxu0 0.0
    %749 = vmatprep.subr.mxu0 0.0
    %750 = vmatpush1.msra.mxu0 0.0
    %751 = vmatprep.subr.mxu0 0.0
    %752 = vmatpush1.msra.mxu0 0.0
    %753 = vmatprep.mubr.f32.mxu0 0.0
    %754 = vmatmul.mubr.f32.gmra.mrb[0].mxu0 %v687
    %v755 = vpop.f32.mrb[0].mxu0
    %v756 = vadd.f32 %v494, %v755
    %v757 = vpop.f32.mrb[0].mxu0
    %758 = vdwg.mxu0
    %v759 = vtanh.pop %v756
    %761 = vrot.lane.b32.xlu0 %v759, 96
    %v762 = vpop.permute.xlu0 %761
    %764 = vst.msk [vmem:[#allocation2 + $0x8] sm:$0xff] %vm685, %v762
    %v765 = vsel %vm392, %v759, 0
    %767 = vmatprep.subr.mxu0 0.0
    %768 = vmatpush1.msra.mxu0 %v522
    %769 = vmatprep.subr.mxu0 0.0
    %770 = vmatpush1.msra.mxu0 %v523
    %771 = vmatprep.subr.mxu0 0.0
    %772 = vmatpush1.msra.mxu0 %v524
    %773 = vmatprep.subr.mxu0 0.0
    %774 = vmatpush1.msra.mxu0 %v525
    %775 = vmatprep.subr.mxu0 0.0
    %776 = vmatpush1.msra.mxu0 %v526
    %777 = vmatprep.subr.mxu0 0.0
    %778 = vmatpush1.msra.mxu0 %v527
    %779 = vmatprep.subr.mxu0 0.0
    %780 = vmatpush1.msra.mxu0 %v528
    %781 = vmatprep.subr.mxu0 0.0
    %782 = vmatpush1.msra.mxu0 %v529
    %783 = vmatprep.subr.mxu0 0.0
    %784 = vmatpush1.msra.mxu0 0.0
    %785 = vmatprep.subr.mxu0 0.0
    %786 = vmatpush1.msra.mxu0 0.0
    %787 = vmatprep.subr.mxu0 0.0
    %788 = vmatpush1.msra.mxu0 0.0
    %789 = vmatprep.subr.mxu0 0.0
    %790 = vmatpush1.msra.mxu0 0.0
    %791 = vmatprep.subr.mxu0 0.0
    %792 = vmatpush1.msra.mxu0 0.0
    %793 = vmatprep.subr.mxu0 0.0
    %794 = vmatpush1.msra.mxu0 0.0
    %795 = vmatprep.subr.mxu0 0.0
    %796 = vmatpush1.msra.mxu0 0.0
    %797 = vmatprep.subr.mxu0 0.0
    %798 = vmatpush1.msra.mxu0 0.0
    %799 = vmatprep.subr.mxu0 0.0
    %800 = vmatpush1.msra.mxu0 0.0
    %801 = vmatprep.subr.mxu0 0.0
    %802 = vmatpush1.msra.mxu0 0.0
    %803 = vmatprep.subr.mxu0 0.0
    %804 = vmatpush1.msra.mxu0 0.0
    %805 = vmatprep.subr.mxu0 0.0
    %806 = vmatpush1.msra.mxu0 0.0
    %807 = vmatprep.subr.mxu0 0.0
    %808 = vmatpush1.msra.mxu0 0.0
    %809 = vmatprep.subr.mxu0 0.0
    %810 = vmatpush1.msra.mxu0 0.0
    %811 = vmatprep.subr.mxu0 0.0
    %812 = vmatpush1.msra.mxu0 0.0
    %813 = vmatprep.subr.mxu0 0.0
    %814 = vmatpush1.msra.mxu0 0.0
    %815 = vmatprep.subr.mxu0 0.0
    %816 = vmatpush1.msra.mxu0 0.0
    %817 = vmatprep.subr.mxu0 0.0
    %818 = vmatpush1.msra.mxu0 0.0
    %819 = vmatprep.subr.mxu0 0.0
    %820 = vmatpush1.msra.mxu0 0.0
    %821 = vmatprep.subr.mxu0 0.0
    %822 = vmatpush1.msra.mxu0 0.0
    %823 = vmatprep.subr.mxu0 0.0
    %824 = vmatpush1.msra.mxu0 0.0
    %825 = vmatprep.subr.mxu0 0.0
    %826 = vmatpush1.msra.mxu0 0.0
    %827 = vmatprep.subr.mxu0 0.0
    %828 = vmatpush1.msra.mxu0 0.0
    %829 = vmatprep.subr.mxu0 0.0
    %830 = vmatpush1.msra.mxu0 0.0
    %831 = vmatprep.mubr.f32.mxu0 0.0
    %832 = vmatmul.mubr.f32.gmra.mrb[0].mxu0 %v765
    %v833 = vpop.f32.mrb[0].mxu0
    %v834 = vadd.f32 %v499, %v833
    %v835 = vpop.f32.mrb[0].mxu0
    %836 = vdwg.mxu0
    %v837 = vtanh.pop %v834
    %839 = vrot.lane.b32.xlu0 %v837, 96
    %v840 = vpop.permute.xlu0 %839
    %842 = vst.msk [vmem:[#allocation2 + $0x10] sm:$0xff] %vm685, %v840
    %v843 = vsel %vm392, %v837, 0
    %845 = vmatprep.subr.mxu0 0.0
    %846 = vmatpush1.msra.mxu0 %v522
    %847 = vmatprep.subr.mxu0 0.0
    %848 = vmatpush1.msra.mxu0 %v523
    %849 = vmatprep.subr.mxu0 0.0
    %850 = vmatpush1.msra.mxu0 %v524
    %851 = vmatprep.subr.mxu0 0.0
    %852 = vmatpush1.msra.mxu0 %v525
    %853 = vmatprep.subr.mxu0 0.0
    %854 = vmatpush1.msra.mxu0 %v526
    %855 = vmatprep.subr.mxu0 0.0
    %856 = vmatpush1.msra.mxu0 %v527
    %857 = vmatprep.subr.mxu0 0.0
    %858 = vmatpush1.msra.mxu0 %v528
    %859 = vmatprep.subr.mxu0 0.0
    %860 = vmatpush1.msra.mxu0 %v529
    %861 = vmatprep.subr.mxu0 0.0
    %862 = vmatpush1.msra.mxu0 0.0
    %863 = vmatprep.subr.mxu0 0.0
    %864 = vmatpush1.msra.mxu0 0.0
    %865 = vmatprep.subr.mxu0 0.0
    %866 = vmatpush1.msra.mxu0 0.0
    %867 = vmatprep.subr.mxu0 0.0
    %868 = vmatpush1.msra.mxu0 0.0
    %869 = vmatprep.subr.mxu0 0.0
    %870 = vmatpush1.msra.mxu0 0.0
    %871 = vmatprep.subr.mxu0 0.0
    %872 = vmatpush1.msra.mxu0 0.0
    %873 = vmatprep.subr.mxu0 0.0
    %874 = vmatpush1.msra.mxu0 0.0
    %875 = vmatprep.subr.mxu0 0.0
    %876 = vmatpush1.msra.mxu0 0.0
    %877 = vmatprep.subr.mxu0 0.0
    %878 = vmatpush1.msra.mxu0 0.0
    %879 = vmatprep.subr.mxu0 0.0
    %880 = vmatpush1.msra.mxu0 0.0
    %881 = vmatprep.subr.mxu0 0.0
    %882 = vmatpush1.msra.mxu0 0.0
    %883 = vmatprep.subr.mxu0 0.0
    %884 = vmatpush1.msra.mxu0 0.0
    %885 = vmatprep.subr.mxu0 0.0
    %886 = vmatpush1.msra.mxu0 0.0
    %887 = vmatprep.subr.mxu0 0.0
    %888 = vmatpush1.msra.mxu0 0.0
    %889 = vmatprep.subr.mxu0 0.0
    %890 = vmatpush1.msra.mxu0 0.0
    %891 = vmatprep.subr.mxu0 0.0
    %892 = vmatpush1.msra.mxu0 0.0
    %893 = vmatprep.subr.mxu0 0.0
    %894 = vmatpush1.msra.mxu0 0.0
    %895 = vmatprep.subr.mxu0 0.0
    %896 = vmatpush1.msra.mxu0 0.0
    %897 = vmatprep.subr.mxu0 0.0
    %898 = vmatpush1.msra.mxu0 0.0
    %899 = vmatprep.subr.mxu0 0.0
    %900 = vmatpush1.msra.mxu0 0.0
    %901 = vmatprep.subr.mxu0 0.0
    %902 = vmatpush1.msra.mxu0 0.0
    %903 = vmatprep.subr.mxu0 0.0
    %904 = vmatpush1.msra.mxu0 0.0
    %905 = vmatprep.subr.mxu0 0.0
    %906 = vmatpush1.msra.mxu0 0.0
    %907 = vmatprep.subr.mxu0 0.0
    %908 = vmatpush1.msra.mxu0 0.0
    %909 = vmatprep.mubr.f32.mxu0 0.0
    %910 = vmatmul.mubr.f32.gmra.mrb[0].mxu0 %v843
    %v911 = vpop.f32.mrb[0].mxu0
    %v912 = vadd.f32 %v504, %v911
    %v913 = vpop.f32.mrb[0].mxu0
    %914 = vdwg.mxu0
    %v915 = vtanh.pop %v912
    %917 = vrot.lane.b32.xlu0 %v915, 96
    %v918 = vpop.permute.xlu0 %917
    %920 = vst.msk [vmem:[#allocation2 + $0x18] sm:$0xff] %vm685, %v918
    %v921 = vsel %vm392, %v915, 0
    %923 = vmatprep.subr.mxu0 0.0
    %924 = vmatpush1.msra.mxu0 %v522
    %925 = vmatprep.subr.mxu0 0.0
    %926 = vmatpush1.msra.mxu0 %v523
    %927 = vmatprep.subr.mxu0 0.0
    %928 = vmatpush1.msra.mxu0 %v524
    %929 = vmatprep.subr.mxu0 0.0
    %930 = vmatpush1.msra.mxu0 %v525
    %931 = vmatprep.subr.mxu0 0.0
    %932 = vmatpush1.msra.mxu0 %v526
    %933 = vmatprep.subr.mxu0 0.0
    %934 = vmatpush1.msra.mxu0 %v527
    %935 = vmatprep.subr.mxu0 0.0
    %936 = vmatpush1.msra.mxu0 %v528
    %937 = vmatprep.subr.mxu0 0.0
    %938 = vmatpush1.msra.mxu0 %v529
    %939 = vmatprep.subr.mxu0 0.0
    %940 = vmatpush1.msra.mxu0 0.0
    %941 = vmatprep.subr.mxu0 0.0
    %942 = vmatpush1.msra.mxu0 0.0
    %943 = vmatprep.subr.mxu0 0.0
    %944 = vmatpush1.msra.mxu0 0.0
    %945 = vmatprep.subr.mxu0 0.0
    %946 = vmatpush1.msra.mxu0 0.0
    %947 = vmatprep.subr.mxu0 0.0
    %948 = vmatpush1.msra.mxu0 0.0
    %949 = vmatprep.subr.mxu0 0.0
    %950 = vmatpush1.msra.mxu0 0.0
    %951 = vmatprep.subr.mxu0 0.0
    %952 = vmatpush1.msra.mxu0 0.0
    %953 = vmatprep.subr.mxu0 0.0
    %954 = vmatpush1.msra.mxu0 0.0
    %955 = vmatprep.subr.mxu0 0.0
    %956 = vmatpush1.msra.mxu0 0.0
    %957 = vmatprep.subr.mxu0 0.0
    %958 = vmatpush1.msra.mxu0 0.0
    %959 = vmatprep.subr.mxu0 0.0
    %960 = vmatpush1.msra.mxu0 0.0
    %961 = vmatprep.subr.mxu0 0.0
    %962 = vmatpush1.msra.mxu0 0.0
    %963 = vmatprep.subr.mxu0 0.0
    %964 = vmatpush1.msra.mxu0 0.0
    %965 = vmatprep.subr.mxu0 0.0
    %966 = vmatpush1.msra.mxu0 0.0
    %967 = vmatprep.subr.mxu0 0.0
    %968 = vmatpush1.msra.mxu0 0.0
    %969 = vmatprep.subr.mxu0 0.0
    %970 = vmatpush1.msra.mxu0 0.0
    %971 = vmatprep.subr.mxu0 0.0
    %972 = vmatpush1.msra.mxu0 0.0
    %973 = vmatprep.subr.mxu0 0.0
    %974 = vmatpush1.msra.mxu0 0.0
    %975 = vmatprep.subr.mxu0 0.0
    %976 = vmatpush1.msra.mxu0 0.0
    %977 = vmatprep.subr.mxu0 0.0
    %978 = vmatpush1.msra.mxu0 0.0
    %979 = vmatprep.subr.mxu0 0.0
    %980 = vmatpush1.msra.mxu0 0.0
    %981 = vmatprep.subr.mxu0 0.0
    %982 = vmatpush1.msra.mxu0 0.0
    %983 = vmatprep.subr.mxu0 0.0
    %984 = vmatpush1.msra.mxu0 0.0
    %985 = vmatprep.subr.mxu0 0.0
    %986 = vmatpush1.msra.mxu0 0.0
    %987 = vmatprep.mubr.f32.mxu0 0.0
    %988 = vmatmul.mubr.f32.gmra.mrb[0].mxu0 %v921
    %v989 = vpop.f32.mrb[0].mxu0
    %v990 = vadd.f32 %v509, %v989
    %v991 = vpop.f32.mrb[0].mxu0
    %992 = vdwg.mxu0
    %v993 = vtanh.pop %v990
    %995 = vrot.lane.b32.xlu0 %v993, 96
    %v996 = vpop.permute.xlu0 %995
    %998 = vst.msk [vmem:[#allocation2 + $0x20] sm:$0xff] %vm685, %v996
    %v999 = vsel %vm392, %v993, 0
    %1001 = vmatprep.subr.mxu0 0.0
    %1002 = vmatpush1.msra.mxu0 %v522
    %1003 = vmatprep.subr.mxu0 0.0
    %1004 = vmatpush1.msra.mxu0 %v523
    %1005 = vmatprep.subr.mxu0 0.0
    %1006 = vmatpush1.msra.mxu0 %v524
    %1007 = vmatprep.subr.mxu0 0.0
    %1008 = vmatpush1.msra.mxu0 %v525
    %1009 = vmatprep.subr.mxu0 0.0
    %1010 = vmatpush1.msra.mxu0 %v526
    %1011 = vmatprep.subr.mxu0 0.0
    %1012 = vmatpush1.msra.mxu0 %v527
    %1013 = vmatprep.subr.mxu0 0.0
    %1014 = vmatpush1.msra.mxu0 %v528
    %1015 = vmatprep.subr.mxu0 0.0
    %1016 = vmatpush1.msra.mxu0 %v529
    %1017 = vmatprep.subr.mxu0 0.0
    %1018 = vmatpush1.msra.mxu0 0.0
    %1019 = vmatprep.subr.mxu0 0.0
    %1020 = vmatpush1.msra.mxu0 0.0
    %1021 = vmatprep.subr.mxu0 0.0
    %1022 = vmatpush1.msra.mxu0 0.0
    %1023 = vmatprep.subr.mxu0 0.0
    %1024 = vmatpush1.msra.mxu0 0.0
    %1025 = vmatprep.subr.mxu0 0.0
    %1026 = vmatpush1.msra.mxu0 0.0
    %1027 = vmatprep.subr.mxu0 0.0
    %1028 = vmatpush1.msra.mxu0 0.0
    %1029 = vmatprep.subr.mxu0 0.0
    %1030 = vmatpush1.msra.mxu0 0.0
    %1031 = vmatprep.subr.mxu0 0.0
    %1032 = vmatpush1.msra.mxu0 0.0
    %1033 = vmatprep.subr.mxu0 0.0
    %1034 = vmatpush1.msra.mxu0 0.0
    %1035 = vmatprep.subr.mxu0 0.0
    %1036 = vmatpush1.msra.mxu0 0.0
    %1037 = vmatprep.subr.mxu0 0.0
    %1038 = vmatpush1.msra.mxu0 0.0
    %1039 = vmatprep.subr.mxu0 0.0
    %1040 = vmatpush1.msra.mxu0 0.0
    %1041 = vmatprep.subr.mxu0 0.0
    %1042 = vmatpush1.msra.mxu0 0.0
    %1043 = vmatprep.subr.mxu0 0.0
    %1044 = vmatpush1.msra.mxu0 0.0
    %1045 = vmatprep.subr.mxu0 0.0
    %1046 = vmatpush1.msra.mxu0 0.0
    %1047 = vmatprep.subr.mxu0 0.0
    %1048 = vmatpush1.msra.mxu0 0.0
    %1049 = vmatprep.subr.mxu0 0.0
    %1050 = vmatpush1.msra.mxu0 0.0
    %1051 = vmatprep.subr.mxu0 0.0
    %1052 = vmatpush1.msra.mxu0 0.0
    %1053 = vmatprep.subr.mxu0 0.0
    %1054 = vmatpush1.msra.mxu0 0.0
    %1055 = vmatprep.subr.mxu0 0.0
    %1056 = vmatpush1.msra.mxu0 0.0
    %1057 = vmatprep.subr.mxu0 0.0
    %1058 = vmatpush1.msra.mxu0 0.0
    %1059 = vmatprep.subr.mxu0 0.0
    %1060 = vmatpush1.msra.mxu0 0.0
    %1061 = vmatprep.subr.mxu0 0.0
    %1062 = vmatpush1.msra.mxu0 0.0
    %1063 = vmatprep.subr.mxu0 0.0
    %1064 = vmatpush1.msra.mxu0 0.0
    %1065 = vmatprep.mubr.f32.mxu0 0.0
    %1066 = vmatmul.mubr.f32.gmra.mrb[0].mxu0 %v999
    %v1067 = vpop.f32.mrb[0].mxu0
    %v1068 = vadd.f32 %v514, %v1067
    %v1069 = vpop.f32.mrb[0].mxu0
    %1070 = vdwg.mxu0
    %v1071 = vtanh.pop %v1068
    %1073 = vrot.lane.b32.xlu0 %v1071, 96
    %v1074 = vpop.permute.xlu0 %1073
    %1076 = vst.msk [vmem:[#allocation2 + $0x28] sm:$0xff] %vm685, %v1074
    %v1077 = vsel %vm392, %v1071, 0
    %1079 = vmatprep.subr.mxu0 0.0
    %1080 = vmatpush1.msra.mxu0 %v522
    %1081 = vmatprep.subr.mxu0 0.0
    %1082 = vmatpush1.msra.mxu0 %v523
    %1083 = vmatprep.subr.mxu0 0.0
    %1084 = vmatpush1.msra.mxu0 %v524
    %1085 = vmatprep.subr.mxu0 0.0
    %1086 = vmatpush1.msra.mxu0 %v525
    %1087 = vmatprep.subr.mxu0 0.0
    %1088 = vmatpush1.msra.mxu0 %v526
    %1089 = vmatprep.subr.mxu0 0.0
    %1090 = vmatpush1.msra.mxu0 %v527
    %1091 = vmatprep.subr.mxu0 0.0
    %1092 = vmatpush1.msra.mxu0 %v528
    %1093 = vmatprep.subr.mxu0 0.0
    %1094 = vmatpush1.msra.mxu0 %v529
    %1095 = vmatprep.subr.mxu0 0.0
    %1096 = vmatpush1.msra.mxu0 0.0
    %1097 = vmatprep.subr.mxu0 0.0
    %1098 = vmatpush1.msra.mxu0 0.0
    %1099 = vmatprep.subr.mxu0 0.0
    %1100 = vmatpush1.msra.mxu0 0.0
    %1101 = vmatprep.subr.mxu0 0.0
    %1102 = vmatpush1.msra.mxu0 0.0
    %1103 = vmatprep.subr.mxu0 0.0
    %1104 = vmatpush1.msra.mxu0 0.0
    %1105 = vmatprep.subr.mxu0 0.0
    %1106 = vmatpush1.msra.mxu0 0.0
    %1107 = vmatprep.subr.mxu0 0.0
    %1108 = vmatpush1.msra.mxu0 0.0
    %1109 = vmatprep.subr.mxu0 0.0
    %1110 = vmatpush1.msra.mxu0 0.0
    %1111 = vmatprep.subr.mxu0 0.0
    %1112 = vmatpush1.msra.mxu0 0.0
    %1113 = vmatprep.subr.mxu0 0.0
    %1114 = vmatpush1.msra.mxu0 0.0
    %1115 = vmatprep.subr.mxu0 0.0
    %1116 = vmatpush1.msra.mxu0 0.0
    %1117 = vmatprep.subr.mxu0 0.0
    %1118 = vmatpush1.msra.mxu0 0.0
    %1119 = vmatprep.subr.mxu0 0.0
    %1120 = vmatpush1.msra.mxu0 0.0
    %1121 = vmatprep.subr.mxu0 0.0
    %1122 = vmatpush1.msra.mxu0 0.0
    %1123 = vmatprep.subr.mxu0 0.0
    %1124 = vmatpush1.msra.mxu0 0.0
    %1125 = vmatprep.subr.mxu0 0.0
    %1126 = vmatpush1.msra.mxu0 0.0
    %1127 = vmatprep.subr.mxu0 0.0
    %1128 = vmatpush1.msra.mxu0 0.0
    %1129 = vmatprep.subr.mxu0 0.0
    %1130 = vmatpush1.msra.mxu0 0.0
    %1131 = vmatprep.subr.mxu0 0.0
    %1132 = vmatpush1.msra.mxu0 0.0
    %1133 = vmatprep.subr.mxu0 0.0
    %1134 = vmatpush1.msra.mxu0 0.0
    %1135 = vmatprep.subr.mxu0 0.0
    %1136 = vmatpush1.msra.mxu0 0.0
    %1137 = vmatprep.subr.mxu0 0.0
    %1138 = vmatpush1.msra.mxu0 0.0
    %1139 = vmatprep.subr.mxu0 0.0
    %1140 = vmatpush1.msra.mxu0 0.0
    %1141 = vmatprep.subr.mxu0 0.0
    %1142 = vmatpush1.msra.mxu0 0.0
    %1143 = vmatprep.mubr.f32.mxu0 0.0
    %1144 = vmatmul.mubr.f32.gmra.mrb[0].mxu0 %v1077
    %v1145 = vpop.f32.mrb[0].mxu0
    %v1146 = vadd.f32 %v519, %v1145
    %v1147 = vpop.f32.mrb[0].mxu0
    %1148 = vdwg.mxu0
    %v1149 = vtanh.pop %v1146
    %1151 = vrot.lane.b32.xlu0 %v1149, 96
    %v1152 = vpop.permute.xlu0 %1151
    %1154 = vst.msk [vmem:[#allocation2 + $0x30] sm:$0xff] %vm685, %v1152
    %v1155 = vsel %vm392, %v1149, 0
    %1157 = vmatprep.subr.mxu0 0.0
    %1158 = vmatpush1.msra.mxu0 %v522
    %1159 = vmatprep.subr.mxu0 0.0
    %1160 = vmatpush1.msra.mxu0 %v523
    %1161 = vmatprep.subr.mxu0 0.0
    %1162 = vmatpush1.msra.mxu0 %v524
    %1163 = vmatprep.subr.mxu0 0.0
    %1164 = vmatpush1.msra.mxu0 %v525
    %1165 = vmatprep.subr.mxu0 0.0
    %1166 = vmatpush1.msra.mxu0 %v526
    %1167 = vmatprep.subr.mxu0 0.0
    %1168 = vmatpush1.msra.mxu0 %v527
    %1169 = vmatprep.subr.mxu0 0.0
    %1170 = vmatpush1.msra.mxu0 %v528
    %1171 = vmatprep.subr.mxu0 0.0
    %1172 = vmatpush1.msra.mxu0 %v529
    %1173 = vmatprep.subr.mxu0 0.0
    %1174 = vmatpush1.msra.mxu0 0.0
    %1175 = vmatprep.subr.mxu0 0.0
    %1176 = vmatpush1.msra.mxu0 0.0
    %1177 = vmatprep.subr.mxu0 0.0
    %1178 = vmatpush1.msra.mxu0 0.0
    %1179 = vmatprep.subr.mxu0 0.0
    %1180 = vmatpush1.msra.mxu0 0.0
    %1181 = vmatprep.subr.mxu0 0.0
    %1182 = vmatpush1.msra.mxu0 0.0
    %1183 = vmatprep.subr.mxu0 0.0
    %1184 = vmatpush1.msra.mxu0 0.0
    %1185 = vmatprep.subr.mxu0 0.0
    %1186 = vmatpush1.msra.mxu0 0.0
    %1187 = vmatprep.subr.mxu0 0.0
    %1188 = vmatpush1.msra.mxu0 0.0
    %1189 = vmatprep.subr.mxu0 0.0
    %1190 = vmatpush1.msra.mxu0 0.0
    %1191 = vmatprep.subr.mxu0 0.0
    %1192 = vmatpush1.msra.mxu0 0.0
    %1193 = vmatprep.subr.mxu0 0.0
    %1194 = vmatpush1.msra.mxu0 0.0
    %1195 = vmatprep.subr.mxu0 0.0
    %1196 = vmatpush1.msra.mxu0 0.0
    %1197 = vmatprep.subr.mxu0 0.0
    %1198 = vmatpush1.msra.mxu0 0.0
    %1199 = vmatprep.subr.mxu0 0.0
    %1200 = vmatpush1.msra.mxu0 0.0
    %1201 = vmatprep.subr.mxu0 0.0
    %1202 = vmatpush1.msra.mxu0 0.0
    %1203 = vmatprep.subr.mxu0 0.0
    %1204 = vmatpush1.msra.mxu0 0.0
    %1205 = vmatprep.subr.mxu0 0.0
    %1206 = vmatpush1.msra.mxu0 0.0
    %1207 = vmatprep.subr.mxu0 0.0
    %1208 = vmatpush1.msra.mxu0 0.0
    %1209 = vmatprep.subr.mxu0 0.0
    %1210 = vmatpush1.msra.mxu0 0.0
    %1211 = vmatprep.subr.mxu0 0.0
    %1212 = vmatpush1.msra.mxu0 0.0
    %1213 = vmatprep.subr.mxu0 0.0
    %1214 = vmatpush1.msra.mxu0 0.0
    %1215 = vmatprep.subr.mxu0 0.0
    %1216 = vmatpush1.msra.mxu0 0.0
    %1217 = vmatprep.subr.mxu0 0.0
    %1218 = vmatpush1.msra.mxu0 0.0
    %1219 = vmatprep.subr.mxu0 0.0
    %1220 = vmatpush1.msra.mxu0 0.0
    %1221 = vmatprep.mubr.f32.mxu0 0.0
    %1222 = vmatmul.mubr.f32.gmra.mrb[0].mxu0 %v1155
    %v1223 = vpop.f32.mrb[0].mxu0
    %v1224 = vadd.f32 0.0, %v1223
    %v1225 = vpop.f32.mrb[0].mxu0
    %1226 = vdwg.mxu0
    %v1227 = vtanh.pop %v1224
    %1229 = vrot.lane.b32.xlu0 %v1227, 96
    %v1230 = vpop.permute.xlu0 %1229
    %1232 = vst.msk [vmem:[#allocation2 + $0x38] sm:$0xff] %vm685, %v1230
    %1233 = vst.msk [vmem:[#allocation5] sm:$0xff] %vm685, %v1149
    %s1234 = scalar_lea.vmem [#allocation5], 8
    %1235 = vst.msk [vmem:[%s1234] sm:$0xff] %vm685, %v1230
    %s1236 = smul.u32 8, 8
    %s1237 = smul.u32 %s1236, 4
    %s1238 = smul.u32 %s1237, 4
    %s1239 = sshll.u32 %s1238, 4
    %1240 = dma.done [#allocation4], %s1239
    %v1241 = vld [vmem:[#allocation2] ss:$8 sm:$0xf]
    %v1242 = vld [vmem:[#allocation2] ss:$8 sm:$0xf0]
    %v1243 = vor.u32 %v1241, %v1242
    %v1244 = vld [vmem:[#allocation3] sm:$0xff]
    %v1245 = vld [vmem:[#allocation3 + $0x8] sm:$0xff]
    %v1246 = vld [vmem:[#allocation3 + $0x10] sm:$0xff]
    %v1247 = vld [vmem:[#allocation3 + $0x18] sm:$0xff]
    %v1248 = vld [vmem:[#allocation3 + $0x20] sm:$0xff]
    %v1249 = vld [vmem:[#allocation3 + $0x28] sm:$0xff]
    %v1250 = vld [vmem:[#allocation3 + $0x30] sm:$0xff]
    %v1251 = vld [vmem:[#allocation3 + $0x38] sm:$0xff]
    %v1252 = vld [vmem:[#allocation3 + $0x40] sm:$0xff]
    %v1253 = vld [vmem:[#allocation3 + $0x48] sm:$0xff]
    %v1254 = vld [vmem:[#allocation3 + $0x50] sm:$0xff]
    %v1255 = vld [vmem:[#allocation3 + $0x58] sm:$0xff]
    %v1256 = vld [vmem:[#allocation3 + $0x60] sm:$0xff]
    %v1257 = vld [vmem:[#allocation3 + $0x68] sm:$0xff]
    %v1258 = vld [vmem:[#allocation3 + $0x70] sm:$0xff]
    %v1259 = vld [vmem:[#allocation3 + $0x78] sm:$0xff]
    %s1260 = scalar_lea.vmem [#allocation2], 1
    %v1261 = vld [vmem:[%s1260] ss:$8 sm:$0xf]
    %v1262 = vld [vmem:[%s1260] ss:$8 sm:$0xf0]
    %v1263 = vor.u32 %v1261, %v1262
    %s1264 = scalar_lea.vmem [#allocation3], 128
    %v1265 = vld [vmem:[%s1264] sm:$0xff]
    %v1266 = vld [vmem:[%s1264 + $0x8] sm:$0xff]
    %v1267 = vld [vmem:[%s1264 + $0x10] sm:$0xff]
    %v1268 = vld [vmem:[%s1264 + $0x18] sm:$0xff]
    %v1269 = vld [vmem:[%s1264 + $0x20] sm:$0xff]
    %v1270 = vld [vmem:[%s1264 + $0x28] sm:$0xff]
    %v1271 = vld [vmem:[%s1264 + $0x30] sm:$0xff]
    %v1272 = vld [vmem:[%s1264 + $0x38] sm:$0xff]
    %v1273 = vld [vmem:[%s1264 + $0x40] sm:$0xff]
    %v1274 = vld [vmem:[%s1264 + $0x48] sm:$0xff]
    %v1275 = vld [vmem:[%s1264 + $0x50] sm:$0xff]
    %v1276 = vld [vmem:[%s1264 + $0x58] sm:$0xff]
    %v1277 = vld [vmem:[%s1264 + $0x60] sm:$0xff]
    %v1278 = vld [vmem:[%s1264 + $0x68] sm:$0xff]
    %v1279 = vld [vmem:[%s1264 + $0x70] sm:$0xff]
    %v1280 = vld [vmem:[%s1264 + $0x78] sm:$0xff]
    %v1282 = vsel %vm685, %v1263, 0
    %1284 = vmatprep.subr.mxu0 %v1266
    %1285 = vmatpush1.msra.mxu0 %v1265
    %1286 = vmatprep.subr.mxu0 %v1270
    %1287 = vmatpush1.msra.mxu0 %v1269
    %1288 = vmatprep.subr.mxu0 %v1274
    %1289 = vmatpush1.msra.mxu0 %v1273
    %1290 = vmatprep.subr.mxu0 %v1278
    %1291 = vmatpush1.msra.mxu0 %v1277
    %1292 = vmatprep.subr.mxu0 0.0
    %1293 = vmatpush1.msra.mxu0 0.0
    %1294 = vmatprep.subr.mxu0 0.0
    %1295 = vmatpush1.msra.mxu0 0.0
    %1296 = vmatprep.subr.mxu0 0.0
    %1297 = vmatpush1.msra.mxu0 0.0
    %1298 = vmatprep.subr.mxu0 0.0
    %1299 = vmatpush1.msra.mxu0 0.0
    %1300 = vmatprep.subr.mxu0 0.0
    %1301 = vmatpush1.msra.mxu0 0.0
    %1302 = vmatprep.subr.mxu0 0.0
    %1303 = vmatpush1.msra.mxu0 0.0
    %1304 = vmatprep.subr.mxu0 0.0
    %1305 = vmatpush1.msra.mxu0 0.0
    %1306 = vmatprep.subr.mxu0 0.0
    %1307 = vmatpush1.msra.mxu0 0.0
    %1308 = vmatprep.subr.mxu0 0.0
    %1309 = vmatpush1.msra.mxu0 0.0
    %1310 = vmatprep.subr.mxu0 0.0
    %1311 = vmatpush1.msra.mxu0 0.0
    %1312 = vmatprep.subr.mxu0 0.0
    %1313 = vmatpush1.msra.mxu0 0.0
    %1314 = vmatprep.subr.mxu0 0.0
    %1315 = vmatpush1.msra.mxu0 0.0
    %1316 = vmatprep.subr.mxu0 0.0
    %1317 = vmatpush1.msra.mxu0 0.0
    %1318 = vmatprep.subr.mxu0 0.0
    %1319 = vmatpush1.msra.mxu0 0.0
    %1320 = vmatprep.subr.mxu0 0.0
    %1321 = vmatpush1.msra.mxu0 0.0
    %1322 = vmatprep.subr.mxu0 0.0
    %1323 = vmatpush1.msra.mxu0 0.0
    %1324 = vmatprep.subr.mxu0 0.0
    %1325 = vmatpush1.msra.mxu0 0.0
    %1326 = vmatprep.subr.mxu0 0.0
    %1327 = vmatpush1.msra.mxu0 0.0
    %1328 = vmatprep.subr.mxu0 0.0
    %1329 = vmatpush1.msra.mxu0 0.0
    %1330 = vmatprep.subr.mxu0 0.0
    %1331 = vmatpush1.msra.mxu0 0.0
    %1332 = vmatprep.subr.mxu0 0.0
    %1333 = vmatpush1.msra.mxu0 0.0
    %1334 = vmatprep.subr.mxu0 0.0
    %1335 = vmatpush1.msra.mxu0 0.0
    %1336 = vmatprep.subr.mxu0 0.0
    %1337 = vmatpush1.msra.mxu0 0.0
    %1338 = vmatprep.subr.mxu0 0.0
    %1339 = vmatpush1.msra.mxu0 0.0
    %1340 = vmatprep.subr.mxu0 0.0
    %1341 = vmatpush1.msra.mxu0 0.0
    %1342 = vmatprep.subr.mxu0 0.0
    %1343 = vmatpush1.msra.mxu0 0.0
    %1344 = vmatprep.subr.mxu0 0.0
    %1345 = vmatpush1.msra.mxu0 0.0
    %1346 = vmatprep.subr.mxu0 0.0
    %1347 = vmatpush1.msra.mxu0 0.0
    %1348 = vmatprep.mubr.f32.mxu0 0.0
    %1349 = vmatmul.mubr.f32.gmra.mrb[0].mxu0 %v1282
    %v1350 = vpop.f32.mrb[0].mxu0
    %v1351 = vadd.f32 0.0, %v1350
    %v1352 = vpop.f32.mrb[0].mxu0
    %v1353 = vadd.f32 0.0, %v1352
    %1354 = vdwg.mxu0
    %1355 = vmatprep.subr.mxu0 %v1268
    %1356 = vmatpush1.msra.mxu0 %v1267
    %1357 = vmatprep.subr.mxu0 %v1272
    %1358 = vmatpush1.msra.mxu0 %v1271
    %1359 = vmatprep.subr.mxu0 %v1276
    %1360 = vmatpush1.msra.mxu0 %v1275
    %1361 = vmatprep.subr.mxu0 %v1280
    %1362 = vmatpush1.msra.mxu0 %v1279
    %1363 = vmatprep.subr.mxu0 0.0
    %1364 = vmatpush1.msra.mxu0 0.0
    %1365 = vmatprep.subr.mxu0 0.0
    %1366 = vmatpush1.msra.mxu0 0.0
    %1367 = vmatprep.subr.mxu0 0.0
    %1368 = vmatpush1.msra.mxu0 0.0
    %1369 = vmatprep.subr.mxu0 0.0
    %1370 = vmatpush1.msra.mxu0 0.0
    %1371 = vmatprep.subr.mxu0 0.0
    %1372 = vmatpush1.msra.mxu0 0.0
    %1373 = vmatprep.subr.mxu0 0.0
    %1374 = vmatpush1.msra.mxu0 0.0
    %1375 = vmatprep.subr.mxu0 0.0
    %1376 = vmatpush1.msra.mxu0 0.0
    %1377 = vmatprep.subr.mxu0 0.0
    %1378 = vmatpush1.msra.mxu0 0.0
    %1379 = vmatprep.subr.mxu0 0.0
    %1380 = vmatpush1.msra.mxu0 0.0
    %1381 = vmatprep.subr.mxu0 0.0
    %1382 = vmatpush1.msra.mxu0 0.0
    %1383 = vmatprep.subr.mxu0 0.0
    %1384 = vmatpush1.msra.mxu0 0.0
    %1385 = vmatprep.subr.mxu0 0.0
    %1386 = vmatpush1.msra.mxu0 0.0
    %1387 = vmatprep.subr.mxu0 0.0
    %1388 = vmatpush1.msra.mxu0 0.0
    %1389 = vmatprep.subr.mxu0 0.0
    %1390 = vmatpush1.msra.mxu0 0.0
    %1391 = vmatprep.subr.mxu0 0.0
    %1392 = vmatpush1.msra.mxu0 0.0
    %1393 = vmatprep.subr.mxu0 0.0
    %1394 = vmatpush1.msra.mxu0 0.0
    %1395 = vmatprep.subr.mxu0 0.0
    %1396 = vmatpush1.msra.mxu0 0.0
    %1397 = vmatprep.subr.mxu0 0.0
    %1398 = vmatpush1.msra.mxu0 0.0
    %1399 = vmatprep.subr.mxu0 0.0
    %1400 = vmatpush1.msra.mxu0 0.0
    %1401 = vmatprep.subr.mxu0 0.0
    %1402 = vmatpush1.msra.mxu0 0.0
    %1403 = vmatprep.subr.mxu0 0.0
    %1404 = vmatpush1.msra.mxu0 0.0
    %1405 = vmatprep.subr.mxu0 0.0
    %1406 = vmatpush1.msra.mxu0 0.0
    %1407 = vmatprep.subr.mxu0 0.0
    %1408 = vmatpush1.msra.mxu0 0.0
    %1409 = vmatprep.subr.mxu0 0.0
    %1410 = vmatpush1.msra.mxu0 0.0
    %1411 = vmatprep.subr.mxu0 0.0
    %1412 = vmatpush1.msra.mxu0 0.0
    %1413 = vmatprep.subr.mxu0 0.0
    %1414 = vmatpush1.msra.mxu0 0.0
    %1415 = vmatprep.subr.mxu0 0.0
    %1416 = vmatpush1.msra.mxu0 0.0
    %1417 = vmatprep.subr.mxu0 0.0
    %1418 = vmatpush1.msra.mxu0 0.0
    %1419 = vmatprep.mubr.f32.mxu0 0.0
    %1420 = vmatmul.mubr.f32.gmra.mrb[0].mxu0 %v1282
    %v1421 = vpop.f32.mrb[0].mxu0
    %v1422 = vadd.f32 0.0, %v1421
    %v1423 = vpop.f32.mrb[0].mxu0
    %v1424 = vadd.f32 0.0, %v1423
    %1425 = vdwg.mxu0
    %s1426 = scalar_lea.vmem [#allocation2], 2
    %v1427 = vld [vmem:[%s1426] ss:$8 sm:$0xf]
    %v1428 = vld [vmem:[%s1426] ss:$8 sm:$0xf0]
    %v1429 = vor.u32 %v1427, %v1428
    %s1430 = scalar_lea.vmem [#allocation3], 256
    %v1431 = vld [vmem:[%s1430] sm:$0xff]
    %v1432 = vld [vmem:[%s1430 + $0x8] sm:$0xff]
    %v1433 = vld [vmem:[%s1430 + $0x10] sm:$0xff]
    %v1434 = vld [vmem:[%s1430 + $0x18] sm:$0xff]
    %v1435 = vld [vmem:[%s1430 + $0x20] sm:$0xff]
    %v1436 = vld [vmem:[%s1430 + $0x28] sm:$0xff]
    %v1437 = vld [vmem:[%s1430 + $0x30] sm:$0xff]
    %v1438 = vld [vmem:[%s1430 + $0x38] sm:$0xff]
    %v1439 = vld [vmem:[%s1430 + $0x40] sm:$0xff]
    %v1440 = vld [vmem:[%s1430 + $0x48] sm:$0xff]
    %v1441 = vld [vmem:[%s1430 + $0x50] sm:$0xff]
    %v1442 = vld [vmem:[%s1430 + $0x58] sm:$0xff]
    %v1443 = vld [vmem:[%s1430 + $0x60] sm:$0xff]
    %v1444 = vld [vmem:[%s1430 + $0x68] sm:$0xff]
    %v1445 = vld [vmem:[%s1430 + $0x70] sm:$0xff]
    %v1446 = vld [vmem:[%s1430 + $0x78] sm:$0xff]
    %s1447 = scalar_lea.vmem [#allocation2], 3
    %v1448 = vld [vmem:[%s1447] ss:$8 sm:$0xf]
    %v1449 = vld [vmem:[%s1447] ss:$8 sm:$0xf0]
    %v1450 = vor.u32 %v1448, %v1449
    %s1451 = scalar_lea.vmem [#allocation3], 384
    %v1452 = vld [vmem:[%s1451] sm:$0xff]
    %v1453 = vld [vmem:[%s1451 + $0x8] sm:$0xff]
    %v1454 = vld [vmem:[%s1451 + $0x10] sm:$0xff]
    %v1455 = vld [vmem:[%s1451 + $0x18] sm:$0xff]
    %v1456 = vld [vmem:[%s1451 + $0x20] sm:$0xff]
    %v1457 = vld [vmem:[%s1451 + $0x28] sm:$0xff]
    %v1458 = vld [vmem:[%s1451 + $0x30] sm:$0xff]
    %v1459 = vld [vmem:[%s1451 + $0x38] sm:$0xff]
    %v1460 = vld [vmem:[%s1451 + $0x40] sm:$0xff]
    %v1461 = vld [vmem:[%s1451 + $0x48] sm:$0xff]
    %v1462 = vld [vmem:[%s1451 + $0x50] sm:$0xff]
    %v1463 = vld [vmem:[%s1451 + $0x58] sm:$0xff]
    %v1464 = vld [vmem:[%s1451 + $0x60] sm:$0xff]
    %v1465 = vld [vmem:[%s1451 + $0x68] sm:$0xff]
    %v1466 = vld [vmem:[%s1451 + $0x70] sm:$0xff]
    %v1467 = vld [vmem:[%s1451 + $0x78] sm:$0xff]
    %v1469 = vsel %vm685, %v1450, 0
    %1471 = vmatprep.subr.mxu0 %v1453
    %1472 = vmatpush1.msra.mxu0 %v1452
    %1473 = vmatprep.subr.mxu0 %v1457
    %1474 = vmatpush1.msra.mxu0 %v1456
    %1475 = vmatprep.subr.mxu0 %v1461
    %1476 = vmatpush1.msra.mxu0 %v1460
    %1477 = vmatprep.subr.mxu0 %v1465
    %1478 = vmatpush1.msra.mxu0 %v1464
    %1479 = vmatprep.subr.mxu0 0.0
    %1480 = vmatpush1.msra.mxu0 0.0
    %1481 = vmatprep.subr.mxu0 0.0
    %1482 = vmatpush1.msra.mxu0 0.0
    %1483 = vmatprep.subr.mxu0 0.0
    %1484 = vmatpush1.msra.mxu0 0.0
    %1485 = vmatprep.subr.mxu0 0.0
    %1486 = vmatpush1.msra.mxu0 0.0
    %1487 = vmatprep.subr.mxu0 0.0
    %1488 = vmatpush1.msra.mxu0 0.0
    %1489 = vmatprep.subr.mxu0 0.0
    %1490 = vmatpush1.msra.mxu0 0.0
    %1491 = vmatprep.subr.mxu0 0.0
    %1492 = vmatpush1.msra.mxu0 0.0
    %1493 = vmatprep.subr.mxu0 0.0
    %1494 = vmatpush1.msra.mxu0 0.0
    %1495 = vmatprep.subr.mxu0 0.0
    %1496 = vmatpush1.msra.mxu0 0.0
    %1497 = vmatprep.subr.mxu0 0.0
    %1498 = vmatpush1.msra.mxu0 0.0
    %1499 = vmatprep.subr.mxu0 0.0
    %1500 = vmatpush1.msra.mxu0 0.0
    %1501 = vmatprep.subr.mxu0 0.0
    %1502 = vmatpush1.msra.mxu0 0.0
    %1503 = vmatprep.subr.mxu0 0.0
    %1504 = vmatpush1.msra.mxu0 0.0
    %1505 = vmatprep.subr.mxu0 0.0
    %1506 = vmatpush1.msra.mxu0 0.0
    %1507 = vmatprep.subr.mxu0 0.0
    %1508 = vmatpush1.msra.mxu0 0.0
    %1509 = vmatprep.subr.mxu0 0.0
    %1510 = vmatpush1.msra.mxu0 0.0
    %1511 = vmatprep.subr.mxu0 0.0
    %1512 = vmatpush1.msra.mxu0 0.0
    %1513 = vmatprep.subr.mxu0 0.0
    %1514 = vmatpush1.msra.mxu0 0.0
    %1515 = vmatprep.subr.mxu0 0.0
    %1516 = vmatpush1.msra.mxu0 0.0
    %1517 = vmatprep.subr.mxu0 0.0
    %1518 = vmatpush1.msra.mxu0 0.0
    %1519 = vmatprep.subr.mxu0 0.0
    %1520 = vmatpush1.msra.mxu0 0.0
    %1521 = vmatprep.subr.mxu0 0.0
    %1522 = vmatpush1.msra.mxu0 0.0
    %1523 = vmatprep.subr.mxu0 0.0
    %1524 = vmatpush1.msra.mxu0 0.0
    %1525 = vmatprep.subr.mxu0 0.0
    %1526 = vmatpush1.msra.mxu0 0.0
    %1527 = vmatprep.subr.mxu0 0.0
    %1528 = vmatpush1.msra.mxu0 0.0
    %1529 = vmatprep.subr.mxu0 0.0
    %1530 = vmatpush1.msra.mxu0 0.0
    %1531 = vmatprep.subr.mxu0 0.0
    %1532 = vmatpush1.msra.mxu0 0.0
    %1533 = vmatprep.subr.mxu0 0.0
    %1534 = vmatpush1.msra.mxu0 0.0
    %1535 = vmatprep.mubr.f32.mxu0 0.0
    %1536 = vmatmul.mubr.f32.gmra.mrb[0].mxu0 %v1469
    %v1537 = vpop.f32.mrb[0].mxu0
    %v1538 = vadd.f32 0.0, %v1537
    %v1539 = vpop.f32.mrb[0].mxu0
    %v1540 = vadd.f32 0.0, %v1539
    %1541 = vdwg.mxu0
    %1542 = vmatprep.subr.mxu0 %v1455
    %1543 = vmatpush1.msra.mxu0 %v1454
    %1544 = vmatprep.subr.mxu0 %v1459
    %1545 = vmatpush1.msra.mxu0 %v1458
    %1546 = vmatprep.subr.mxu0 %v1463
    %1547 = vmatpush1.msra.mxu0 %v1462
    %1548 = vmatprep.subr.mxu0 %v1467
    %1549 = vmatpush1.msra.mxu0 %v1466
    %1550 = vmatprep.subr.mxu0 0.0
    %1551 = vmatpush1.msra.mxu0 0.0
    %1552 = vmatprep.subr.mxu0 0.0
    %1553 = vmatpush1.msra.mxu0 0.0
    %1554 = vmatprep.subr.mxu0 0.0
    %1555 = vmatpush1.msra.mxu0 0.0
    %1556 = vmatprep.subr.mxu0 0.0
    %1557 = vmatpush1.msra.mxu0 0.0
    %1558 = vmatprep.subr.mxu0 0.0
    %1559 = vmatpush1.msra.mxu0 0.0
    %1560 = vmatprep.subr.mxu0 0.0
    %1561 = vmatpush1.msra.mxu0 0.0
    %1562 = vmatprep.subr.mxu0 0.0
    %1563 = vmatpush1.msra.mxu0 0.0
    %1564 = vmatprep.subr.mxu0 0.0
    %1565 = vmatpush1.msra.mxu0 0.0
    %1566 = vmatprep.subr.mxu0 0.0
    %1567 = vmatpush1.msra.mxu0 0.0
    %1568 = vmatprep.subr.mxu0 0.0
    %1569 = vmatpush1.msra.mxu0 0.0
    %1570 = vmatprep.subr.mxu0 0.0
    %1571 = vmatpush1.msra.mxu0 0.0
    %1572 = vmatprep.subr.mxu0 0.0
    %1573 = vmatpush1.msra.mxu0 0.0
    %1574 = vmatprep.subr.mxu0 0.0
    %1575 = vmatpush1.msra.mxu0 0.0
    %1576 = vmatprep.subr.mxu0 0.0
    %1577 = vmatpush1.msra.mxu0 0.0
    %1578 = vmatprep.subr.mxu0 0.0
    %1579 = vmatpush1.msra.mxu0 0.0
    %1580 = vmatprep.subr.mxu0 0.0
    %1581 = vmatpush1.msra.mxu0 0.0
    %1582 = vmatprep.subr.mxu0 0.0
    %1583 = vmatpush1.msra.mxu0 0.0
    %1584 = vmatprep.subr.mxu0 0.0
    %1585 = vmatpush1.msra.mxu0 0.0
    %1586 = vmatprep.subr.mxu0 0.0
    %1587 = vmatpush1.msra.mxu0 0.0
    %1588 = vmatprep.subr.mxu0 0.0
    %1589 = vmatpush1.msra.mxu0 0.0
    %1590 = vmatprep.subr.mxu0 0.0
    %1591 = vmatpush1.msra.mxu0 0.0
    %1592 = vmatprep.subr.mxu0 0.0
    %1593 = vmatpush1.msra.mxu0 0.0
    %1594 = vmatprep.subr.mxu0 0.0
    %1595 = vmatpush1.msra.mxu0 0.0
    %1596 = vmatprep.subr.mxu0 0.0
    %1597 = vmatpush1.msra.mxu0 0.0
    %1598 = vmatprep.subr.mxu0 0.0
    %1599 = vmatpush1.msra.mxu0 0.0
    %1600 = vmatprep.subr.mxu0 0.0
    %1601 = vmatpush1.msra.mxu0 0.0
    %1602 = vmatprep.subr.mxu0 0.0
    %1603 = vmatpush1.msra.mxu0 0.0
    %1604 = vmatprep.subr.mxu0 0.0
    %1605 = vmatpush1.msra.mxu0 0.0
    %1606 = vmatprep.mubr.f32.mxu0 0.0
    %1607 = vmatmul.mubr.f32.gmra.mrb[0].mxu0 %v1469
    %v1608 = vpop.f32.mrb[0].mxu0
    %v1609 = vadd.f32 0.0, %v1608
    %v1610 = vpop.f32.mrb[0].mxu0
    %v1611 = vadd.f32 0.0, %v1610
    %1612 = vdwg.mxu0
    %s1613 = scalar_lea.vmem [#allocation2], 4
    %v1614 = vld [vmem:[%s1613] ss:$8 sm:$0xf]
    %v1615 = vld [vmem:[%s1613] ss:$8 sm:$0xf0]
    %v1616 = vor.u32 %v1614, %v1615
    %s1617 = scalar_lea.vmem [#allocation3], 512
    %v1618 = vld [vmem:[%s1617] sm:$0xff]
    %v1619 = vld [vmem:[%s1617 + $0x8] sm:$0xff]
    %v1620 = vld [vmem:[%s1617 + $0x10] sm:$0xff]
    %v1621 = vld [vmem:[%s1617 + $0x18] sm:$0xff]
    %v1622 = vld [vmem:[%s1617 + $0x20] sm:$0xff]
    %v1623 = vld [vmem:[%s1617 + $0x28] sm:$0xff]
    %v1624 = vld [vmem:[%s1617 + $0x30] sm:$0xff]
    %v1625 = vld [vmem:[%s1617 + $0x38] sm:$0xff]
    %v1626 = vld [vmem:[%s1617 + $0x40] sm:$0xff]
    %v1627 = vld [vmem:[%s1617 + $0x48] sm:$0xff]
    %v1628 = vld [vmem:[%s1617 + $0x50] sm:$0xff]
    %v1629 = vld [vmem:[%s1617 + $0x58] sm:$0xff]
    %v1630 = vld [vmem:[%s1617 + $0x60] sm:$0xff]
    %v1631 = vld [vmem:[%s1617 + $0x68] sm:$0xff]
    %v1632 = vld [vmem:[%s1617 + $0x70] sm:$0xff]
    %v1633 = vld [vmem:[%s1617 + $0x78] sm:$0xff]
    %s1634 = scalar_lea.vmem [#allocation2], 5
    %v1635 = vld [vmem:[%s1634] ss:$8 sm:$0xf]
    %v1636 = vld [vmem:[%s1634] ss:$8 sm:$0xf0]
    %v1637 = vor.u32 %v1635, %v1636
    %s1638 = scalar_lea.vmem [#allocation3], 640
    %v1639 = vld [vmem:[%s1638] sm:$0xff]
    %v1640 = vld [vmem:[%s1638 + $0x8] sm:$0xff]
    %v1641 = vld [vmem:[%s1638 + $0x10] sm:$0xff]
    %v1642 = vld [vmem:[%s1638 + $0x18] sm:$0xff]
    %v1643 = vld [vmem:[%s1638 + $0x20] sm:$0xff]
    %v1644 = vld [vmem:[%s1638 + $0x28] sm:$0xff]
    %v1645 = vld [vmem:[%s1638 + $0x30] sm:$0xff]
    %v1646 = vld [vmem:[%s1638 + $0x38] sm:$0xff]
    %v1647 = vld [vmem:[%s1638 + $0x40] sm:$0xff]
    %v1648 = vld [vmem:[%s1638 + $0x48] sm:$0xff]
    %v1649 = vld [vmem:[%s1638 + $0x50] sm:$0xff]
    %v1650 = vld [vmem:[%s1638 + $0x58] sm:$0xff]
    %v1651 = vld [vmem:[%s1638 + $0x60] sm:$0xff]
    %v1652 = vld [vmem:[%s1638 + $0x68] sm:$0xff]
    %v1653 = vld [vmem:[%s1638 + $0x70] sm:$0xff]
    %v1654 = vld [vmem:[%s1638 + $0x78] sm:$0xff]
    %v1656 = vsel %vm685, %v1637, 0
    %1658 = vmatprep.subr.mxu0 %v1640
    %1659 = vmatpush1.msra.mxu0 %v1639
    %1660 = vmatprep.subr.mxu0 %v1644
    %1661 = vmatpush1.msra.mxu0 %v1643
    %1662 = vmatprep.subr.mxu0 %v1648
    %1663 = vmatpush1.msra.mxu0 %v1647
    %1664 = vmatprep.subr.mxu0 %v1652
    %1665 = vmatpush1.msra.mxu0 %v1651
    %1666 = vmatprep.subr.mxu0 0.0
    %1667 = vmatpush1.msra.mxu0 0.0
    %1668 = vmatprep.subr.mxu0 0.0
    %1669 = vmatpush1.msra.mxu0 0.0
    %1670 = vmatprep.subr.mxu0 0.0
    %1671 = vmatpush1.msra.mxu0 0.0
    %1672 = vmatprep.subr.mxu0 0.0
    %1673 = vmatpush1.msra.mxu0 0.0
    %1674 = vmatprep.subr.mxu0 0.0
    %1675 = vmatpush1.msra.mxu0 0.0
    %1676 = vmatprep.subr.mxu0 0.0
    %1677 = vmatpush1.msra.mxu0 0.0
    %1678 = vmatprep.subr.mxu0 0.0
    %1679 = vmatpush1.msra.mxu0 0.0
    %1680 = vmatprep.subr.mxu0 0.0
    %1681 = vmatpush1.msra.mxu0 0.0
    %1682 = vmatprep.subr.mxu0 0.0
    %1683 = vmatpush1.msra.mxu0 0.0
    %1684 = vmatprep.subr.mxu0 0.0
    %1685 = vmatpush1.msra.mxu0 0.0
    %1686 = vmatprep.subr.mxu0 0.0
    %1687 = vmatpush1.msra.mxu0 0.0
    %1688 = vmatprep.subr.mxu0 0.0
    %1689 = vmatpush1.msra.mxu0 0.0
    %1690 = vmatprep.subr.mxu0 0.0
    %1691 = vmatpush1.msra.mxu0 0.0
    %1692 = vmatprep.subr.mxu0 0.0
    %1693 = vmatpush1.msra.mxu0 0.0
    %1694 = vmatprep.subr.mxu0 0.0
    %1695 = vmatpush1.msra.mxu0 0.0
    %1696 = vmatprep.subr.mxu0 0.0
    %1697 = vmatpush1.msra.mxu0 0.0
    %1698 = vmatprep.subr.mxu0 0.0
    %1699 = vmatpush1.msra.mxu0 0.0
    %1700 = vmatprep.subr.mxu0 0.0
    %1701 = vmatpush1.msra.mxu0 0.0
    %1702 = vmatprep.subr.mxu0 0.0
    %1703 = vmatpush1.msra.mxu0 0.0
    %1704 = vmatprep.subr.mxu0 0.0
    %1705 = vmatpush1.msra.mxu0 0.0
    %1706 = vmatprep.subr.mxu0 0.0
    %1707 = vmatpush1.msra.mxu0 0.0
    %1708 = vmatprep.subr.mxu0 0.0
    %1709 = vmatpush1.msra.mxu0 0.0
    %1710 = vmatprep.subr.mxu0 0.0
    %1711 = vmatpush1.msra.mxu0 0.0
    %1712 = vmatprep.subr.mxu0 0.0
    %1713 = vmatpush1.msra.mxu0 0.0
    %1714 = vmatprep.subr.mxu0 0.0
    %1715 = vmatpush1.msra.mxu0 0.0
    %1716 = vmatprep.subr.mxu0 0.0
    %1717 = vmatpush1.msra.mxu0 0.0
    %1718 = vmatprep.subr.mxu0 0.0
    %1719 = vmatpush1.msra.mxu0 0.0
    %1720 = vmatprep.subr.mxu0 0.0
    %1721 = vmatpush1.msra.mxu0 0.0
    %1722 = vmatprep.mubr.f32.mxu0 0.0
    %1723 = vmatmul.mubr.f32.gmra.mrb[0].mxu0 %v1656
    %v1724 = vpop.f32.mrb[0].mxu0
    %v1725 = vadd.f32 0.0, %v1724
    %v1726 = vpop.f32.mrb[0].mxu0
    %v1727 = vadd.f32 0.0, %v1726
    %1728 = vdwg.mxu0
    %1729 = vmatprep.subr.mxu0 %v1642
    %1730 = vmatpush1.msra.mxu0 %v1641
    %1731 = vmatprep.subr.mxu0 %v1646
    %1732 = vmatpush1.msra.mxu0 %v1645
    %1733 = vmatprep.subr.mxu0 %v1650
    %1734 = vmatpush1.msra.mxu0 %v1649
    %1735 = vmatprep.subr.mxu0 %v1654
    %1736 = vmatpush1.msra.mxu0 %v1653
    %1737 = vmatprep.subr.mxu0 0.0
    %1738 = vmatpush1.msra.mxu0 0.0
    %1739 = vmatprep.subr.mxu0 0.0
    %1740 = vmatpush1.msra.mxu0 0.0
    %1741 = vmatprep.subr.mxu0 0.0
    %1742 = vmatpush1.msra.mxu0 0.0
    %1743 = vmatprep.subr.mxu0 0.0
    %1744 = vmatpush1.msra.mxu0 0.0
    %1745 = vmatprep.subr.mxu0 0.0
    %1746 = vmatpush1.msra.mxu0 0.0
    %1747 = vmatprep.subr.mxu0 0.0
    %1748 = vmatpush1.msra.mxu0 0.0
    %1749 = vmatprep.subr.mxu0 0.0
    %1750 = vmatpush1.msra.mxu0 0.0
    %1751 = vmatprep.subr.mxu0 0.0
    %1752 = vmatpush1.msra.mxu0 0.0
    %1753 = vmatprep.subr.mxu0 0.0
    %1754 = vmatpush1.msra.mxu0 0.0
    %1755 = vmatprep.subr.mxu0 0.0
    %1756 = vmatpush1.msra.mxu0 0.0
    %1757 = vmatprep.subr.mxu0 0.0
    %1758 = vmatpush1.msra.mxu0 0.0
    %1759 = vmatprep.subr.mxu0 0.0
    %1760 = vmatpush1.msra.mxu0 0.0
    %1761 = vmatprep.subr.mxu0 0.0
    %1762 = vmatpush1.msra.mxu0 0.0
    %1763 = vmatprep.subr.mxu0 0.0
    %1764 = vmatpush1.msra.mxu0 0.0
    %1765 = vmatprep.subr.mxu0 0.0
    %1766 = vmatpush1.msra.mxu0 0.0
    %1767 = vmatprep.subr.mxu0 0.0
    %1768 = vmatpush1.msra.mxu0 0.0
    %1769 = vmatprep.subr.mxu0 0.0
    %1770 = vmatpush1.msra.mxu0 0.0
    %1771 = vmatprep.subr.mxu0 0.0
    %1772 = vmatpush1.msra.mxu0 0.0
    %1773 = vmatprep.subr.mxu0 0.0
    %1774 = vmatpush1.msra.mxu0 0.0
    %1775 = vmatprep.subr.mxu0 0.0
    %1776 = vmatpush1.msra.mxu0 0.0
    %1777 = vmatprep.subr.mxu0 0.0
    %1778 = vmatpush1.msra.mxu0 0.0
    %1779 = vmatprep.subr.mxu0 0.0
    %1780 = vmatpush1.msra.mxu0 0.0
    %1781 = vmatprep.subr.mxu0 0.0
    %1782 = vmatpush1.msra.mxu0 0.0
    %1783 = vmatprep.subr.mxu0 0.0
    %1784 = vmatpush1.msra.mxu0 0.0
    %1785 = vmatprep.subr.mxu0 0.0
    %1786 = vmatpush1.msra.mxu0 0.0
    %1787 = vmatprep.subr.mxu0 0.0
    %1788 = vmatpush1.msra.mxu0 0.0
    %1789 = vmatprep.subr.mxu0 0.0
    %1790 = vmatpush1.msra.mxu0 0.0
    %1791 = vmatprep.subr.mxu0 0.0
    %1792 = vmatpush1.msra.mxu0 0.0
    %1793 = vmatprep.mubr.f32.mxu0 0.0
    %1794 = vmatmul.mubr.f32.gmra.mrb[0].mxu0 %v1656
    %v1795 = vpop.f32.mrb[0].mxu0
    %v1796 = vadd.f32 0.0, %v1795
    %v1797 = vpop.f32.mrb[0].mxu0
    %v1798 = vadd.f32 0.0, %v1797
    %1799 = vdwg.mxu0
    %s1800 = scalar_lea.vmem [#allocation2], 6
    %v1801 = vld [vmem:[%s1800] ss:$8 sm:$0xf]
    %v1802 = vld [vmem:[%s1800] ss:$8 sm:$0xf0]
    %v1803 = vor.u32 %v1801, %v1802
    %s1804 = scalar_lea.vmem [#allocation3], 768
    %v1805 = vld [vmem:[%s1804] sm:$0xff]
    %v1806 = vld [vmem:[%s1804 + $0x8] sm:$0xff]
    %v1807 = vld [vmem:[%s1804 + $0x10] sm:$0xff]
    %v1808 = vld [vmem:[%s1804 + $0x18] sm:$0xff]
    %v1809 = vld [vmem:[%s1804 + $0x20] sm:$0xff]
    %v1810 = vld [vmem:[%s1804 + $0x28] sm:$0xff]
    %v1811 = vld [vmem:[%s1804 + $0x30] sm:$0xff]
    %v1812 = vld [vmem:[%s1804 + $0x38] sm:$0xff]
    %v1813 = vld [vmem:[%s1804 + $0x40] sm:$0xff]
    %v1814 = vld [vmem:[%s1804 + $0x48] sm:$0xff]
    %v1815 = vld [vmem:[%s1804 + $0x50] sm:$0xff]
    %v1816 = vld [vmem:[%s1804 + $0x58] sm:$0xff]
    %v1817 = vld [vmem:[%s1804 + $0x60] sm:$0xff]
    %v1818 = vld [vmem:[%s1804 + $0x68] sm:$0xff]
    %v1819 = vld [vmem:[%s1804 + $0x70] sm:$0xff]
    %v1820 = vld [vmem:[%s1804 + $0x78] sm:$0xff]
    %s1821 = scalar_lea.vmem [#allocation2], 7
    %v1822 = vld [vmem:[%s1821] ss:$8 sm:$0xf]
    %v1823 = vld [vmem:[%s1821] ss:$8 sm:$0xf0]
    %v1824 = vor.u32 %v1822, %v1823
    %s1825 = scalar_lea.vmem [#allocation3], 896
    %v1826 = vld [vmem:[%s1825] sm:$0xff]
    %v1827 = vld [vmem:[%s1825 + $0x8] sm:$0xff]
    %v1828 = vld [vmem:[%s1825 + $0x10] sm:$0xff]
    %v1829 = vld [vmem:[%s1825 + $0x18] sm:$0xff]
    %v1830 = vld [vmem:[%s1825 + $0x20] sm:$0xff]
    %v1831 = vld [vmem:[%s1825 + $0x28] sm:$0xff]
    %v1832 = vld [vmem:[%s1825 + $0x30] sm:$0xff]
    %v1833 = vld [vmem:[%s1825 + $0x38] sm:$0xff]
    %v1834 = vld [vmem:[%s1825 + $0x40] sm:$0xff]
    %v1835 = vld [vmem:[%s1825 + $0x48] sm:$0xff]
    %v1836 = vld [vmem:[%s1825 + $0x50] sm:$0xff]
    %v1837 = vld [vmem:[%s1825 + $0x58] sm:$0xff]
    %v1838 = vld [vmem:[%s1825 + $0x60] sm:$0xff]
    %v1839 = vld [vmem:[%s1825 + $0x68] sm:$0xff]
    %v1840 = vld [vmem:[%s1825 + $0x70] sm:$0xff]
    %v1841 = vld [vmem:[%s1825 + $0x78] sm:$0xff]
    %v1843 = vsel %vm685, %v1824, 0
    %1845 = vmatprep.subr.mxu0 %v1827
    %1846 = vmatpush1.msra.mxu0 %v1826
    %1847 = vmatprep.subr.mxu0 %v1831
    %1848 = vmatpush1.msra.mxu0 %v1830
    %1849 = vmatprep.subr.mxu0 %v1835
    %1850 = vmatpush1.msra.mxu0 %v1834
    %1851 = vmatprep.subr.mxu0 %v1839
    %1852 = vmatpush1.msra.mxu0 %v1838
    %1853 = vmatprep.subr.mxu0 0.0
    %1854 = vmatpush1.msra.mxu0 0.0
    %1855 = vmatprep.subr.mxu0 0.0
    %1856 = vmatpush1.msra.mxu0 0.0
    %1857 = vmatprep.subr.mxu0 0.0
    %1858 = vmatpush1.msra.mxu0 0.0
    %1859 = vmatprep.subr.mxu0 0.0
    %1860 = vmatpush1.msra.mxu0 0.0
    %1861 = vmatprep.subr.mxu0 0.0
    %1862 = vmatpush1.msra.mxu0 0.0
    %1863 = vmatprep.subr.mxu0 0.0
    %1864 = vmatpush1.msra.mxu0 0.0
    %1865 = vmatprep.subr.mxu0 0.0
    %1866 = vmatpush1.msra.mxu0 0.0
    %1867 = vmatprep.subr.mxu0 0.0
    %1868 = vmatpush1.msra.mxu0 0.0
    %1869 = vmatprep.subr.mxu0 0.0
    %1870 = vmatpush1.msra.mxu0 0.0
    %1871 = vmatprep.subr.mxu0 0.0
    %1872 = vmatpush1.msra.mxu0 0.0
    %1873 = vmatprep.subr.mxu0 0.0
    %1874 = vmatpush1.msra.mxu0 0.0
    %1875 = vmatprep.subr.mxu0 0.0
    %1876 = vmatpush1.msra.mxu0 0.0
    %1877 = vmatprep.subr.mxu0 0.0
    %1878 = vmatpush1.msra.mxu0 0.0
    %1879 = vmatprep.subr.mxu0 0.0
    %1880 = vmatpush1.msra.mxu0 0.0
    %1881 = vmatprep.subr.mxu0 0.0
    %1882 = vmatpush1.msra.mxu0 0.0
    %1883 = vmatprep.subr.mxu0 0.0
    %1884 = vmatpush1.msra.mxu0 0.0
    %1885 = vmatprep.subr.mxu0 0.0
    %1886 = vmatpush1.msra.mxu0 0.0
    %1887 = vmatprep.subr.mxu0 0.0
    %1888 = vmatpush1.msra.mxu0 0.0
    %1889 = vmatprep.subr.mxu0 0.0
    %1890 = vmatpush1.msra.mxu0 0.0
    %1891 = vmatprep.subr.mxu0 0.0
    %1892 = vmatpush1.msra.mxu0 0.0
    %1893 = vmatprep.subr.mxu0 0.0
    %1894 = vmatpush1.msra.mxu0 0.0
    %1895 = vmatprep.subr.mxu0 0.0
    %1896 = vmatpush1.msra.mxu0 0.0
    %1897 = vmatprep.subr.mxu0 0.0
    %1898 = vmatpush1.msra.mxu0 0.0
    %1899 = vmatprep.subr.mxu0 0.0
    %1900 = vmatpush1.msra.mxu0 0.0
    %1901 = vmatprep.subr.mxu0 0.0
    %1902 = vmatpush1.msra.mxu0 0.0
    %1903 = vmatprep.subr.mxu0 0.0
    %1904 = vmatpush1.msra.mxu0 0.0
    %1905 = vmatprep.subr.mxu0 0.0
    %1906 = vmatpush1.msra.mxu0 0.0
    %1907 = vmatprep.subr.mxu0 0.0
    %1908 = vmatpush1.msra.mxu0 0.0
    %1909 = vmatprep.mubr.f32.mxu0 0.0
    %1910 = vmatmul.mubr.f32.gmra.mrb[0].mxu0 %v1843
    %v1911 = vpop.f32.mrb[0].mxu0
    %v1912 = vadd.f32 0.0, %v1911
    %v1913 = vpop.f32.mrb[0].mxu0
    %v1914 = vadd.f32 0.0, %v1913
    %1915 = vdwg.mxu0
    %1916 = vmatprep.subr.mxu0 %v1829
    %1917 = vmatpush1.msra.mxu0 %v1828
    %1918 = vmatprep.subr.mxu0 %v1833
    %1919 = vmatpush1.msra.mxu0 %v1832
    %1920 = vmatprep.subr.mxu0 %v1837
    %1921 = vmatpush1.msra.mxu0 %v1836
    %1922 = vmatprep.subr.mxu0 %v1841
    %1923 = vmatpush1.msra.mxu0 %v1840
    %1924 = vmatprep.subr.mxu0 0.0
    %1925 = vmatpush1.msra.mxu0 0.0
    %1926 = vmatprep.subr.mxu0 0.0
    %1927 = vmatpush1.msra.mxu0 0.0
    %1928 = vmatprep.subr.mxu0 0.0
    %1929 = vmatpush1.msra.mxu0 0.0
    %1930 = vmatprep.subr.mxu0 0.0
    %1931 = vmatpush1.msra.mxu0 0.0
    %1932 = vmatprep.subr.mxu0 0.0
    %1933 = vmatpush1.msra.mxu0 0.0
    %1934 = vmatprep.subr.mxu0 0.0
    %1935 = vmatpush1.msra.mxu0 0.0
    %1936 = vmatprep.subr.mxu0 0.0
    %1937 = vmatpush1.msra.mxu0 0.0
    %1938 = vmatprep.subr.mxu0 0.0
    %1939 = vmatpush1.msra.mxu0 0.0
    %1940 = vmatprep.subr.mxu0 0.0
    %1941 = vmatpush1.msra.mxu0 0.0
    %1942 = vmatprep.subr.mxu0 0.0
    %1943 = vmatpush1.msra.mxu0 0.0
    %1944 = vmatprep.subr.mxu0 0.0
    %1945 = vmatpush1.msra.mxu0 0.0
    %1946 = vmatprep.subr.mxu0 0.0
    %1947 = vmatpush1.msra.mxu0 0.0
    %1948 = vmatprep.subr.mxu0 0.0
    %1949 = vmatpush1.msra.mxu0 0.0
    %1950 = vmatprep.subr.mxu0 0.0
    %1951 = vmatpush1.msra.mxu0 0.0
    %1952 = vmatprep.subr.mxu0 0.0
    %1953 = vmatpush1.msra.mxu0 0.0
    %1954 = vmatprep.subr.mxu0 0.0
    %1955 = vmatpush1.msra.mxu0 0.0
    %1956 = vmatprep.subr.mxu0 0.0
    %1957 = vmatpush1.msra.mxu0 0.0
    %1958 = vmatprep.subr.mxu0 0.0
    %1959 = vmatpush1.msra.mxu0 0.0
    %1960 = vmatprep.subr.mxu0 0.0
    %1961 = vmatpush1.msra.mxu0 0.0
    %1962 = vmatprep.subr.mxu0 0.0
    %1963 = vmatpush1.msra.mxu0 0.0
    %1964 = vmatprep.subr.mxu0 0.0
    %1965 = vmatpush1.msra.mxu0 0.0
    %1966 = vmatprep.subr.mxu0 0.0
    %1967 = vmatpush1.msra.mxu0 0.0
    %1968 = vmatprep.subr.mxu0 0.0
    %1969 = vmatpush1.msra.mxu0 0.0
    %1970 = vmatprep.subr.mxu0 0.0
    %1971 = vmatpush1.msra.mxu0 0.0
    %1972 = vmatprep.subr.mxu0 0.0
    %1973 = vmatpush1.msra.mxu0 0.0
    %1974 = vmatprep.subr.mxu0 0.0
    %1975 = vmatpush1.msra.mxu0 0.0
    %1976 = vmatprep.subr.mxu0 0.0
    %1977 = vmatpush1.msra.mxu0 0.0
    %1978 = vmatprep.subr.mxu0 0.0
    %1979 = vmatpush1.msra.mxu0 0.0
    %1980 = vmatprep.mubr.f32.mxu0 0.0
    %1981 = vmatmul.mubr.f32.gmra.mrb[0].mxu0 %v1843
    %v1982 = vpop.f32.mrb[0].mxu0
    %v1983 = vadd.f32 0.0, %v1982
    %v1984 = vpop.f32.mrb[0].mxu0
    %v1985 = vadd.f32 0.0, %v1984
    %1986 = vdwg.mxu0
    %v1988 = vsel %vm685, %v1243, 0
    %1990 = vmatprep.subr.mxu0 %v1245
    %1991 = vmatpush1.msra.mxu0 %v1244
    %1992 = vmatprep.subr.mxu0 %v1249
    %1993 = vmatpush1.msra.mxu0 %v1248
    %1994 = vmatprep.subr.mxu0 %v1253
    %1995 = vmatpush1.msra.mxu0 %v1252
    %1996 = vmatprep.subr.mxu0 %v1257
    %1997 = vmatpush1.msra.mxu0 %v1256
    %1998 = vmatprep.subr.mxu0 0.0
    %1999 = vmatpush1.msra.mxu0 0.0
    %2000 = vmatprep.subr.mxu0 0.0
    %2001 = vmatpush1.msra.mxu0 0.0
    %2002 = vmatprep.subr.mxu0 0.0
    %2003 = vmatpush1.msra.mxu0 0.0
    %2004 = vmatprep.subr.mxu0 0.0
    %2005 = vmatpush1.msra.mxu0 0.0
    %2006 = vmatprep.subr.mxu0 0.0
    %2007 = vmatpush1.msra.mxu0 0.0
    %2008 = vmatprep.subr.mxu0 0.0
    %2009 = vmatpush1.msra.mxu0 0.0
    %2010 = vmatprep.subr.mxu0 0.0
    %2011 = vmatpush1.msra.mxu0 0.0
    %2012 = vmatprep.subr.mxu0 0.0
    %2013 = vmatpush1.msra.mxu0 0.0
    %2014 = vmatprep.subr.mxu0 0.0
    %2015 = vmatpush1.msra.mxu0 0.0
    %2016 = vmatprep.subr.mxu0 0.0
    %2017 = vmatpush1.msra.mxu0 0.0
    %2018 = vmatprep.subr.mxu0 0.0
    %2019 = vmatpush1.msra.mxu0 0.0
    %2020 = vmatprep.subr.mxu0 0.0
    %2021 = vmatpush1.msra.mxu0 0.0
    %2022 = vmatprep.subr.mxu0 0.0
    %2023 = vmatpush1.msra.mxu0 0.0
    %2024 = vmatprep.subr.mxu0 0.0
    %2025 = vmatpush1.msra.mxu0 0.0
    %2026 = vmatprep.subr.mxu0 0.0
    %2027 = vmatpush1.msra.mxu0 0.0
    %2028 = vmatprep.subr.mxu0 0.0
    %2029 = vmatpush1.msra.mxu0 0.0
    %2030 = vmatprep.subr.mxu0 0.0
    %2031 = vmatpush1.msra.mxu0 0.0
    %2032 = vmatprep.subr.mxu0 0.0
    %2033 = vmatpush1.msra.mxu0 0.0
    %2034 = vmatprep.subr.mxu0 0.0
    %2035 = vmatpush1.msra.mxu0 0.0
    %2036 = vmatprep.subr.mxu0 0.0
    %2037 = vmatpush1.msra.mxu0 0.0
    %2038 = vmatprep.subr.mxu0 0.0
    %2039 = vmatpush1.msra.mxu0 0.0
    %2040 = vmatprep.subr.mxu0 0.0
    %2041 = vmatpush1.msra.mxu0 0.0
    %2042 = vmatprep.subr.mxu0 0.0
    %2043 = vmatpush1.msra.mxu0 0.0
    %2044 = vmatprep.subr.mxu0 0.0
    %2045 = vmatpush1.msra.mxu0 0.0
    %2046 = vmatprep.subr.mxu0 0.0
    %2047 = vmatpush1.msra.mxu0 0.0
    %2048 = vmatprep.subr.mxu0 0.0
    %2049 = vmatpush1.msra.mxu0 0.0
    %2050 = vmatprep.subr.mxu0 0.0
    %2051 = vmatpush1.msra.mxu0 0.0
    %2052 = vmatprep.subr.mxu0 0.0
    %2053 = vmatpush1.msra.mxu0 0.0
    %2054 = vmatprep.mubr.f32.mxu0 0.0
    %2055 = vmatmul.mubr.f32.gmra.mrb[0].mxu0 %v1988
    %v2056 = vpop.f32.mrb[0].mxu0
    %v2057 = vadd.f32 %v1351, %v2056
    %v2058 = vpop.f32.mrb[0].mxu0
    %v2059 = vadd.f32 %v1353, %v2058
    %2060 = vdwg.mxu0
    %2061 = vmatprep.subr.mxu0 %v1247
    %2062 = vmatpush1.msra.mxu0 %v1246
    %2063 = vmatprep.subr.mxu0 %v1251
    %2064 = vmatpush1.msra.mxu0 %v1250
    %2065 = vmatprep.subr.mxu0 %v1255
    %2066 = vmatpush1.msra.mxu0 %v1254
    %2067 = vmatprep.subr.mxu0 %v1259
    %2068 = vmatpush1.msra.mxu0 %v1258
    %2069 = vmatprep.subr.mxu0 0.0
    %2070 = vmatpush1.msra.mxu0 0.0
    %2071 = vmatprep.subr.mxu0 0.0
    %2072 = vmatpush1.msra.mxu0 0.0
    %2073 = vmatprep.subr.mxu0 0.0
    %2074 = vmatpush1.msra.mxu0 0.0
    %2075 = vmatprep.subr.mxu0 0.0
    %2076 = vmatpush1.msra.mxu0 0.0
    %2077 = vmatprep.subr.mxu0 0.0
    %2078 = vmatpush1.msra.mxu0 0.0
    %2079 = vmatprep.subr.mxu0 0.0
    %2080 = vmatpush1.msra.mxu0 0.0
    %2081 = vmatprep.subr.mxu0 0.0
    %2082 = vmatpush1.msra.mxu0 0.0
    %2083 = vmatprep.subr.mxu0 0.0
    %2084 = vmatpush1.msra.mxu0 0.0
    %2085 = vmatprep.subr.mxu0 0.0
    %2086 = vmatpush1.msra.mxu0 0.0
    %2087 = vmatprep.subr.mxu0 0.0
    %2088 = vmatpush1.msra.mxu0 0.0
    %2089 = vmatprep.subr.mxu0 0.0
    %2090 = vmatpush1.msra.mxu0 0.0
    %2091 = vmatprep.subr.mxu0 0.0
    %2092 = vmatpush1.msra.mxu0 0.0
    %2093 = vmatprep.subr.mxu0 0.0
    %2094 = vmatpush1.msra.mxu0 0.0
    %2095 = vmatprep.subr.mxu0 0.0
    %2096 = vmatpush1.msra.mxu0 0.0
    %2097 = vmatprep.subr.mxu0 0.0
    %2098 = vmatpush1.msra.mxu0 0.0
    %2099 = vmatprep.subr.mxu0 0.0
    %2100 = vmatpush1.msra.mxu0 0.0
    %2101 = vmatprep.subr.mxu0 0.0
    %2102 = vmatpush1.msra.mxu0 0.0
    %2103 = vmatprep.subr.mxu0 0.0
    %2104 = vmatpush1.msra.mxu0 0.0
    %2105 = vmatprep.subr.mxu0 0.0
    %2106 = vmatpush1.msra.mxu0 0.0
    %2107 = vmatprep.subr.mxu0 0.0
    %2108 = vmatpush1.msra.mxu0 0.0
    %2109 = vmatprep.subr.mxu0 0.0
    %2110 = vmatpush1.msra.mxu0 0.0
    %2111 = vmatprep.subr.mxu0 0.0
    %2112 = vmatpush1.msra.mxu0 0.0
    %2113 = vmatprep.subr.mxu0 0.0
    %2114 = vmatpush1.msra.mxu0 0.0
    %2115 = vmatprep.subr.mxu0 0.0
    %2116 = vmatpush1.msra.mxu0 0.0
    %2117 = vmatprep.subr.mxu0 0.0
    %2118 = vmatpush1.msra.mxu0 0.0
    %2119 = vmatprep.subr.mxu0 0.0
    %2120 = vmatpush1.msra.mxu0 0.0
    %2121 = vmatprep.subr.mxu0 0.0
    %2122 = vmatpush1.msra.mxu0 0.0
    %2123 = vmatprep.subr.mxu0 0.0
    %2124 = vmatpush1.msra.mxu0 0.0
    %2125 = vmatprep.mubr.f32.mxu0 0.0
    %2126 = vmatmul.mubr.f32.gmra.mrb[0].mxu0 %v1988
    %v2127 = vpop.f32.mrb[0].mxu0
    %v2128 = vadd.f32 %v1422, %v2127
    %v2129 = vpop.f32.mrb[0].mxu0
    %v2130 = vadd.f32 %v1424, %v2129
    %2131 = vdwg.mxu0
    %v2133 = vsel %vm685, %v1429, 0
    %2135 = vmatprep.subr.mxu0 %v1432
    %2136 = vmatpush1.msra.mxu0 %v1431
    %2137 = vmatprep.subr.mxu0 %v1436
    %2138 = vmatpush1.msra.mxu0 %v1435
    %2139 = vmatprep.subr.mxu0 %v1440
    %2140 = vmatpush1.msra.mxu0 %v1439
    %2141 = vmatprep.subr.mxu0 %v1444
    %2142 = vmatpush1.msra.mxu0 %v1443
    %2143 = vmatprep.subr.mxu0 0.0
    %2144 = vmatpush1.msra.mxu0 0.0
    %2145 = vmatprep.subr.mxu0 0.0
    %2146 = vmatpush1.msra.mxu0 0.0
    %2147 = vmatprep.subr.mxu0 0.0
    %2148 = vmatpush1.msra.mxu0 0.0
    %2149 = vmatprep.subr.mxu0 0.0
    %2150 = vmatpush1.msra.mxu0 0.0
    %2151 = vmatprep.subr.mxu0 0.0
    %2152 = vmatpush1.msra.mxu0 0.0
    %2153 = vmatprep.subr.mxu0 0.0
    %2154 = vmatpush1.msra.mxu0 0.0
    %2155 = vmatprep.subr.mxu0 0.0
    %2156 = vmatpush1.msra.mxu0 0.0
    %2157 = vmatprep.subr.mxu0 0.0
    %2158 = vmatpush1.msra.mxu0 0.0
    %2159 = vmatprep.subr.mxu0 0.0
    %2160 = vmatpush1.msra.mxu0 0.0
    %2161 = vmatprep.subr.mxu0 0.0
    %2162 = vmatpush1.msra.mxu0 0.0
    %2163 = vmatprep.subr.mxu0 0.0
    %2164 = vmatpush1.msra.mxu0 0.0
    %2165 = vmatprep.subr.mxu0 0.0
    %2166 = vmatpush1.msra.mxu0 0.0
    %2167 = vmatprep.subr.mxu0 0.0
    %2168 = vmatpush1.msra.mxu0 0.0
    %2169 = vmatprep.subr.mxu0 0.0
    %2170 = vmatpush1.msra.mxu0 0.0
    %2171 = vmatprep.subr.mxu0 0.0
    %2172 = vmatpush1.msra.mxu0 0.0
    %2173 = vmatprep.subr.mxu0 0.0
    %2174 = vmatpush1.msra.mxu0 0.0
    %2175 = vmatprep.subr.mxu0 0.0
    %2176 = vmatpush1.msra.mxu0 0.0
    %2177 = vmatprep.subr.mxu0 0.0
    %2178 = vmatpush1.msra.mxu0 0.0
    %2179 = vmatprep.subr.mxu0 0.0
    %2180 = vmatpush1.msra.mxu0 0.0
    %2181 = vmatprep.subr.mxu0 0.0
    %2182 = vmatpush1.msra.mxu0 0.0
    %2183 = vmatprep.subr.mxu0 0.0
    %2184 = vmatpush1.msra.mxu0 0.0
    %2185 = vmatprep.subr.mxu0 0.0
    %2186 = vmatpush1.msra.mxu0 0.0
    %2187 = vmatprep.subr.mxu0 0.0
    %2188 = vmatpush1.msra.mxu0 0.0
    %2189 = vmatprep.subr.mxu0 0.0
    %2190 = vmatpush1.msra.mxu0 0.0
    %2191 = vmatprep.subr.mxu0 0.0
    %2192 = vmatpush1.msra.mxu0 0.0
    %2193 = vmatprep.subr.mxu0 0.0
    %2194 = vmatpush1.msra.mxu0 0.0
    %2195 = vmatprep.subr.mxu0 0.0
    %2196 = vmatpush1.msra.mxu0 0.0
    %2197 = vmatprep.subr.mxu0 0.0
    %2198 = vmatpush1.msra.mxu0 0.0
    %2199 = vmatprep.mubr.f32.mxu0 0.0
    %2200 = vmatmul.mubr.f32.gmra.mrb[0].mxu0 %v2133
    %v2201 = vpop.f32.mrb[0].mxu0
    %v2202 = vadd.f32 %v1538, %v2201
    %v2203 = vpop.f32.mrb[0].mxu0
    %v2204 = vadd.f32 %v1540, %v2203
    %2205 = vdwg.mxu0
    %2206 = vmatprep.subr.mxu0 %v1434
    %2207 = vmatpush1.msra.mxu0 %v1433
    %2208 = vmatprep.subr.mxu0 %v1438
    %2209 = vmatpush1.msra.mxu0 %v1437
    %2210 = vmatprep.subr.mxu0 %v1442
    %2211 = vmatpush1.msra.mxu0 %v1441
    %2212 = vmatprep.subr.mxu0 %v1446
    %2213 = vmatpush1.msra.mxu0 %v1445
    %2214 = vmatprep.subr.mxu0 0.0
    %2215 = vmatpush1.msra.mxu0 0.0
    %2216 = vmatprep.subr.mxu0 0.0
    %2217 = vmatpush1.msra.mxu0 0.0
    %2218 = vmatprep.subr.mxu0 0.0
    %2219 = vmatpush1.msra.mxu0 0.0
    %2220 = vmatprep.subr.mxu0 0.0
    %2221 = vmatpush1.msra.mxu0 0.0
    %2222 = vmatprep.subr.mxu0 0.0
    %2223 = vmatpush1.msra.mxu0 0.0
    %2224 = vmatprep.subr.mxu0 0.0
    %2225 = vmatpush1.msra.mxu0 0.0
    %2226 = vmatprep.subr.mxu0 0.0
    %2227 = vmatpush1.msra.mxu0 0.0
    %2228 = vmatprep.subr.mxu0 0.0
    %2229 = vmatpush1.msra.mxu0 0.0
    %2230 = vmatprep.subr.mxu0 0.0
    %2231 = vmatpush1.msra.mxu0 0.0
    %2232 = vmatprep.subr.mxu0 0.0
    %2233 = vmatpush1.msra.mxu0 0.0
    %2234 = vmatprep.subr.mxu0 0.0
    %2235 = vmatpush1.msra.mxu0 0.0
    %2236 = vmatprep.subr.mxu0 0.0
    %2237 = vmatpush1.msra.mxu0 0.0
    %2238 = vmatprep.subr.mxu0 0.0
    %2239 = vmatpush1.msra.mxu0 0.0
    %2240 = vmatprep.subr.mxu0 0.0
    %2241 = vmatpush1.msra.mxu0 0.0
    %2242 = vmatprep.subr.mxu0 0.0
    %2243 = vmatpush1.msra.mxu0 0.0
    %2244 = vmatprep.subr.mxu0 0.0
    %2245 = vmatpush1.msra.mxu0 0.0
    %2246 = vmatprep.subr.mxu0 0.0
    %2247 = vmatpush1.msra.mxu0 0.0
    %2248 = vmatprep.subr.mxu0 0.0
    %2249 = vmatpush1.msra.mxu0 0.0
    %2250 = vmatprep.subr.mxu0 0.0
    %2251 = vmatpush1.msra.mxu0 0.0
    %2252 = vmatprep.subr.mxu0 0.0
    %2253 = vmatpush1.msra.mxu0 0.0
    %2254 = vmatprep.subr.mxu0 0.0
    %2255 = vmatpush1.msra.mxu0 0.0
    %2256 = vmatprep.subr.mxu0 0.0
    %2257 = vmatpush1.msra.mxu0 0.0
    %2258 = vmatprep.subr.mxu0 0.0
    %2259 = vmatpush1.msra.mxu0 0.0
    %2260 = vmatprep.subr.mxu0 0.0
    %2261 = vmatpush1.msra.mxu0 0.0
    %2262 = vmatprep.subr.mxu0 0.0
    %2263 = vmatpush1.msra.mxu0 0.0
    %2264 = vmatprep.subr.mxu0 0.0
    %2265 = vmatpush1.msra.mxu0 0.0
    %2266 = vmatprep.subr.mxu0 0.0
    %2267 = vmatpush1.msra.mxu0 0.0
    %2268 = vmatprep.subr.mxu0 0.0
    %2269 = vmatpush1.msra.mxu0 0.0
    %2270 = vmatprep.mubr.f32.mxu0 0.0
    %2271 = vmatmul.mubr.f32.gmra.mrb[0].mxu0 %v2133
    %v2272 = vpop.f32.mrb[0].mxu0
    %v2273 = vadd.f32 %v1609, %v2272
    %v2274 = vpop.f32.mrb[0].mxu0
    %v2275 = vadd.f32 %v1611, %v2274
    %2276 = vdwg.mxu0
    %v2278 = vsel %vm685, %v1616, 0
    %2280 = vmatprep.subr.mxu0 %v1619
    %2281 = vmatpush1.msra.mxu0 %v1618
    %2282 = vmatprep.subr.mxu0 %v1623
    %2283 = vmatpush1.msra.mxu0 %v1622
    %2284 = vmatprep.subr.mxu0 %v1627
    %2285 = vmatpush1.msra.mxu0 %v1626
    %2286 = vmatprep.subr.mxu0 %v1631
    %2287 = vmatpush1.msra.mxu0 %v1630
    %2288 = vmatprep.subr.mxu0 0.0
    %2289 = vmatpush1.msra.mxu0 0.0
    %2290 = vmatprep.subr.mxu0 0.0
    %2291 = vmatpush1.msra.mxu0 0.0
    %2292 = vmatprep.subr.mxu0 0.0
    %2293 = vmatpush1.msra.mxu0 0.0
    %2294 = vmatprep.subr.mxu0 0.0
    %2295 = vmatpush1.msra.mxu0 0.0
    %2296 = vmatprep.subr.mxu0 0.0
    %2297 = vmatpush1.msra.mxu0 0.0
    %2298 = vmatprep.subr.mxu0 0.0
    %2299 = vmatpush1.msra.mxu0 0.0
    %2300 = vmatprep.subr.mxu0 0.0
    %2301 = vmatpush1.msra.mxu0 0.0
    %2302 = vmatprep.subr.mxu0 0.0
    %2303 = vmatpush1.msra.mxu0 0.0
    %2304 = vmatprep.subr.mxu0 0.0
    %2305 = vmatpush1.msra.mxu0 0.0
    %2306 = vmatprep.subr.mxu0 0.0
    %2307 = vmatpush1.msra.mxu0 0.0
    %2308 = vmatprep.subr.mxu0 0.0
    %2309 = vmatpush1.msra.mxu0 0.0
    %2310 = vmatprep.subr.mxu0 0.0
    %2311 = vmatpush1.msra.mxu0 0.0
    %2312 = vmatprep.subr.mxu0 0.0
    %2313 = vmatpush1.msra.mxu0 0.0
    %2314 = vmatprep.subr.mxu0 0.0
    %2315 = vmatpush1.msra.mxu0 0.0
    %2316 = vmatprep.subr.mxu0 0.0
    %2317 = vmatpush1.msra.mxu0 0.0
    %2318 = vmatprep.subr.mxu0 0.0
    %2319 = vmatpush1.msra.mxu0 0.0
    %2320 = vmatprep.subr.mxu0 0.0
    %2321 = vmatpush1.msra.mxu0 0.0
    %2322 = vmatprep.subr.mxu0 0.0
    %2323 = vmatpush1.msra.mxu0 0.0
    %2324 = vmatprep.subr.mxu0 0.0
    %2325 = vmatpush1.msra.mxu0 0.0
    %2326 = vmatprep.subr.mxu0 0.0
    %2327 = vmatpush1.msra.mxu0 0.0
    %2328 = vmatprep.subr.mxu0 0.0
    %2329 = vmatpush1.msra.mxu0 0.0
    %2330 = vmatprep.subr.mxu0 0.0
    %2331 = vmatpush1.msra.mxu0 0.0
    %2332 = vmatprep.subr.mxu0 0.0
    %2333 = vmatpush1.msra.mxu0 0.0
    %2334 = vmatprep.subr.mxu0 0.0
    %2335 = vmatpush1.msra.mxu0 0.0
    %2336 = vmatprep.subr.mxu0 0.0
    %2337 = vmatpush1.msra.mxu0 0.0
    %2338 = vmatprep.subr.mxu0 0.0
    %2339 = vmatpush1.msra.mxu0 0.0
    %2340 = vmatprep.subr.mxu0 0.0
    %2341 = vmatpush1.msra.mxu0 0.0
    %2342 = vmatprep.subr.mxu0 0.0
    %2343 = vmatpush1.msra.mxu0 0.0
    %2344 = vmatprep.mubr.f32.mxu0 0.0
    %2345 = vmatmul.mubr.f32.gmra.mrb[0].mxu0 %v2278
    %v2346 = vpop.f32.mrb[0].mxu0
    %v2347 = vadd.f32 %v1725, %v2346
    %v2348 = vpop.f32.mrb[0].mxu0
    %v2349 = vadd.f32 %v1727, %v2348
    %2350 = vdwg.mxu0
    %2351 = vmatprep.subr.mxu0 %v1621
    %2352 = vmatpush1.msra.mxu0 %v1620
    %2353 = vmatprep.subr.mxu0 %v1625
    %2354 = vmatpush1.msra.mxu0 %v1624
    %2355 = vmatprep.subr.mxu0 %v1629
    %2356 = vmatpush1.msra.mxu0 %v1628
    %2357 = vmatprep.subr.mxu0 %v1633
    %2358 = vmatpush1.msra.mxu0 %v1632
    %2359 = vmatprep.subr.mxu0 0.0
    %2360 = vmatpush1.msra.mxu0 0.0
    %2361 = vmatprep.subr.mxu0 0.0
    %2362 = vmatpush1.msra.mxu0 0.0
    %2363 = vmatprep.subr.mxu0 0.0
    %2364 = vmatpush1.msra.mxu0 0.0
    %2365 = vmatprep.subr.mxu0 0.0
    %2366 = vmatpush1.msra.mxu0 0.0
    %2367 = vmatprep.subr.mxu0 0.0
    %2368 = vmatpush1.msra.mxu0 0.0
    %2369 = vmatprep.subr.mxu0 0.0
    %2370 = vmatpush1.msra.mxu0 0.0
    %2371 = vmatprep.subr.mxu0 0.0
    %2372 = vmatpush1.msra.mxu0 0.0
    %2373 = vmatprep.subr.mxu0 0.0
    %2374 = vmatpush1.msra.mxu0 0.0
    %2375 = vmatprep.subr.mxu0 0.0
    %2376 = vmatpush1.msra.mxu0 0.0
    %2377 = vmatprep.subr.mxu0 0.0
    %2378 = vmatpush1.msra.mxu0 0.0
    %2379 = vmatprep.subr.mxu0 0.0
    %2380 = vmatpush1.msra.mxu0 0.0
    %2381 = vmatprep.subr.mxu0 0.0
    %2382 = vmatpush1.msra.mxu0 0.0
    %2383 = vmatprep.subr.mxu0 0.0
    %2384 = vmatpush1.msra.mxu0 0.0
    %2385 = vmatprep.subr.mxu0 0.0
    %2386 = vmatpush1.msra.mxu0 0.0
    %2387 = vmatprep.subr.mxu0 0.0
    %2388 = vmatpush1.msra.mxu0 0.0
    %2389 = vmatprep.subr.mxu0 0.0
    %2390 = vmatpush1.msra.mxu0 0.0
    %2391 = vmatprep.subr.mxu0 0.0
    %2392 = vmatpush1.msra.mxu0 0.0
    %2393 = vmatprep.subr.mxu0 0.0
    %2394 = vmatpush1.msra.mxu0 0.0
    %2395 = vmatprep.subr.mxu0 0.0
    %2396 = vmatpush1.msra.mxu0 0.0
    %2397 = vmatprep.subr.mxu0 0.0
    %2398 = vmatpush1.msra.mxu0 0.0
    %2399 = vmatprep.subr.mxu0 0.0
    %2400 = vmatpush1.msra.mxu0 0.0
    %2401 = vmatprep.subr.mxu0 0.0
    %2402 = vmatpush1.msra.mxu0 0.0
    %2403 = vmatprep.subr.mxu0 0.0
    %2404 = vmatpush1.msra.mxu0 0.0
    %2405 = vmatprep.subr.mxu0 0.0
    %2406 = vmatpush1.msra.mxu0 0.0
    %2407 = vmatprep.subr.mxu0 0.0
    %2408 = vmatpush1.msra.mxu0 0.0
    %2409 = vmatprep.subr.mxu0 0.0
    %2410 = vmatpush1.msra.mxu0 0.0
    %2411 = vmatprep.subr.mxu0 0.0
    %2412 = vmatpush1.msra.mxu0 0.0
    %2413 = vmatprep.subr.mxu0 0.0
    %2414 = vmatpush1.msra.mxu0 0.0
    %2415 = vmatprep.mubr.f32.mxu0 0.0
    %2416 = vmatmul.mubr.f32.gmra.mrb[0].mxu0 %v2278
    %v2417 = vpop.f32.mrb[0].mxu0
    %v2418 = vadd.f32 %v1796, %v2417
    %v2419 = vpop.f32.mrb[0].mxu0
    %v2420 = vadd.f32 %v1798, %v2419
    %2421 = vdwg.mxu0
    %v2423 = vsel %vm685, %v1803, 0
    %2425 = vmatprep.subr.mxu0 %v1806
    %2426 = vmatpush1.msra.mxu0 %v1805
    %2427 = vmatprep.subr.mxu0 %v1810
    %2428 = vmatpush1.msra.mxu0 %v1809
    %2429 = vmatprep.subr.mxu0 %v1814
    %2430 = vmatpush1.msra.mxu0 %v1813
    %2431 = vmatprep.subr.mxu0 %v1818
    %2432 = vmatpush1.msra.mxu0 %v1817
    %2433 = vmatprep.subr.mxu0 0.0
    %2434 = vmatpush1.msra.mxu0 0.0
    %2435 = vmatprep.subr.mxu0 0.0
    %2436 = vmatpush1.msra.mxu0 0.0
    %2437 = vmatprep.subr.mxu0 0.0
    %2438 = vmatpush1.msra.mxu0 0.0
    %2439 = vmatprep.subr.mxu0 0.0
    %2440 = vmatpush1.msra.mxu0 0.0
    %2441 = vmatprep.subr.mxu0 0.0
    %2442 = vmatpush1.msra.mxu0 0.0
    %2443 = vmatprep.subr.mxu0 0.0
    %2444 = vmatpush1.msra.mxu0 0.0
    %2445 = vmatprep.subr.mxu0 0.0
    %2446 = vmatpush1.msra.mxu0 0.0
    %2447 = vmatprep.subr.mxu0 0.0
    %2448 = vmatpush1.msra.mxu0 0.0
    %2449 = vmatprep.subr.mxu0 0.0
    %2450 = vmatpush1.msra.mxu0 0.0
    %2451 = vmatprep.subr.mxu0 0.0
    %2452 = vmatpush1.msra.mxu0 0.0
    %2453 = vmatprep.subr.mxu0 0.0
    %2454 = vmatpush1.msra.mxu0 0.0
    %2455 = vmatprep.subr.mxu0 0.0
    %2456 = vmatpush1.msra.mxu0 0.0
    %2457 = vmatprep.subr.mxu0 0.0
    %2458 = vmatpush1.msra.mxu0 0.0
    %2459 = vmatprep.subr.mxu0 0.0
    %2460 = vmatpush1.msra.mxu0 0.0
    %2461 = vmatprep.subr.mxu0 0.0
    %2462 = vmatpush1.msra.mxu0 0.0
    %2463 = vmatprep.subr.mxu0 0.0
    %2464 = vmatpush1.msra.mxu0 0.0
    %2465 = vmatprep.subr.mxu0 0.0
    %2466 = vmatpush1.msra.mxu0 0.0
    %2467 = vmatprep.subr.mxu0 0.0
    %2468 = vmatpush1.msra.mxu0 0.0
    %2469 = vmatprep.subr.mxu0 0.0
    %2470 = vmatpush1.msra.mxu0 0.0
    %2471 = vmatprep.subr.mxu0 0.0
    %2472 = vmatpush1.msra.mxu0 0.0
    %2473 = vmatprep.subr.mxu0 0.0
    %2474 = vmatpush1.msra.mxu0 0.0
    %2475 = vmatprep.subr.mxu0 0.0
    %2476 = vmatpush1.msra.mxu0 0.0
    %2477 = vmatprep.subr.mxu0 0.0
    %2478 = vmatpush1.msra.mxu0 0.0
    %2479 = vmatprep.subr.mxu0 0.0
    %2480 = vmatpush1.msra.mxu0 0.0
    %2481 = vmatprep.subr.mxu0 0.0
    %2482 = vmatpush1.msra.mxu0 0.0
    %2483 = vmatprep.subr.mxu0 0.0
    %2484 = vmatpush1.msra.mxu0 0.0
    %2485 = vmatprep.subr.mxu0 0.0
    %2486 = vmatpush1.msra.mxu0 0.0
    %2487 = vmatprep.subr.mxu0 0.0
    %2488 = vmatpush1.msra.mxu0 0.0
    %2489 = vmatprep.mubr.f32.mxu0 0.0
    %2490 = vmatmul.mubr.f32.gmra.mrb[0].mxu0 %v2423
    %v2491 = vpop.f32.mrb[0].mxu0
    %v2492 = vadd.f32 %v1912, %v2491
    %v2493 = vpop.f32.mrb[0].mxu0
    %v2494 = vadd.f32 %v1914, %v2493
    %2495 = vdwg.mxu0
    %2496 = vmatprep.subr.mxu0 %v1808
    %2497 = vmatpush1.msra.mxu0 %v1807
    %2498 = vmatprep.subr.mxu0 %v1812
    %2499 = vmatpush1.msra.mxu0 %v1811
    %2500 = vmatprep.subr.mxu0 %v1816
    %2501 = vmatpush1.msra.mxu0 %v1815
    %2502 = vmatprep.subr.mxu0 %v1820
    %2503 = vmatpush1.msra.mxu0 %v1819
    %2504 = vmatprep.subr.mxu0 0.0
    %2505 = vmatpush1.msra.mxu0 0.0
    %2506 = vmatprep.subr.mxu0 0.0
    %2507 = vmatpush1.msra.mxu0 0.0
    %2508 = vmatprep.subr.mxu0 0.0
    %2509 = vmatpush1.msra.mxu0 0.0
    %2510 = vmatprep.subr.mxu0 0.0
    %2511 = vmatpush1.msra.mxu0 0.0
    %2512 = vmatprep.subr.mxu0 0.0
    %2513 = vmatpush1.msra.mxu0 0.0
    %2514 = vmatprep.subr.mxu0 0.0
    %2515 = vmatpush1.msra.mxu0 0.0
    %2516 = vmatprep.subr.mxu0 0.0
    %2517 = vmatpush1.msra.mxu0 0.0
    %2518 = vmatprep.subr.mxu0 0.0
    %2519 = vmatpush1.msra.mxu0 0.0
    %2520 = vmatprep.subr.mxu0 0.0
    %2521 = vmatpush1.msra.mxu0 0.0
    %2522 = vmatprep.subr.mxu0 0.0
    %2523 = vmatpush1.msra.mxu0 0.0
    %2524 = vmatprep.subr.mxu0 0.0
    %2525 = vmatpush1.msra.mxu0 0.0
    %2526 = vmatprep.subr.mxu0 0.0
    %2527 = vmatpush1.msra.mxu0 0.0
    %2528 = vmatprep.subr.mxu0 0.0
    %2529 = vmatpush1.msra.mxu0 0.0
    %2530 = vmatprep.subr.mxu0 0.0
    %2531 = vmatpush1.msra.mxu0 0.0
    %2532 = vmatprep.subr.mxu0 0.0
    %2533 = vmatpush1.msra.mxu0 0.0
    %2534 = vmatprep.subr.mxu0 0.0
    %2535 = vmatpush1.msra.mxu0 0.0
    %2536 = vmatprep.subr.mxu0 0.0
    %2537 = vmatpush1.msra.mxu0 0.0
    %2538 = vmatprep.subr.mxu0 0.0
    %2539 = vmatpush1.msra.mxu0 0.0
    %2540 = vmatprep.subr.mxu0 0.0
    %2541 = vmatpush1.msra.mxu0 0.0
    %2542 = vmatprep.subr.mxu0 0.0
    %2543 = vmatpush1.msra.mxu0 0.0
    %2544 = vmatprep.subr.mxu0 0.0
    %2545 = vmatpush1.msra.mxu0 0.0
    %2546 = vmatprep.subr.mxu0 0.0
    %2547 = vmatpush1.msra.mxu0 0.0
    %2548 = vmatprep.subr.mxu0 0.0
    %2549 = vmatpush1.msra.mxu0 0.0
    %2550 = vmatprep.subr.mxu0 0.0
    %2551 = vmatpush1.msra.mxu0 0.0
    %2552 = vmatprep.subr.mxu0 0.0
    %2553 = vmatpush1.msra.mxu0 0.0
    %2554 = vmatprep.subr.mxu0 0.0
    %2555 = vmatpush1.msra.mxu0 0.0
    %2556 = vmatprep.subr.mxu0 0.0
    %2557 = vmatpush1.msra.mxu0 0.0
    %2558 = vmatprep.subr.mxu0 0.0
    %2559 = vmatpush1.msra.mxu0 0.0
    %2560 = vmatprep.mubr.f32.mxu0 0.0
    %2561 = vmatmul.mubr.f32.gmra.mrb[0].mxu0 %v2423
    %v2562 = vpop.f32.mrb[0].mxu0
    %v2563 = vadd.f32 %v1983, %v2562
    %v2564 = vpop.f32.mrb[0].mxu0
    %v2565 = vadd.f32 %v1985, %v2564
    %2566 = vdwg.mxu0
    %v2567 = vadd.f32 %v2057, %v2202
    %v2568 = vadd.f32 %v2059, %v2204
    %v2569 = vadd.f32 %v2128, %v2273
    %v2570 = vadd.f32 %v2130, %v2275
    %v2571 = vadd.f32 %v2347, %v2492
    %v2572 = vadd.f32 %v2349, %v2494
    %v2573 = vadd.f32 %v2418, %v2563
    %v2574 = vadd.f32 %v2420, %v2565
    %v2575 = vadd.f32 %v2567, %v2571
    %v2576 = vadd.f32 %v2568, %v2572
    %v2577 = vadd.f32 %v2569, %v2573
    %v2578 = vadd.f32 %v2570, %v2574
    %v2579 = vld [vmem:[%s5] sm:$0xf]
    %v2581 = vlaneseq
    %v2582 = vshrl.u32 %v2581, 7
    %v2583 = vsub.s32 0, %v2582
    %v2584 = vrot.slane %v2579, %v2583
    %v2585 = vlaneseq
    %v2586 = vshrl.u32 %v2585, 7
    %v2587 = vsub.s32 1, %v2586
    %v2588 = vrot.slane %v2579, %v2587
    %v2589 = vlaneseq
    %v2590 = vshrl.u32 %v2589, 7
    %v2591 = vsub.s32 2, %v2590
    %v2592 = vrot.slane %v2579, %v2591
    %v2593 = vlaneseq
    %v2594 = vshrl.u32 %v2593, 7
    %v2595 = vsub.s32 3, %v2594
    %v2596 = vrot.slane %v2579, %v2595
    %v2601 = vadd.f32 %v2575, %v2584
    %v2602 = vadd.f32 %v2576, %v2588
    %v2603 = vadd.f32 %v2577, %v2592
    %v2604 = vadd.f32 %v2578, %v2596
    %v2605 = vmax.f32 %v2601, 0.0
    %v2606 = vmax.f32 %v2602, 0.0
    %v2607 = vmax.f32 %v2603, 0.0
    %v2608 = vmax.f32 %v2604, 0.0
    %v2609 = vld [vmem:[%s6] sm:$0xff]
    %v2610 = vld [vmem:[%s6 + $0x8] sm:$0xff]
    %v2611 = vld [vmem:[%s6 + $0x10] sm:$0xff]
    %v2612 = vld [vmem:[%s6 + $0x18] sm:$0xff]
    %v2613 = vld [vmem:[%s6 + $0x20] sm:$0xff]
    %v2614 = vld [vmem:[%s6 + $0x28] sm:$0xff]
    %v2615 = vld [vmem:[%s6 + $0x30] sm:$0xff]
    %v2616 = vld [vmem:[%s6 + $0x38] sm:$0xff]
    %v2617 = vld [vmem:[%s6 + $0x40] sm:$0xff]
    %v2618 = vld [vmem:[%s6 + $0x48] sm:$0xff]
    %v2619 = vld [vmem:[%s6 + $0x50] sm:$0xff]
    %v2620 = vld [vmem:[%s6 + $0x58] sm:$0xff]
    %v2621 = vld [vmem:[%s6 + $0x60] sm:$0xff]
    %v2622 = vld [vmem:[%s6 + $0x68] sm:$0xff]
    %v2623 = vld [vmem:[%s6 + $0x70] sm:$0xff]
    %v2624 = vld [vmem:[%s6 + $0x78] sm:$0xff]
    %v2625 = vld [vmem:[%s6 + $0x80] sm:$0xff]
    %v2626 = vld [vmem:[%s6 + $0x88] sm:$0xff]
    %v2627 = vld [vmem:[%s6 + $0x90] sm:$0xff]
    %v2628 = vld [vmem:[%s6 + $0x98] sm:$0xff]
    %v2629 = vld [vmem:[%s6 + $0xa0] sm:$0xff]
    %v2630 = vld [vmem:[%s6 + $0xa8] sm:$0xff]
    %v2631 = vld [vmem:[%s6 + $0xb0] sm:$0xff]
    %v2632 = vld [vmem:[%s6 + $0xb8] sm:$0xff]
    %v2633 = vld [vmem:[%s6 + $0xc0] sm:$0xff]
    %v2634 = vld [vmem:[%s6 + $0xc8] sm:$0xff]
    %v2635 = vld [vmem:[%s6 + $0xd0] sm:$0xff]
    %v2636 = vld [vmem:[%s6 + $0xd8] sm:$0xff]
    %v2637 = vld [vmem:[%s6 + $0xe0] sm:$0xff]
    %v2638 = vld [vmem:[%s6 + $0xe8] sm:$0xff]
    %v2639 = vld [vmem:[%s6 + $0xf0] sm:$0xff]
    %v2640 = vld [vmem:[%s6 + $0xf8] sm:$0xff]
    %v2641 = vld [vmem:[%s6 + $0x100] sm:$0xff]
    %v2642 = vld [vmem:[%s6 + $0x108] sm:$0xff]
    %v2643 = vld [vmem:[%s6 + $0x110] sm:$0xff]
    %v2644 = vld [vmem:[%s6 + $0x118] sm:$0xff]
    %v2645 = vld [vmem:[%s6 + $0x120] sm:$0xff]
    %v2646 = vld [vmem:[%s6 + $0x128] sm:$0xff]
    %v2647 = vld [vmem:[%s6 + $0x130] sm:$0xff]
    %v2648 = vld [vmem:[%s6 + $0x138] sm:$0xff]
    %v2649 = vld [vmem:[%s6 + $0x140] sm:$0xff]
    %v2650 = vld [vmem:[%s6 + $0x148] sm:$0xff]
    %v2651 = vld [vmem:[%s6 + $0x150] sm:$0xff]
    %v2652 = vld [vmem:[%s6 + $0x158] sm:$0xff]
    %v2653 = vld [vmem:[%s6 + $0x160] sm:$0xff]
    %v2654 = vld [vmem:[%s6 + $0x168] sm:$0xff]
    %v2655 = vld [vmem:[%s6 + $0x170] sm:$0xff]
    %v2656 = vld [vmem:[%s6 + $0x178] sm:$0xff]
    %v2657 = vld [vmem:[%s6 + $0x180] sm:$0xff]
    %v2658 = vld [vmem:[%s6 + $0x188] sm:$0xff]
    %v2659 = vld [vmem:[%s6 + $0x190] sm:$0xff]
    %v2660 = vld [vmem:[%s6 + $0x198] sm:$0xff]
    %v2661 = vld [vmem:[%s6 + $0x1a0] sm:$0xff]
    %v2662 = vld [vmem:[%s6 + $0x1a8] sm:$0xff]
    %v2663 = vld [vmem:[%s6 + $0x1b0] sm:$0xff]
    %v2664 = vld [vmem:[%s6 + $0x1b8] sm:$0xff]
    %v2665 = vld [vmem:[%s6 + $0x1c0] sm:$0xff]
    %v2666 = vld [vmem:[%s6 + $0x1c8] sm:$0xff]
    %v2667 = vld [vmem:[%s6 + $0x1d0] sm:$0xff]
    %v2668 = vld [vmem:[%s6 + $0x1d8] sm:$0xff]
    %v2669 = vld [vmem:[%s6 + $0x1e0] sm:$0xff]
    %v2670 = vld [vmem:[%s6 + $0x1e8] sm:$0xff]
    %v2671 = vld [vmem:[%s6 + $0x1f0] sm:$0xff]
    %v2672 = vld [vmem:[%s6 + $0x1f8] sm:$0xff]
    %v2673 = vld [vmem:[%s7] sm:$0x1]
    %v2675 = vlaneseq
    %v2676 = vshrl.u32 %v2675, 7
    %v2677 = vsub.s32 0, %v2676
    %v2678 = vrot.slane %v2673, %v2677
    %2680 = vmatprep.subr.mxu0 0.0
    %2681 = vmatpush1.msra.mxu0 %v2609
    %2682 = vmatprep.subr.mxu0 0.0
    %2683 = vmatpush1.msra.mxu0 %v2610
    %2684 = vmatprep.subr.mxu0 0.0
    %2685 = vmatpush1.msra.mxu0 %v2611
    %2686 = vmatprep.subr.mxu0 0.0
    %2687 = vmatpush1.msra.mxu0 %v2612
    %2688 = vmatprep.subr.mxu0 0.0
    %2689 = vmatpush1.msra.mxu0 %v2613
    %2690 = vmatprep.subr.mxu0 0.0
    %2691 = vmatpush1.msra.mxu0 %v2614
    %2692 = vmatprep.subr.mxu0 0.0
    %2693 = vmatpush1.msra.mxu0 %v2615
    %2694 = vmatprep.subr.mxu0 0.0
    %2695 = vmatpush1.msra.mxu0 %v2616
    %2696 = vmatprep.subr.mxu0 0.0
    %2697 = vmatpush1.msra.mxu0 %v2617
    %2698 = vmatprep.subr.mxu0 0.0
    %2699 = vmatpush1.msra.mxu0 %v2618
    %2700 = vmatprep.subr.mxu0 0.0
    %2701 = vmatpush1.msra.mxu0 %v2619
    %2702 = vmatprep.subr.mxu0 0.0
    %2703 = vmatpush1.msra.mxu0 %v2620
    %2704 = vmatprep.subr.mxu0 0.0
    %2705 = vmatpush1.msra.mxu0 %v2621
    %2706 = vmatprep.subr.mxu0 0.0
    %2707 = vmatpush1.msra.mxu0 %v2622
    %2708 = vmatprep.subr.mxu0 0.0
    %2709 = vmatpush1.msra.mxu0 %v2623
    %2710 = vmatprep.subr.mxu0 0.0
    %2711 = vmatpush1.msra.mxu0 %v2624
    %2712 = vmatprep.subr.mxu0 0.0
    %2713 = vmatpush1.msra.mxu0 %v2625
    %2714 = vmatprep.subr.mxu0 0.0
    %2715 = vmatpush1.msra.mxu0 %v2626
    %2716 = vmatprep.subr.mxu0 0.0
    %2717 = vmatpush1.msra.mxu0 %v2627
    %2718 = vmatprep.subr.mxu0 0.0
    %2719 = vmatpush1.msra.mxu0 %v2628
    %2720 = vmatprep.subr.mxu0 0.0
    %2721 = vmatpush1.msra.mxu0 %v2629
    %2722 = vmatprep.subr.mxu0 0.0
    %2723 = vmatpush1.msra.mxu0 %v2630
    %2724 = vmatprep.subr.mxu0 0.0
    %2725 = vmatpush1.msra.mxu0 %v2631
    %2726 = vmatprep.subr.mxu0 0.0
    %2727 = vmatpush1.msra.mxu0 %v2632
    %2728 = vmatprep.subr.mxu0 0.0
    %2729 = vmatpush1.msra.mxu0 %v2633
    %2730 = vmatprep.subr.mxu0 0.0
    %2731 = vmatpush1.msra.mxu0 %v2634
    %2732 = vmatprep.subr.mxu0 0.0
    %2733 = vmatpush1.msra.mxu0 %v2635
    %2734 = vmatprep.subr.mxu0 0.0
    %2735 = vmatpush1.msra.mxu0 %v2636
    %2736 = vmatprep.subr.mxu0 0.0
    %2737 = vmatpush1.msra.mxu0 %v2637
    %2738 = vmatprep.subr.mxu0 0.0
    %2739 = vmatpush1.msra.mxu0 %v2638
    %2740 = vmatprep.subr.mxu0 0.0
    %2741 = vmatpush1.msra.mxu0 %v2639
    %2742 = vmatprep.subr.mxu0 0.0
    %2743 = vmatpush1.msra.mxu0 %v2640
    %2744 = vmatprep.mubr.f32.mxu0 %v2606
    %2745 = vmatmul.mubr.f32.gmra.mrb[0].mxu0 %v2605
    %v2746 = vpop.f32.mrb[0].mxu0
    %v2747 = vadd.f32 %v2678, %v2746
    %v2748 = vpop.f32.mrb[0].mxu0
    %2749 = vdwg.mxu0
    %2750 = vmatprep.subr.mxu0 0.0
    %2751 = vmatpush1.msra.mxu0 %v2641
    %2752 = vmatprep.subr.mxu0 0.0
    %2753 = vmatpush1.msra.mxu0 %v2642
    %2754 = vmatprep.subr.mxu0 0.0
    %2755 = vmatpush1.msra.mxu0 %v2643
    %2756 = vmatprep.subr.mxu0 0.0
    %2757 = vmatpush1.msra.mxu0 %v2644
    %2758 = vmatprep.subr.mxu0 0.0
    %2759 = vmatpush1.msra.mxu0 %v2645
    %2760 = vmatprep.subr.mxu0 0.0
    %2761 = vmatpush1.msra.mxu0 %v2646
    %2762 = vmatprep.subr.mxu0 0.0
    %2763 = vmatpush1.msra.mxu0 %v2647
    %2764 = vmatprep.subr.mxu0 0.0
    %2765 = vmatpush1.msra.mxu0 %v2648
    %2766 = vmatprep.subr.mxu0 0.0
    %2767 = vmatpush1.msra.mxu0 %v2649
    %2768 = vmatprep.subr.mxu0 0.0
    %2769 = vmatpush1.msra.mxu0 %v2650
    %2770 = vmatprep.subr.mxu0 0.0
    %2771 = vmatpush1.msra.mxu0 %v2651
    %2772 = vmatprep.subr.mxu0 0.0
    %2773 = vmatpush1.msra.mxu0 %v2652
    %2774 = vmatprep.subr.mxu0 0.0
    %2775 = vmatpush1.msra.mxu0 %v2653
    %2776 = vmatprep.subr.mxu0 0.0
    %2777 = vmatpush1.msra.mxu0 %v2654
    %2778 = vmatprep.subr.mxu0 0.0
    %2779 = vmatpush1.msra.mxu0 %v2655
    %2780 = vmatprep.subr.mxu0 0.0
    %2781 = vmatpush1.msra.mxu0 %v2656
    %2782 = vmatprep.subr.mxu0 0.0
    %2783 = vmatpush1.msra.mxu0 %v2657
    %2784 = vmatprep.subr.mxu0 0.0
    %2785 = vmatpush1.msra.mxu0 %v2658
    %2786 = vmatprep.subr.mxu0 0.0
    %2787 = vmatpush1.msra.mxu0 %v2659
    %2788 = vmatprep.subr.mxu0 0.0
    %2789 = vmatpush1.msra.mxu0 %v2660
    %2790 = vmatprep.subr.mxu0 0.0
    %2791 = vmatpush1.msra.mxu0 %v2661
    %2792 = vmatprep.subr.mxu0 0.0
    %2793 = vmatpush1.msra.mxu0 %v2662
    %2794 = vmatprep.subr.mxu0 0.0
    %2795 = vmatpush1.msra.mxu0 %v2663
    %2796 = vmatprep.subr.mxu0 0.0
    %2797 = vmatpush1.msra.mxu0 %v2664
    %2798 = vmatprep.subr.mxu0 0.0
    %2799 = vmatpush1.msra.mxu0 %v2665
    %2800 = vmatprep.subr.mxu0 0.0
    %2801 = vmatpush1.msra.mxu0 %v2666
    %2802 = vmatprep.subr.mxu0 0.0
    %2803 = vmatpush1.msra.mxu0 %v2667
    %2804 = vmatprep.subr.mxu0 0.0
    %2805 = vmatpush1.msra.mxu0 %v2668
    %2806 = vmatprep.subr.mxu0 0.0
    %2807 = vmatpush1.msra.mxu0 %v2669
    %2808 = vmatprep.subr.mxu0 0.0
    %2809 = vmatpush1.msra.mxu0 %v2670
    %2810 = vmatprep.subr.mxu0 0.0
    %2811 = vmatpush1.msra.mxu0 %v2671
    %2812 = vmatprep.subr.mxu0 0.0
    %2813 = vmatpush1.msra.mxu0 %v2672
    %2814 = vmatprep.mubr.f32.mxu0 %v2608
    %2815 = vmatmul.mubr.f32.gmra.mrb[0].mxu0 %v2607
    %v2816 = vpop.f32.mrb[0].mxu0
    %v2817 = vadd.f32 %v2747, %v2816
    %v2818 = vpop.f32.mrb[0].mxu0
    %2819 = vdwg.mxu0
    %v2820 = vmax.f32 %v2817, 0.0
    %vm2821 = vcmask 15360
    %v2822 = vsel %vm2821, %v2820, -inf
    %2823 = vmax.xlane.f32.xlu0 %v2822
    %v2824 = vpop.xlane.xlu0 %2823
    %v2825 = vsub.f32 %v2820, %v2824
    %v2826 = vmul.f32 %v2825, 1.442695
    %v2827 = vpow.pop %v2826
    %v2828 = vsel %vm2821, %v2827, 0.0
    %2829 = vadd.xlane.f32.xlu0 %v2828
    %v2830 = vpop.xlane.xlu0 %2829
    %v2831 = vlog2.pop %v2830
    %v2832 = vmul.f32 %v2831, 0.6931472
    %v2833 = vsub.f32 %v2825, %v2832
    %2834 = vst.msk [vmem:[%s8] sm:$0xff] %vm2821, %v2833
    // Predicated region
    $region64: #{forward.1} parent=1 // pred_check
      _
    $region65: #{forward.1} parent=1 // pred_check_branch
      %2836 = sbr.rel (0) target = $region67
    $region66: #{forward.1} parent=1 // pred_region
      _
    $region67: #{forward.1} parent=1 // pred_fallthru
      _
    // Predicated region
    $region68: #{forward.1} parent=1 // pred_check
      _
    $region69: #{forward.1} parent=1 // pred_check_branch
      %2838 = sbr.rel (0) target = $region71
    $region70: #{forward.1} parent=1 // pred_region
      %s2840 = ssub.s32 256, 256
      %2841 = vsyncadd [#allocation6], %s2840
      %s2842 = sshll.u32 [#allocation5], 4
      %s2843 = int_to_ptr.vmem [resolvable:$true] %s2842
      %2848 = dma.vmem_to_hbm [thread:$0]  %s2843, 256, %s9, [#allocation6], 128, 128, 8
    $region71: #{forward.1} parent=1 // pred_fallthru
      _
    // Predicated region
    $region72: #{forward.1} parent=1 // pred_check
      _
    $region73: #{forward.1} parent=1 // pred_check_branch
      %2850 = sbr.rel (0) target = $region75
    $region74: #{forward.1} parent=1 // pred_region
      _
    $region75: #{forward.1} parent=1 // pred_fallthru
      _
    // Predicated region
    $region76: #{forward.1} parent=1 // pred_check
      _
    $region77: #{forward.1} parent=1 // pred_check_branch
      %2852 = sbr.rel (0) target = $region79
    $region78: #{forward.1} parent=1 // pred_region
      %2853 = dma.done [#allocation6], 256
    $region79: #{forward.1} parent=1 // pred_fallthru
      _
    %2854 = vsyncpa [#allocation6], 1
  %2855 = vsyncmov [#allocation4]
  %s2856 = vpop.sfrf %2855
  %p2857 = scmp.eq.s32.totalorder %s2856, 0
  %p2858 = pneg %p2857
  %2860 = shalt.err (%p2858)

</llo_original>
